<compile_context>
chip_gen: v6e
topology: v6e:2x2x1
jax: 0.10.0
libtpu: 0.0.40
codegen_flags: <defaults>
</compile_context>

<pallas_src>
import functools

import jax
import jax.numpy as jnp
from jax.experimental import pallas as pl
from jax.experimental.pallas import tpu as pltpu

# ----------------------------- synthetic config -----------------------------
HIDDEN = 256          # config.hidden_size
NUM_HEADS = 4         # config.num_attention_heads
Q_LORA_RANK = 64      # config.q_lora_rank
KV_LORA_RANK = 64     # config.kv_lora_rank
QK_NOPE_DIM = 32      # config.qk_nope_head_dim
QK_ROPE_DIM = 16      # config.qk_rope_head_dim
V_HEAD_DIM = 32       # config.v_head_dim
INTERMEDIATE = 512    # config.intermediate_size (GatedMLP branch)
EPS = 1e-6            # config.norm_epsilon
ROPE_BASE = 10000.0   # config.rotary_base
BATCH = 2
SEQ = 8
DTYPE = jnp.float32
COMPUTE_DTYPE = jnp.bfloat16      # MXU operand dtype (f32 accumulation everywhere)

Q_HEAD_DIM = QK_NOPE_DIM + QK_ROPE_DIM       # 48
KV_HEAD_DIM = QK_NOPE_DIM + V_HEAD_DIM       # 64
ROPE_HALF = QK_ROPE_DIM // 2                 # 8
# yarn mscale == 1.0 at rotary scaling factor 1 -> plain 1/sqrt(d) softmax scale.
SOFTMAX_SCALE = float(Q_HEAD_DIM) ** -0.5
# TODO(synk): yarn beta_fast/beta_slow/mscale corrections are identity at factor=1 and
#             are not modeled for factor != 1.
# TODO(synk): HF DeepseekV2 interleaves the rope dims before rotate_half; this kernel uses
#             plain neox rotate_half (consistent between q and k, matches prior version).


# ------------------------------- fused kernel --------------------------------
def _decoder_layer_kernel(
    # inputs
    x_ref, cos_ref, sin_ref,
    w_in_ln_ref, w_qa_ref, w_qa_ln_ref, w_kva_c_ref, w_kva_ln_ref,
    w_kpe1_ref, w_kpe2_ref,
    w_q_nope_ref, w_q_pe1_ref, w_q_pe2_ref, w_k_nope_ref, w_v_ref, w_o_ref,
    w_post_ln_ref, w_fc_ref, w_gate_ref, w_proj_ref,
    # output
    o_ref,
    *, eps, scale):
  f32 = jnp.float32
  cdt = COMPUTE_DTYPE

  def rms(v, w_row):
    var = jnp.mean(v * v, axis=-1, keepdims=True)
    return v * jax.lax.rsqrt(var + eps) * w_row.astype(f32)

  def mm(a, w):            # bf16 operands on the MXU, f32 accumulation
    return jnp.dot(a.astype(cdt), w.astype(cdt), preferred_element_type=f32)

  def mm_t(a, b):          # a @ b.T (score / context dots), f32 accumulation
    return jax.lax.dot_general(a.astype(cdt), b.astype(cdt),
                               (((1,), (1,)), ((), ())),
                               preferred_element_type=f32)

  x = x_ref[0].astype(f32)                                  # (S, H)
  seq = x.shape[0]

  # ---- input_layernorm ----
  h = rms(x, w_in_ln_ref[...])

  # ---- MLA down-projections (q_a_proj / kv_a_proj_with_mqa) + their RMSNorms ----
  cq = rms(mm(h, w_qa_ref[...]), w_qa_ln_ref[...])          # (S, q_lora)
  ckv = rms(mm(h, w_kva_c_ref[...]), w_kva_ln_ref[...])     # (S, kv_lora)
  kp1 = mm(h, w_kpe1_ref[...])                              # (S, dr/2) shared k_pe halves
  kp2 = mm(h, w_kpe2_ref[...])

  # ---- RoPE (neox rotate_half) on the shared k_pe ----
  cos = cos_ref[...].astype(f32)                            # (S, dr/2)
  sin = sin_ref[...].astype(f32)
  kr1 = kp1 * cos - kp2 * sin
  kr2 = kp2 * cos + kp1 * sin

  # ---- causal mask ----
  row = jax.lax.broadcasted_iota(jnp.int32, (seq, seq), 0)
  col = jax.lax.broadcasted_iota(jnp.int32, (seq, seq), 1)
  causal = col <= row

  # ---- per-head attention + o_proj accumulation (static unroll, all in VMEM) ----
  h_attn = x                                                # first residual
  for hd in range(NUM_HEADS):
    q_nope = mm(cq, w_q_nope_ref[hd])                       # (S, dn)
    qp1 = mm(cq, w_q_pe1_ref[hd])                           # (S, dr/2)
    qp2 = mm(cq, w_q_pe2_ref[hd])
    qr1 = qp1 * cos - qp2 * sin                             # RoPE on q_pe
    qr2 = qp2 * cos + qp1 * sin
    k_nope = mm(ckv, w_k_nope_ref[hd])                      # (S, dn)
    v_h = mm(ckv, w_v_ref[hd])                              # (S, dv)

    # scores = q_nope.k_nope + q_rope.k_rope  (rope dot done on the two halves)
    s = (mm_t(q_nope, k_nope) + mm_t(qr1, kr1) + mm_t(qr2, kr2)) * scale
    s = jnp.where(causal, s, -1e30)
    m = jnp.max(s, axis=-1, keepdims=True)
    p = jnp.exp(s - m)
    l = jnp.sum(p, axis=-1, keepdims=True)
    p = p * pl.reciprocal(l, approx=True)                   # EUP reciprocal
    ctx = mm(p, v_h)                                        # (S, dv)
    h_attn = h_attn + mm(ctx, w_o_ref[hd])                  # o_proj rows of this head

  # ---- post_layernorm + GatedMLP + second residual ----
  h_post = rms(h_attn, w_post_ln_ref[...])
  a = mm(h_post, w_fc_ref[...])                             # (S, F)
  g = mm(h_post, w_gate_ref[...])                           # (S, F)
  act = (a * jax.nn.sigmoid(a)) * g                         # silu(fc(x)) * gate(x)
  y = mm(act, w_proj_ref[...])                              # (S, H)
  o_ref[0] = (h_attn + y).astype(o_ref.dtype)


# ------------------------------- params & packing ----------------------------
def init_params(key):
  keys = jax.random.split(key, 12)
  s = 0.02
  return {
      "w_in_ln":   1.0 + 0.01 * jax.random.normal(keys[0], (HIDDEN,), DTYPE),
      "w_post_ln": 1.0 + 0.01 * jax.random.normal(keys[1], (HIDDEN,), DTYPE),
      "w_qa":   s * jax.random.normal(keys[2], (HIDDEN, Q_LORA_RANK), DTYPE),
      "w_qa_ln": 1.0 + 0.01 * jax.random.normal(keys[3], (Q_LORA_RANK,), DTYPE),
      "w_qb":   s * jax.random.normal(keys[4], (Q_LORA_RANK, NUM_HEADS * Q_HEAD_DIM), DTYPE),
      "w_kva":  s * jax.random.normal(keys[5], (HIDDEN, KV_LORA_RANK + QK_ROPE_DIM), DTYPE),
      "w_kva_ln": 1.0 + 0.01 * jax.random.normal(keys[6], (KV_LORA_RANK,), DTYPE),
      "w_kvb":  s * jax.random.normal(keys[7], (KV_LORA_RANK, NUM_HEADS * KV_HEAD_DIM), DTYPE),
      "w_o":    s * jax.random.normal(keys[8], (NUM_HEADS * V_HEAD_DIM, HIDDEN), DTYPE),
      "w_fc":   s * jax.random.normal(keys[9], (HIDDEN, INTERMEDIATE), DTYPE),
      "w_gate": s * jax.random.normal(keys[10], (HIDDEN, INTERMEDIATE), DTYPE),
      "w_proj": s * jax.random.normal(keys[11], (INTERMEDIATE, HIDDEN), DTYPE),
  }


def pack_params(params):
  """One-time (load-time) weight packing: per-head / per-rope-half splits + bf16 cast for
  MXU weights, so the fused kernel only ever does full-block and leading-axis ref reads."""
  cdt = COMPUTE_DTYPE
  nh, dn, dr, dv, half = NUM_HEADS, QK_NOPE_DIM, QK_ROPE_DIM, V_HEAD_DIM, ROPE_HALF
  w_qb = params["w_qb"].reshape(Q_LORA_RANK, nh, dn + dr)
  w_kvb = params["w_kvb"].reshape(KV_LORA_RANK, nh, dn + dv)
  w_kva = params["w_kva"]
  return {
      "w_in_ln":   params["w_in_ln"].reshape(1, HIDDEN),
      "w_post_ln": params["w_post_ln"].reshape(1, HIDDEN),
      "w_qa":      params["w_qa"].astype(cdt),
      "w_qa_ln":   params["w_qa_ln"].reshape(1, Q_LORA_RANK),
      "w_kva_c":   w_kva[:, :KV_LORA_RANK].astype(cdt),
      "w_kva_ln":  params["w_kva_ln"].reshape(1, KV_LORA_RANK),
      "w_kpe1":    w_kva[:, KV_LORA_RANK:KV_LORA_RANK + half].astype(cdt),
      "w_kpe2":    w_kva[:, KV_LORA_RANK + half:].astype(cdt),
      "w_q_nope":  jnp.transpose(w_qb[:, :, :dn], (1, 0, 2)).astype(cdt),        # (nh,QL,dn)
      "w_q_pe1":   jnp.transpose(w_qb[:, :, dn:dn + half], (1, 0, 2)).astype(cdt),
      "w_q_pe2":   jnp.transpose(w_qb[:, :, dn + half:], (1, 0, 2)).astype(cdt),
      "w_k_nope":  jnp.transpose(w_kvb[:, :, :dn], (1, 0, 2)).astype(cdt),       # (nh,KL,dn)
      "w_v":       jnp.transpose(w_kvb[:, :, dn:], (1, 0, 2)).astype(cdt),       # (nh,KL,dv)
      "w_o":       params["w_o"].reshape(nh, dv, HIDDEN).astype(cdt),            # (nh,dv,H)
      "w_fc":      params["w_fc"].astype(cdt),
      "w_gate":    params["w_gate"].astype(cdt),
      "w_proj":    params["w_proj"].astype(cdt),
  }


_WEIGHT_ORDER = ("w_in_ln", "w_qa", "w_qa_ln", "w_kva_c", "w_kva_ln",
                 "w_kpe1", "w_kpe2", "w_q_nope", "w_q_pe1", "w_q_pe2",
                 "w_k_nope", "w_v", "w_o", "w_post_ln", "w_fc", "w_gate", "w_proj")


# ------------------------------- wrapper --------------------------------------
def deepseekv2_decoder_layer(packed, hidden_states):
  B, S, H = hidden_states.shape

  # RoPE tables (half-width; rotate_half duplicates them across both halves).
  inv_freq = 1.0 / (ROPE_BASE ** (jnp.arange(0, QK_ROPE_DIM, 2, dtype=jnp.float32)
                                  / QK_ROPE_DIM))
  ang = jnp.arange(S, dtype=jnp.float32)[:, None] * inv_freq[None, :]   # (S, dr/2)
  cos, sin = jnp.cos(ang), jnp.sin(ang)

  def full_spec(shape):
    zeros = (0,) * len(shape)
    return pl.BlockSpec(shape, lambda b, z=zeros: z)     # resident, fetched once

  weights = [packed[k] for k in _WEIGHT_ORDER]
  kernel = functools.partial(_decoder_layer_kernel, eps=EPS, scale=SOFTMAX_SCALE)

  out = pl.pallas_call(
      kernel,
      out_shape=jax.ShapeDtypeStruct((B, S, H), hidden_states.dtype),
      grid=(B,),
      in_specs=[pl.BlockSpec((1, S, H), lambda b: (b, 0, 0)),   # x (one batch slab / step)
                full_spec((S, ROPE_HALF)),                      # cos
                full_spec((S, ROPE_HALF))]                      # sin
               + [full_spec(w.shape) for w in weights],
      out_specs=pl.BlockSpec((1, S, H), lambda b: (b, 0, 0)),
      compiler_params=pltpu.CompilerParams(
          dimension_semantics=("parallel",)),
  )(hidden_states, cos, sin, *weights)
  return out

  # TODO(synk): use_cache / paged KV-cache (kv_cache_params, attention_params) and
  #             tensor-parallel all-reduce are runtime plumbing, not modeled here.


if __name__ == "__main__":
  key = jax.random.PRNGKey(0)
  pkey, xkey = jax.random.split(key)
  params = init_params(pkey)
  packed = pack_params(params)          # one-time weight packing (load-time, not per call)
  hidden_states = jax.random.normal(xkey, (BATCH, SEQ, HIDDEN), DTYPE)

  out = jax.jit(deepseekv2_decoder_layer)(packed, hidden_states)
  out = jax.block_until_ready(out)
  assert out.shape == (BATCH, SEQ, HIDDEN) and out.dtype == DTYPE
  print("KERNEL_OK")
</pallas_src>

<mosaic_0001>
module attributes {stable_mosaic.version = 11 : i64} {
  func.func @_decoder_layer_kernel(%arg0: i32, %arg1: memref<1x8x256xf32, #tpu.memory_space<vmem>>, %arg2: memref<8x8xf32, #tpu.memory_space<vmem>>, %arg3: memref<8x8xf32, #tpu.memory_space<vmem>>, %arg4: memref<1x256xf32, #tpu.memory_space<vmem>>, %arg5: memref<256x64xbf16, #tpu.memory_space<vmem>>, %arg6: memref<1x64xf32, #tpu.memory_space<vmem>>, %arg7: memref<256x64xbf16, #tpu.memory_space<vmem>>, %arg8: memref<1x64xf32, #tpu.memory_space<vmem>>, %arg9: memref<256x8xbf16, #tpu.memory_space<vmem>>, %arg10: memref<256x8xbf16, #tpu.memory_space<vmem>>, %arg11: memref<4x64x32xbf16, #tpu.memory_space<vmem>>, %arg12: memref<4x64x8xbf16, #tpu.memory_space<vmem>>, %arg13: memref<4x64x8xbf16, #tpu.memory_space<vmem>>, %arg14: memref<4x64x32xbf16, #tpu.memory_space<vmem>>, %arg15: memref<4x64x32xbf16, #tpu.memory_space<vmem>>, %arg16: memref<4x32x256xbf16, #tpu.memory_space<vmem>>, %arg17: memref<1x256xf32, #tpu.memory_space<vmem>>, %arg18: memref<256x512xbf16, #tpu.memory_space<vmem>>, %arg19: memref<256x512xbf16, #tpu.memory_space<vmem>>, %arg20: memref<512x256xbf16, #tpu.memory_space<vmem>>, %arg21: memref<1x8x256xf32, #tpu.memory_space<vmem>>) attributes {dimension_semantics = [#tpu.dimension_semantics<parallel>], iteration_bounds = array<i64: 2>, scalar_prefetch = 0 : i64, scratch_operands = 0 : i64, tpu.core_type = #tpu.core_type<tc>, window_params = [{transform_indices = @transform_0, window_bounds = array<i64: 1, 8, 256>}, {pipeline_mode = #tpu.pipeline_mode<synchronous>, transform_indices = @transform_1, window_bounds = array<i64: 8, 8>}, {pipeline_mode = #tpu.pipeline_mode<synchronous>, transform_indices = @transform_2, window_bounds = array<i64: 8, 8>}, {pipeline_mode = #tpu.pipeline_mode<synchronous>, transform_indices = @transform_3, window_bounds = array<i64: 1, 256>}, {pipeline_mode = #tpu.pipeline_mode<synchronous>, transform_indices = @transform_4, window_bounds = array<i64: 256, 64>}, {pipeline_mode = #tpu.pipeline_mode<synchronous>, transform_indices = @transform_5, window_bounds = array<i64: 1, 64>}, {pipeline_mode = #tpu.pipeline_mode<synchronous>, transform_indices = @transform_6, window_bounds = array<i64: 256, 64>}, {pipeline_mode = #tpu.pipeline_mode<synchronous>, transform_indices = @transform_7, window_bounds = array<i64: 1, 64>}, {pipeline_mode = #tpu.pipeline_mode<synchronous>, transform_indices = @transform_8, window_bounds = array<i64: 256, 8>}, {pipeline_mode = #tpu.pipeline_mode<synchronous>, transform_indices = @transform_9, window_bounds = array<i64: 256, 8>}, {pipeline_mode = #tpu.pipeline_mode<synchronous>, transform_indices = @transform_10, window_bounds = array<i64: 4, 64, 32>}, {pipeline_mode = #tpu.pipeline_mode<synchronous>, transform_indices = @transform_11, window_bounds = array<i64: 4, 64, 8>}, {pipeline_mode = #tpu.pipeline_mode<synchronous>, transform_indices = @transform_12, window_bounds = array<i64: 4, 64, 8>}, {pipeline_mode = #tpu.pipeline_mode<synchronous>, transform_indices = @transform_13, window_bounds = array<i64: 4, 64, 32>}, {pipeline_mode = #tpu.pipeline_mode<synchronous>, transform_indices = @transform_14, window_bounds = array<i64: 4, 64, 32>}, {pipeline_mode = #tpu.pipeline_mode<synchronous>, transform_indices = @transform_15, window_bounds = array<i64: 4, 32, 256>}, {pipeline_mode = #tpu.pipeline_mode<synchronous>, transform_indices = @transform_16, window_bounds = array<i64: 1, 256>}, {pipeline_mode = #tpu.pipeline_mode<synchronous>, transform_indices = @transform_17, window_bounds = array<i64: 256, 512>}, {pipeline_mode = #tpu.pipeline_mode<synchronous>, transform_indices = @transform_18, window_bounds = array<i64: 256, 512>}, {pipeline_mode = #tpu.pipeline_mode<synchronous>, transform_indices = @transform_19, window_bounds = array<i64: 512, 256>}, {transform_indices = @transform_20, window_bounds = array<i64: 1, 8, 256>}]} {
    %c0 = arith.constant 0 : index
    %c0_0 = arith.constant 0 : index
    %c0_1 = arith.constant 0 : index
    %0 = vector.load %arg1[%c0, %c0_0, %c0_1] : memref<1x8x256xf32, #tpu.memory_space<vmem>>, vector<1x8x256xf32>
    %1 = vector.shape_cast %0 : vector<1x8x256xf32> to vector<8x256xf32>
    %c0_2 = arith.constant 0 : index
    %c0_3 = arith.constant 0 : index
    %2 = vector.load %arg4[%c0_2, %c0_3] : memref<1x256xf32, #tpu.memory_space<vmem>>, vector<1x256xf32>
    %3 = arith.mulf %1, %1 : vector<8x256xf32>
    %cst = arith.constant dense<0.000000e+00> : vector<8xf32>
    %4 = vector.multi_reduction <add>, %3, %cst [1] : vector<8x256xf32> to vector<8xf32>
    %5 = vector.shape_cast %4 : vector<8xf32> to vector<8x1xf32>
    %cst_4 = arith.constant 2.560000e+02 : f32
    %6 = vector.broadcast %cst_4 : f32 to vector<8x1xf32>
    %7 = arith.divf %5, %6 : vector<8x1xf32>
    %cst_5 = arith.constant 9.99999997E-7 : f32
    %8 = vector.broadcast %cst_5 : f32 to vector<8x1xf32>
    %9 = arith.addf %7, %8 : vector<8x1xf32>
    %10 = math.rsqrt %9 : vector<8x1xf32>
    %11 = vector.broadcast %10 : vector<8x1xf32> to vector<8x256xf32>
    %12 = arith.mulf %1, %11 : vector<8x256xf32>
    %13 = vector.broadcast %2 : vector<1x256xf32> to vector<8x256xf32>
    %14 = arith.mulf %12, %13 : vector<8x256xf32>
    %c0_6 = arith.constant 0 : index
    %c0_7 = arith.constant 0 : index
    %15 = vector.load %arg5[%c0_6, %c0_7] : memref<256x64xbf16, #tpu.memory_space<vmem>>, vector<256x64xbf16>
    %16 = arith.truncf %14 : vector<8x256xf32> to vector<8x256xbf16>
    %cst_8 = arith.constant dense<0.000000e+00> : vector<8x64xf32>
    %17 = tpu.matmul %16, %15, %cst_8 {dimension_numbers = #tpu.dot_dimension_numbers<[1], [0], [0], [1], [0, 0, 1, 1], [], []>} : vector<8x256xbf16>, vector<256x64xbf16>, vector<8x64xf32> -> vector<8x64xf32>
    %c0_9 = arith.constant 0 : index
    %c0_10 = arith.constant 0 : index
    %18 = vector.load %arg6[%c0_9, %c0_10] : memref<1x64xf32, #tpu.memory_space<vmem>>, vector<1x64xf32>
    %19 = arith.mulf %17, %17 : vector<8x64xf32>
    %cst_11 = arith.constant dense<0.000000e+00> : vector<8xf32>
    %20 = vector.multi_reduction <add>, %19, %cst_11 [1] : vector<8x64xf32> to vector<8xf32>
    %21 = vector.shape_cast %20 : vector<8xf32> to vector<8x1xf32>
    %cst_12 = arith.constant 6.400000e+01 : f32
    %22 = vector.broadcast %cst_12 : f32 to vector<8x1xf32>
    %23 = arith.divf %21, %22 : vector<8x1xf32>
    %cst_13 = arith.constant 9.99999997E-7 : f32
    %24 = vector.broadcast %cst_13 : f32 to vector<8x1xf32>
    %25 = arith.addf %23, %24 : vector<8x1xf32>
    %26 = math.rsqrt %25 : vector<8x1xf32>
    %27 = vector.broadcast %26 : vector<8x1xf32> to vector<8x64xf32>
    %28 = arith.mulf %17, %27 : vector<8x64xf32>
    %29 = vector.broadcast %18 : vector<1x64xf32> to vector<8x64xf32>
    %30 = arith.mulf %28, %29 : vector<8x64xf32>
    %c0_14 = arith.constant 0 : index
    %c0_15 = arith.constant 0 : index
    %31 = vector.load %arg7[%c0_14, %c0_15] : memref<256x64xbf16, #tpu.memory_space<vmem>>, vector<256x64xbf16>
    %32 = arith.truncf %14 : vector<8x256xf32> to vector<8x256xbf16>
    %cst_16 = arith.constant dense<0.000000e+00> : vector<8x64xf32>
    %33 = tpu.matmul %32, %31, %cst_16 {dimension_numbers = #tpu.dot_dimension_numbers<[1], [0], [0], [1], [0, 0, 1, 1], [], []>} : vector<8x256xbf16>, vector<256x64xbf16>, vector<8x64xf32> -> vector<8x64xf32>
    %c0_17 = arith.constant 0 : index
    %c0_18 = arith.constant 0 : index
    %34 = vector.load %arg8[%c0_17, %c0_18] : memref<1x64xf32, #tpu.memory_space<vmem>>, vector<1x64xf32>
    %35 = arith.mulf %33, %33 : vector<8x64xf32>
    %cst_19 = arith.constant dense<0.000000e+00> : vector<8xf32>
    %36 = vector.multi_reduction <add>, %35, %cst_19 [1] : vector<8x64xf32> to vector<8xf32>
    %37 = vector.shape_cast %36 : vector<8xf32> to vector<8x1xf32>
    %cst_20 = arith.constant 6.400000e+01 : f32
    %38 = vector.broadcast %cst_20 : f32 to vector<8x1xf32>
    %39 = arith.divf %37, %38 : vector<8x1xf32>
    %cst_21 = arith.constant 9.99999997E-7 : f32
    %40 = vector.broadcast %cst_21 : f32 to vector<8x1xf32>
    %41 = arith.addf %39, %40 : vector<8x1xf32>
    %42 = math.rsqrt %41 : vector<8x1xf32>
    %43 = vector.broadcast %42 : vector<8x1xf32> to vector<8x64xf32>
    %44 = arith.mulf %33, %43 : vector<8x64xf32>
    %45 = vector.broadcast %34 : vector<1x64xf32> to vector<8x64xf32>
    %46 = arith.mulf %44, %45 : vector<8x64xf32>
    %c0_22 = arith.constant 0 : index
    %c0_23 = arith.constant 0 : index
    %47 = vector.load %arg9[%c0_22, %c0_23] : memref<256x8xbf16, #tpu.memory_space<vmem>>, vector<256x8xbf16>
    %48 = arith.truncf %14 : vector<8x256xf32> to vector<8x256xbf16>
    %cst_24 = arith.constant dense<0.000000e+00> : vector<8x8xf32>
    %49 = tpu.matmul %48, %47, %cst_24 {dimension_numbers = #tpu.dot_dimension_numbers<[1], [0], [0], [1], [0, 0, 1, 1], [], []>} : vector<8x256xbf16>, vector<256x8xbf16>, vector<8x8xf32> -> vector<8x8xf32>
    %c0_25 = arith.constant 0 : index
    %c0_26 = arith.constant 0 : index
    %50 = vector.load %arg10[%c0_25, %c0_26] : memref<256x8xbf16, #tpu.memory_space<vmem>>, vector<256x8xbf16>
    %51 = arith.truncf %14 : vector<8x256xf32> to vector<8x256xbf16>
    %cst_27 = arith.constant dense<0.000000e+00> : vector<8x8xf32>
    %52 = tpu.matmul %51, %50, %cst_27 {dimension_numbers = #tpu.dot_dimension_numbers<[1], [0], [0], [1], [0, 0, 1, 1], [], []>} : vector<8x256xbf16>, vector<256x8xbf16>, vector<8x8xf32> -> vector<8x8xf32>
    %c0_28 = arith.constant 0 : index
    %c0_29 = arith.constant 0 : index
    %53 = vector.load %arg2[%c0_28, %c0_29] : memref<8x8xf32, #tpu.memory_space<vmem>>, vector<8x8xf32>
    %c0_30 = arith.constant 0 : index
    %c0_31 = arith.constant 0 : index
    %54 = vector.load %arg3[%c0_30, %c0_31] : memref<8x8xf32, #tpu.memory_space<vmem>>, vector<8x8xf32>
    %55 = arith.mulf %49, %53 : vector<8x8xf32>
    %56 = arith.mulf %52, %54 : vector<8x8xf32>
    %57 = arith.subf %55, %56 : vector<8x8xf32>
    %58 = arith.mulf %52, %53 : vector<8x8xf32>
    %59 = arith.mulf %49, %54 : vector<8x8xf32>
    %60 = arith.addf %58, %59 : vector<8x8xf32>
    %61 = tpu.iota {dimensions = array<i32: 0>} : vector<8x8xi32>
    %62 = tpu.iota {dimensions = array<i32: 1>} : vector<8x8xi32>
    %63 = arith.cmpi sle, %62, %61 : vector<8x8xi32>
    %c0_32 = arith.constant 0 : index
    %c0_33 = arith.constant 0 : index
    %c0_34 = arith.constant 0 : index
    %64 = vector.load %arg11[%c0_32, %c0_33, %c0_34] : memref<4x64x32xbf16, #tpu.memory_space<vmem>>, vector<1x64x32xbf16>
    %65 = vector.shape_cast %64 : vector<1x64x32xbf16> to vector<64x32xbf16>
    %66 = arith.truncf %30 : vector<8x64xf32> to vector<8x64xbf16>
    %cst_35 = arith.constant dense<0.000000e+00> : vector<8x32xf32>
    %67 = tpu.matmul %66, %65, %cst_35 {dimension_numbers = #tpu.dot_dimension_numbers<[1], [0], [0], [1], [0, 0, 1, 1], [], []>} : vector<8x64xbf16>, vector<64x32xbf16>, vector<8x32xf32> -> vector<8x32xf32>
    %c0_36 = arith.constant 0 : index
    %c0_37 = arith.constant 0 : index
    %c0_38 = arith.constant 0 : index
    %68 = vector.load %arg12[%c0_36, %c0_37, %c0_38] : memref<4x64x8xbf16, #tpu.memory_space<vmem>>, vector<1x64x8xbf16>
    %69 = vector.shape_cast %68 : vector<1x64x8xbf16> to vector<64x8xbf16>
    %70 = arith.truncf %30 : vector<8x64xf32> to vector<8x64xbf16>
    %cst_39 = arith.constant dense<0.000000e+00> : vector<8x8xf32>
    %71 = tpu.matmul %70, %69, %cst_39 {dimension_numbers = #tpu.dot_dimension_numbers<[1], [0], [0], [1], [0, 0, 1, 1], [], []>} : vector<8x64xbf16>, vector<64x8xbf16>, vector<8x8xf32> -> vector<8x8xf32>
    %c0_40 = arith.constant 0 : index
    %c0_41 = arith.constant 0 : index
    %c0_42 = arith.constant 0 : index
    %72 = vector.load %arg13[%c0_40, %c0_41, %c0_42] : memref<4x64x8xbf16, #tpu.memory_space<vmem>>, vector<1x64x8xbf16>
    %73 = vector.shape_cast %72 : vector<1x64x8xbf16> to vector<64x8xbf16>
    %74 = arith.truncf %30 : vector<8x64xf32> to vector<8x64xbf16>
    %cst_43 = arith.constant dense<0.000000e+00> : vector<8x8xf32>
    %75 = tpu.matmul %74, %73, %cst_43 {dimension_numbers = #tpu.dot_dimension_numbers<[1], [0], [0], [1], [0, 0, 1, 1], [], []>} : vector<8x64xbf16>, vector<64x8xbf16>, vector<8x8xf32> -> vector<8x8xf32>
    %76 = arith.mulf %71, %53 : vector<8x8xf32>
    %77 = arith.mulf %75, %54 : vector<8x8xf32>
    %78 = arith.subf %76, %77 : vector<8x8xf32>
    %79 = arith.mulf %75, %53 : vector<8x8xf32>
    %80 = arith.mulf %71, %54 : vector<8x8xf32>
    %81 = arith.addf %79, %80 : vector<8x8xf32>
    %c0_44 = arith.constant 0 : index
    %c0_45 = arith.constant 0 : index
    %c0_46 = arith.constant 0 : index
    %82 = vector.load %arg14[%c0_44, %c0_45, %c0_46] : memref<4x64x32xbf16, #tpu.memory_space<vmem>>, vector<1x64x32xbf16>
    %83 = vector.shape_cast %82 : vector<1x64x32xbf16> to vector<64x32xbf16>
    %84 = arith.truncf %46 : vector<8x64xf32> to vector<8x64xbf16>
    %cst_47 = arith.constant dense<0.000000e+00> : vector<8x32xf32>
    %85 = tpu.matmul %84, %83, %cst_47 {dimension_numbers = #tpu.dot_dimension_numbers<[1], [0], [0], [1], [0, 0, 1, 1], [], []>} : vector<8x64xbf16>, vector<64x32xbf16>, vector<8x32xf32> -> vector<8x32xf32>
    %c0_48 = arith.constant 0 : index
    %c0_49 = arith.constant 0 : index
    %c0_50 = arith.constant 0 : index
    %86 = vector.load %arg15[%c0_48, %c0_49, %c0_50] : memref<4x64x32xbf16, #tpu.memory_space<vmem>>, vector<1x64x32xbf16>
    %87 = vector.shape_cast %86 : vector<1x64x32xbf16> to vector<64x32xbf16>
    %88 = arith.truncf %46 : vector<8x64xf32> to vector<8x64xbf16>
    %cst_51 = arith.constant dense<0.000000e+00> : vector<8x32xf32>
    %89 = tpu.matmul %88, %87, %cst_51 {dimension_numbers = #tpu.dot_dimension_numbers<[1], [0], [0], [1], [0, 0, 1, 1], [], []>} : vector<8x64xbf16>, vector<64x32xbf16>, vector<8x32xf32> -> vector<8x32xf32>
    %90 = arith.truncf %67 : vector<8x32xf32> to vector<8x32xbf16>
    %91 = arith.truncf %85 : vector<8x32xf32> to vector<8x32xbf16>
    %cst_52 = arith.constant dense<0.000000e+00> : vector<8x8xf32>
    %92 = tpu.matmul %90, %91, %cst_52 {dimension_numbers = #tpu.dot_dimension_numbers<[1], [1], [0], [0], [0, 0, 1, 0], [], []>} : vector<8x32xbf16>, vector<8x32xbf16>, vector<8x8xf32> -> vector<8x8xf32>
    %93 = arith.truncf %78 : vector<8x8xf32> to vector<8x8xbf16>
    %94 = arith.truncf %57 : vector<8x8xf32> to vector<8x8xbf16>
    %cst_53 = arith.constant dense<0.000000e+00> : vector<8x8xf32>
    %95 = tpu.matmul %93, %94, %cst_53 {dimension_numbers = #tpu.dot_dimension_numbers<[1], [1], [0], [0], [0, 0, 1, 0], [], []>} : vector<8x8xbf16>, vector<8x8xbf16>, vector<8x8xf32> -> vector<8x8xf32>
    %96 = arith.addf %92, %95 : vector<8x8xf32>
    %97 = arith.truncf %81 : vector<8x8xf32> to vector<8x8xbf16>
    %98 = arith.truncf %60 : vector<8x8xf32> to vector<8x8xbf16>
    %cst_54 = arith.constant dense<0.000000e+00> : vector<8x8xf32>
    %99 = tpu.matmul %97, %98, %cst_54 {dimension_numbers = #tpu.dot_dimension_numbers<[1], [1], [0], [0], [0, 0, 1, 0], [], []>} : vector<8x8xbf16>, vector<8x8xbf16>, vector<8x8xf32> -> vector<8x8xf32>
    %100 = arith.addf %96, %99 : vector<8x8xf32>
    %cst_55 = arith.constant 0.144337565 : f32
    %101 = vector.broadcast %cst_55 : f32 to vector<8x8xf32>
    %102 = arith.mulf %100, %101 : vector<8x8xf32>
    %cst_56 = arith.constant -1.000000e+30 : f32
    %103 = vector.broadcast %cst_56 : f32 to vector<8x8xf32>
    %104 = arith.select %63, %102, %103 : vector<8x8xi1>, vector<8x8xf32>
    %cst_57 = arith.constant dense<0xFF800000> : vector<8xf32>
    %105 = vector.multi_reduction <maximumf>, %104, %cst_57 [1] : vector<8x8xf32> to vector<8xf32>
    %106 = vector.shape_cast %105 : vector<8xf32> to vector<8x1xf32>
    %107 = vector.broadcast %106 : vector<8x1xf32> to vector<8x8xf32>
    %108 = arith.subf %104, %107 : vector<8x8xf32>
    %109 = math.exp %108 : vector<8x8xf32>
    %cst_58 = arith.constant dense<0.000000e+00> : vector<8xf32>
    %110 = vector.multi_reduction <add>, %109, %cst_58 [1] : vector<8x8xf32> to vector<8xf32>
    %111 = vector.shape_cast %110 : vector<8xf32> to vector<8x1xf32>
    %112 = tpu.reciprocal %111 {approx = true} : vector<8x1xf32> -> vector<8x1xf32>
    %113 = vector.broadcast %112 : vector<8x1xf32> to vector<8x8xf32>
    %114 = arith.mulf %109, %113 : vector<8x8xf32>
    %115 = arith.truncf %114 : vector<8x8xf32> to vector<8x8xbf16>
    %116 = arith.truncf %89 : vector<8x32xf32> to vector<8x32xbf16>
    %cst_59 = arith.constant dense<0.000000e+00> : vector<8x32xf32>
    %117 = tpu.matmul %115, %116, %cst_59 {dimension_numbers = #tpu.dot_dimension_numbers<[1], [0], [0], [1], [0, 0, 1, 1], [], []>} : vector<8x8xbf16>, vector<8x32xbf16>, vector<8x32xf32> -> vector<8x32xf32>
    %c0_60 = arith.constant 0 : index
    %c0_61 = arith.constant 0 : index
    %c0_62 = arith.constant 0 : index
    %118 = vector.load %arg16[%c0_60, %c0_61, %c0_62] : memref<4x32x256xbf16, #tpu.memory_space<vmem>>, vector<1x32x256xbf16>
    %119 = vector.shape_cast %118 : vector<1x32x256xbf16> to vector<32x256xbf16>
    %120 = arith.truncf %117 : vector<8x32xf32> to vector<8x32xbf16>
    %cst_63 = arith.constant dense<0.000000e+00> : vector<8x256xf32>
    %121 = tpu.matmul %120, %119, %cst_63 {dimension_numbers = #tpu.dot_dimension_numbers<[1], [0], [0], [1], [0, 0, 1, 1], [], []>} : vector<8x32xbf16>, vector<32x256xbf16>, vector<8x256xf32> -> vector<8x256xf32>
    %122 = arith.addf %1, %121 : vector<8x256xf32>
    %c1 = arith.constant 1 : index
    %c0_64 = arith.constant 0 : index
    %c0_65 = arith.constant 0 : index
    %123 = vector.load %arg11[%c1, %c0_64, %c0_65] : memref<4x64x32xbf16, #tpu.memory_space<vmem>>, vector<1x64x32xbf16>
    %124 = vector.shape_cast %123 : vector<1x64x32xbf16> to vector<64x32xbf16>
    %125 = arith.truncf %30 : vector<8x64xf32> to vector<8x64xbf16>
    %cst_66 = arith.constant dense<0.000000e+00> : vector<8x32xf32>
    %126 = tpu.matmul %125, %124, %cst_66 {dimension_numbers = #tpu.dot_dimension_numbers<[1], [0], [0], [1], [0, 0, 1, 1], [], []>} : vector<8x64xbf16>, vector<64x32xbf16>, vector<8x32xf32> -> vector<8x32xf32>
    %c1_67 = arith.constant 1 : index
    %c0_68 = arith.constant 0 : index
    %c0_69 = arith.constant 0 : index
    %127 = vector.load %arg12[%c1_67, %c0_68, %c0_69] : memref<4x64x8xbf16, #tpu.memory_space<vmem>>, vector<1x64x8xbf16>
    %128 = vector.shape_cast %127 : vector<1x64x8xbf16> to vector<64x8xbf16>
    %129 = arith.truncf %30 : vector<8x64xf32> to vector<8x64xbf16>
    %cst_70 = arith.constant dense<0.000000e+00> : vector<8x8xf32>
    %130 = tpu.matmul %129, %128, %cst_70 {dimension_numbers = #tpu.dot_dimension_numbers<[1], [0], [0], [1], [0, 0, 1, 1], [], []>} : vector<8x64xbf16>, vector<64x8xbf16>, vector<8x8xf32> -> vector<8x8xf32>
    %c1_71 = arith.constant 1 : index
    %c0_72 = arith.constant 0 : index
    %c0_73 = arith.constant 0 : index
    %131 = vector.load %arg13[%c1_71, %c0_72, %c0_73] : memref<4x64x8xbf16, #tpu.memory_space<vmem>>, vector<1x64x8xbf16>
    %132 = vector.shape_cast %131 : vector<1x64x8xbf16> to vector<64x8xbf16>
    %133 = arith.truncf %30 : vector<8x64xf32> to vector<8x64xbf16>
    %cst_74 = arith.constant dense<0.000000e+00> : vector<8x8xf32>
    %134 = tpu.matmul %133, %132, %cst_74 {dimension_numbers = #tpu.dot_dimension_numbers<[1], [0], [0], [1], [0, 0, 1, 1], [], []>} : vector<8x64xbf16>, vector<64x8xbf16>, vector<8x8xf32> -> vector<8x8xf32>
    %135 = arith.mulf %130, %53 : vector<8x8xf32>
    %136 = arith.mulf %134, %54 : vector<8x8xf32>
    %137 = arith.subf %135, %136 : vector<8x8xf32>
    %138 = arith.mulf %134, %53 : vector<8x8xf32>
    %139 = arith.mulf %130, %54 : vector<8x8xf32>
    %140 = arith.addf %138, %139 : vector<8x8xf32>
    %c1_75 = arith.constant 1 : index
    %c0_76 = arith.constant 0 : index
    %c0_77 = arith.constant 0 : index
    %141 = vector.load %arg14[%c1_75, %c0_76, %c0_77] : memref<4x64x32xbf16, #tpu.memory_space<vmem>>, vector<1x64x32xbf16>
    %142 = vector.shape_cast %141 : vector<1x64x32xbf16> to vector<64x32xbf16>
    %143 = arith.truncf %46 : vector<8x64xf32> to vector<8x64xbf16>
    %cst_78 = arith.constant dense<0.000000e+00> : vector<8x32xf32>
    %144 = tpu.matmul %143, %142, %cst_78 {dimension_numbers = #tpu.dot_dimension_numbers<[1], [0], [0], [1], [0, 0, 1, 1], [], []>} : vector<8x64xbf16>, vector<64x32xbf16>, vector<8x32xf32> -> vector<8x32xf32>
    %c1_79 = arith.constant 1 : index
    %c0_80 = arith.constant 0 : index
    %c0_81 = arith.constant 0 : index
    %145 = vector.load %arg15[%c1_79, %c0_80, %c0_81] : memref<4x64x32xbf16, #tpu.memory_space<vmem>>, vector<1x64x32xbf16>
    %146 = vector.shape_cast %145 : vector<1x64x32xbf16> to vector<64x32xbf16>
    %147 = arith.truncf %46 : vector<8x64xf32> to vector<8x64xbf16>
    %cst_82 = arith.constant dense<0.000000e+00> : vector<8x32xf32>
    %148 = tpu.matmul %147, %146, %cst_82 {dimension_numbers = #tpu.dot_dimension_numbers<[1], [0], [0], [1], [0, 0, 1, 1], [], []>} : vector<8x64xbf16>, vector<64x32xbf16>, vector<8x32xf32> -> vector<8x32xf32>
    %149 = arith.truncf %126 : vector<8x32xf32> to vector<8x32xbf16>
    %150 = arith.truncf %144 : vector<8x32xf32> to vector<8x32xbf16>
    %cst_83 = arith.constant dense<0.000000e+00> : vector<8x8xf32>
    %151 = tpu.matmul %149, %150, %cst_83 {dimension_numbers = #tpu.dot_dimension_numbers<[1], [1], [0], [0], [0, 0, 1, 0], [], []>} : vector<8x32xbf16>, vector<8x32xbf16>, vector<8x8xf32> -> vector<8x8xf32>
    %152 = arith.truncf %137 : vector<8x8xf32> to vector<8x8xbf16>
    %153 = arith.truncf %57 : vector<8x8xf32> to vector<8x8xbf16>
    %cst_84 = arith.constant dense<0.000000e+00> : vector<8x8xf32>
    %154 = tpu.matmul %152, %153, %cst_84 {dimension_numbers = #tpu.dot_dimension_numbers<[1], [1], [0], [0], [0, 0, 1, 0], [], []>} : vector<8x8xbf16>, vector<8x8xbf16>, vector<8x8xf32> -> vector<8x8xf32>
    %155 = arith.addf %151, %154 : vector<8x8xf32>
    %156 = arith.truncf %140 : vector<8x8xf32> to vector<8x8xbf16>
    %157 = arith.truncf %60 : vector<8x8xf32> to vector<8x8xbf16>
    %cst_85 = arith.constant dense<0.000000e+00> : vector<8x8xf32>
    %158 = tpu.matmul %156, %157, %cst_85 {dimension_numbers = #tpu.dot_dimension_numbers<[1], [1], [0], [0], [0, 0, 1, 0], [], []>} : vector<8x8xbf16>, vector<8x8xbf16>, vector<8x8xf32> -> vector<8x8xf32>
    %159 = arith.addf %155, %158 : vector<8x8xf32>
    %cst_86 = arith.constant 0.144337565 : f32
    %160 = vector.broadcast %cst_86 : f32 to vector<8x8xf32>
    %161 = arith.mulf %159, %160 : vector<8x8xf32>
    %cst_87 = arith.constant -1.000000e+30 : f32
    %162 = vector.broadcast %cst_87 : f32 to vector<8x8xf32>
    %163 = arith.select %63, %161, %162 : vector<8x8xi1>, vector<8x8xf32>
    %cst_88 = arith.constant dense<0xFF800000> : vector<8xf32>
    %164 = vector.multi_reduction <maximumf>, %163, %cst_88 [1] : vector<8x8xf32> to vector<8xf32>
    %165 = vector.shape_cast %164 : vector<8xf32> to vector<8x1xf32>
    %166 = vector.broadcast %165 : vector<8x1xf32> to vector<8x8xf32>
    %167 = arith.subf %163, %166 : vector<8x8xf32>
    %168 = math.exp %167 : vector<8x8xf32>
    %cst_89 = arith.constant dense<0.000000e+00> : vector<8xf32>
    %169 = vector.multi_reduction <add>, %168, %cst_89 [1] : vector<8x8xf32> to vector<8xf32>
    %170 = vector.shape_cast %169 : vector<8xf32> to vector<8x1xf32>
    %171 = tpu.reciprocal %170 {approx = true} : vector<8x1xf32> -> vector<8x1xf32>
    %172 = vector.broadcast %171 : vector<8x1xf32> to vector<8x8xf32>
    %173 = arith.mulf %168, %172 : vector<8x8xf32>
    %174 = arith.truncf %173 : vector<8x8xf32> to vector<8x8xbf16>
    %175 = arith.truncf %148 : vector<8x32xf32> to vector<8x32xbf16>
    %cst_90 = arith.constant dense<0.000000e+00> : vector<8x32xf32>
    %176 = tpu.matmul %174, %175, %cst_90 {dimension_numbers = #tpu.dot_dimension_numbers<[1], [0], [0], [1], [0, 0, 1, 1], [], []>} : vector<8x8xbf16>, vector<8x32xbf16>, vector<8x32xf32> -> vector<8x32xf32>
    %c1_91 = arith.constant 1 : index
    %c0_92 = arith.constant 0 : index
    %c0_93 = arith.constant 0 : index
    %177 = vector.load %arg16[%c1_91, %c0_92, %c0_93] : memref<4x32x256xbf16, #tpu.memory_space<vmem>>, vector<1x32x256xbf16>
    %178 = vector.shape_cast %177 : vector<1x32x256xbf16> to vector<32x256xbf16>
    %179 = arith.truncf %176 : vector<8x32xf32> to vector<8x32xbf16>
    %cst_94 = arith.constant dense<0.000000e+00> : vector<8x256xf32>
    %180 = tpu.matmul %179, %178, %cst_94 {dimension_numbers = #tpu.dot_dimension_numbers<[1], [0], [0], [1], [0, 0, 1, 1], [], []>} : vector<8x32xbf16>, vector<32x256xbf16>, vector<8x256xf32> -> vector<8x256xf32>
    %181 = arith.addf %122, %180 : vector<8x256xf32>
    %c2 = arith.constant 2 : index
    %c0_95 = arith.constant 0 : index
    %c0_96 = arith.constant 0 : index
    %182 = vector.load %arg11[%c2, %c0_95, %c0_96] : memref<4x64x32xbf16, #tpu.memory_space<vmem>>, vector<1x64x32xbf16>
    %183 = vector.shape_cast %182 : vector<1x64x32xbf16> to vector<64x32xbf16>
    %184 = arith.truncf %30 : vector<8x64xf32> to vector<8x64xbf16>
    %cst_97 = arith.constant dense<0.000000e+00> : vector<8x32xf32>
    %185 = tpu.matmul %184, %183, %cst_97 {dimension_numbers = #tpu.dot_dimension_numbers<[1], [0], [0], [1], [0, 0, 1, 1], [], []>} : vector<8x64xbf16>, vector<64x32xbf16>, vector<8x32xf32> -> vector<8x32xf32>
    %c2_98 = arith.constant 2 : index
    %c0_99 = arith.constant 0 : index
    %c0_100 = arith.constant 0 : index
    %186 = vector.load %arg12[%c2_98, %c0_99, %c0_100] : memref<4x64x8xbf16, #tpu.memory_space<vmem>>, vector<1x64x8xbf16>
    %187 = vector.shape_cast %186 : vector<1x64x8xbf16> to vector<64x8xbf16>
    %188 = arith.truncf %30 : vector<8x64xf32> to vector<8x64xbf16>
    %cst_101 = arith.constant dense<0.000000e+00> : vector<8x8xf32>
    %189 = tpu.matmul %188, %187, %cst_101 {dimension_numbers = #tpu.dot_dimension_numbers<[1], [0], [0], [1], [0, 0, 1, 1], [], []>} : vector<8x64xbf16>, vector<64x8xbf16>, vector<8x8xf32> -> vector<8x8xf32>
    %c2_102 = arith.constant 2 : index
    %c0_103 = arith.constant 0 : index
    %c0_104 = arith.constant 0 : index
    %190 = vector.load %arg13[%c2_102, %c0_103, %c0_104] : memref<4x64x8xbf16, #tpu.memory_space<vmem>>, vector<1x64x8xbf16>
    %191 = vector.shape_cast %190 : vector<1x64x8xbf16> to vector<64x8xbf16>
    %192 = arith.truncf %30 : vector<8x64xf32> to vector<8x64xbf16>
    %cst_105 = arith.constant dense<0.000000e+00> : vector<8x8xf32>
    %193 = tpu.matmul %192, %191, %cst_105 {dimension_numbers = #tpu.dot_dimension_numbers<[1], [0], [0], [1], [0, 0, 1, 1], [], []>} : vector<8x64xbf16>, vector<64x8xbf16>, vector<8x8xf32> -> vector<8x8xf32>
    %194 = arith.mulf %189, %53 : vector<8x8xf32>
    %195 = arith.mulf %193, %54 : vector<8x8xf32>
    %196 = arith.subf %194, %195 : vector<8x8xf32>
    %197 = arith.mulf %193, %53 : vector<8x8xf32>
    %198 = arith.mulf %189, %54 : vector<8x8xf32>
    %199 = arith.addf %197, %198 : vector<8x8xf32>
    %c2_106 = arith.constant 2 : index
    %c0_107 = arith.constant 0 : index
    %c0_108 = arith.constant 0 : index
    %200 = vector.load %arg14[%c2_106, %c0_107, %c0_108] : memref<4x64x32xbf16, #tpu.memory_space<vmem>>, vector<1x64x32xbf16>
    %201 = vector.shape_cast %200 : vector<1x64x32xbf16> to vector<64x32xbf16>
    %202 = arith.truncf %46 : vector<8x64xf32> to vector<8x64xbf16>
    %cst_109 = arith.constant dense<0.000000e+00> : vector<8x32xf32>
    %203 = tpu.matmul %202, %201, %cst_109 {dimension_numbers = #tpu.dot_dimension_numbers<[1], [0], [0], [1], [0, 0, 1, 1], [], []>} : vector<8x64xbf16>, vector<64x32xbf16>, vector<8x32xf32> -> vector<8x32xf32>
    %c2_110 = arith.constant 2 : index
    %c0_111 = arith.constant 0 : index
    %c0_112 = arith.constant 0 : index
    %204 = vector.load %arg15[%c2_110, %c0_111, %c0_112] : memref<4x64x32xbf16, #tpu.memory_space<vmem>>, vector<1x64x32xbf16>
    %205 = vector.shape_cast %204 : vector<1x64x32xbf16> to vector<64x32xbf16>
    %206 = arith.truncf %46 : vector<8x64xf32> to vector<8x64xbf16>
    %cst_113 = arith.constant dense<0.000000e+00> : vector<8x32xf32>
    %207 = tpu.matmul %206, %205, %cst_113 {dimension_numbers = #tpu.dot_dimension_numbers<[1], [0], [0], [1], [0, 0, 1, 1], [], []>} : vector<8x64xbf16>, vector<64x32xbf16>, vector<8x32xf32> -> vector<8x32xf32>
    %208 = arith.truncf %185 : vector<8x32xf32> to vector<8x32xbf16>
    %209 = arith.truncf %203 : vector<8x32xf32> to vector<8x32xbf16>
    %cst_114 = arith.constant dense<0.000000e+00> : vector<8x8xf32>
    %210 = tpu.matmul %208, %209, %cst_114 {dimension_numbers = #tpu.dot_dimension_numbers<[1], [1], [0], [0], [0, 0, 1, 0], [], []>} : vector<8x32xbf16>, vector<8x32xbf16>, vector<8x8xf32> -> vector<8x8xf32>
    %211 = arith.truncf %196 : vector<8x8xf32> to vector<8x8xbf16>
    %212 = arith.truncf %57 : vector<8x8xf32> to vector<8x8xbf16>
    %cst_115 = arith.constant dense<0.000000e+00> : vector<8x8xf32>
    %213 = tpu.matmul %211, %212, %cst_115 {dimension_numbers = #tpu.dot_dimension_numbers<[1], [1], [0], [0], [0, 0, 1, 0], [], []>} : vector<8x8xbf16>, vector<8x8xbf16>, vector<8x8xf32> -> vector<8x8xf32>
    %214 = arith.addf %210, %213 : vector<8x8xf32>
    %215 = arith.truncf %199 : vector<8x8xf32> to vector<8x8xbf16>
    %216 = arith.truncf %60 : vector<8x8xf32> to vector<8x8xbf16>
    %cst_116 = arith.constant dense<0.000000e+00> : vector<8x8xf32>
    %217 = tpu.matmul %215, %216, %cst_116 {dimension_numbers = #tpu.dot_dimension_numbers<[1], [1], [0], [0], [0, 0, 1, 0], [], []>} : vector<8x8xbf16>, vector<8x8xbf16>, vector<8x8xf32> -> vector<8x8xf32>
    %218 = arith.addf %214, %217 : vector<8x8xf32>
    %cst_117 = arith.constant 0.144337565 : f32
    %219 = vector.broadcast %cst_117 : f32 to vector<8x8xf32>
    %220 = arith.mulf %218, %219 : vector<8x8xf32>
    %cst_118 = arith.constant -1.000000e+30 : f32
    %221 = vector.broadcast %cst_118 : f32 to vector<8x8xf32>
    %222 = arith.select %63, %220, %221 : vector<8x8xi1>, vector<8x8xf32>
    %cst_119 = arith.constant dense<0xFF800000> : vector<8xf32>
    %223 = vector.multi_reduction <maximumf>, %222, %cst_119 [1] : vector<8x8xf32> to vector<8xf32>
    %224 = vector.shape_cast %223 : vector<8xf32> to vector<8x1xf32>
    %225 = vector.broadcast %224 : vector<8x1xf32> to vector<8x8xf32>
    %226 = arith.subf %222, %225 : vector<8x8xf32>
    %227 = math.exp %226 : vector<8x8xf32>
    %cst_120 = arith.constant dense<0.000000e+00> : vector<8xf32>
    %228 = vector.multi_reduction <add>, %227, %cst_120 [1] : vector<8x8xf32> to vector<8xf32>
    %229 = vector.shape_cast %228 : vector<8xf32> to vector<8x1xf32>
    %230 = tpu.reciprocal %229 {approx = true} : vector<8x1xf32> -> vector<8x1xf32>
    %231 = vector.broadcast %230 : vector<8x1xf32> to vector<8x8xf32>
    %232 = arith.mulf %227, %231 : vector<8x8xf32>
    %233 = arith.truncf %232 : vector<8x8xf32> to vector<8x8xbf16>
    %234 = arith.truncf %207 : vector<8x32xf32> to vector<8x32xbf16>
    %cst_121 = arith.constant dense<0.000000e+00> : vector<8x32xf32>
    %235 = tpu.matmul %233, %234, %cst_121 {dimension_numbers = #tpu.dot_dimension_numbers<[1], [0], [0], [1], [0, 0, 1, 1], [], []>} : vector<8x8xbf16>, vector<8x32xbf16>, vector<8x32xf32> -> vector<8x32xf32>
    %c2_122 = arith.constant 2 : index
    %c0_123 = arith.constant 0 : index
    %c0_124 = arith.constant 0 : index
    %236 = vector.load %arg16[%c2_122, %c0_123, %c0_124] : memref<4x32x256xbf16, #tpu.memory_space<vmem>>, vector<1x32x256xbf16>
    %237 = vector.shape_cast %236 : vector<1x32x256xbf16> to vector<32x256xbf16>
    %238 = arith.truncf %235 : vector<8x32xf32> to vector<8x32xbf16>
    %cst_125 = arith.constant dense<0.000000e+00> : vector<8x256xf32>
    %239 = tpu.matmul %238, %237, %cst_125 {dimension_numbers = #tpu.dot_dimension_numbers<[1], [0], [0], [1], [0, 0, 1, 1], [], []>} : vector<8x32xbf16>, vector<32x256xbf16>, vector<8x256xf32> -> vector<8x256xf32>
    %240 = arith.addf %181, %239 : vector<8x256xf32>
    %c3 = arith.constant 3 : index
    %c0_126 = arith.constant 0 : index
    %c0_127 = arith.constant 0 : index
    %241 = vector.load %arg11[%c3, %c0_126, %c0_127] : memref<4x64x32xbf16, #tpu.memory_space<vmem>>, vector<1x64x32xbf16>
    %242 = vector.shape_cast %241 : vector<1x64x32xbf16> to vector<64x32xbf16>
    %243 = arith.truncf %30 : vector<8x64xf32> to vector<8x64xbf16>
    %cst_128 = arith.constant dense<0.000000e+00> : vector<8x32xf32>
    %244 = tpu.matmul %243, %242, %cst_128 {dimension_numbers = #tpu.dot_dimension_numbers<[1], [0], [0], [1], [0, 0, 1, 1], [], []>} : vector<8x64xbf16>, vector<64x32xbf16>, vector<8x32xf32> -> vector<8x32xf32>
    %c3_129 = arith.constant 3 : index
    %c0_130 = arith.constant 0 : index
    %c0_131 = arith.constant 0 : index
    %245 = vector.load %arg12[%c3_129, %c0_130, %c0_131] : memref<4x64x8xbf16, #tpu.memory_space<vmem>>, vector<1x64x8xbf16>
    %246 = vector.shape_cast %245 : vector<1x64x8xbf16> to vector<64x8xbf16>
    %247 = arith.truncf %30 : vector<8x64xf32> to vector<8x64xbf16>
    %cst_132 = arith.constant dense<0.000000e+00> : vector<8x8xf32>
    %248 = tpu.matmul %247, %246, %cst_132 {dimension_numbers = #tpu.dot_dimension_numbers<[1], [0], [0], [1], [0, 0, 1, 1], [], []>} : vector<8x64xbf16>, vector<64x8xbf16>, vector<8x8xf32> -> vector<8x8xf32>
    %c3_133 = arith.constant 3 : index
    %c0_134 = arith.constant 0 : index
    %c0_135 = arith.constant 0 : index
    %249 = vector.load %arg13[%c3_133, %c0_134, %c0_135] : memref<4x64x8xbf16, #tpu.memory_space<vmem>>, vector<1x64x8xbf16>
    %250 = vector.shape_cast %249 : vector<1x64x8xbf16> to vector<64x8xbf16>
    %251 = arith.truncf %30 : vector<8x64xf32> to vector<8x64xbf16>
    %cst_136 = arith.constant dense<0.000000e+00> : vector<8x8xf32>
    %252 = tpu.matmul %251, %250, %cst_136 {dimension_numbers = #tpu.dot_dimension_numbers<[1], [0], [0], [1], [0, 0, 1, 1], [], []>} : vector<8x64xbf16>, vector<64x8xbf16>, vector<8x8xf32> -> vector<8x8xf32>
    %253 = arith.mulf %248, %53 : vector<8x8xf32>
    %254 = arith.mulf %252, %54 : vector<8x8xf32>
    %255 = arith.subf %253, %254 : vector<8x8xf32>
    %256 = arith.mulf %252, %53 : vector<8x8xf32>
    %257 = arith.mulf %248, %54 : vector<8x8xf32>
    %258 = arith.addf %256, %257 : vector<8x8xf32>
    %c3_137 = arith.constant 3 : index
    %c0_138 = arith.constant 0 : index
    %c0_139 = arith.constant 0 : index
    %259 = vector.load %arg14[%c3_137, %c0_138, %c0_139] : memref<4x64x32xbf16, #tpu.memory_space<vmem>>, vector<1x64x32xbf16>
    %260 = vector.shape_cast %259 : vector<1x64x32xbf16> to vector<64x32xbf16>
    %261 = arith.truncf %46 : vector<8x64xf32> to vector<8x64xbf16>
    %cst_140 = arith.constant dense<0.000000e+00> : vector<8x32xf32>
    %262 = tpu.matmul %261, %260, %cst_140 {dimension_numbers = #tpu.dot_dimension_numbers<[1], [0], [0], [1], [0, 0, 1, 1], [], []>} : vector<8x64xbf16>, vector<64x32xbf16>, vector<8x32xf32> -> vector<8x32xf32>
    %c3_141 = arith.constant 3 : index
    %c0_142 = arith.constant 0 : index
    %c0_143 = arith.constant 0 : index
    %263 = vector.load %arg15[%c3_141, %c0_142, %c0_143] : memref<4x64x32xbf16, #tpu.memory_space<vmem>>, vector<1x64x32xbf16>
    %264 = vector.shape_cast %263 : vector<1x64x32xbf16> to vector<64x32xbf16>
    %265 = arith.truncf %46 : vector<8x64xf32> to vector<8x64xbf16>
    %cst_144 = arith.constant dense<0.000000e+00> : vector<8x32xf32>
    %266 = tpu.matmul %265, %264, %cst_144 {dimension_numbers = #tpu.dot_dimension_numbers<[1], [0], [0], [1], [0, 0, 1, 1], [], []>} : vector<8x64xbf16>, vector<64x32xbf16>, vector<8x32xf32> -> vector<8x32xf32>
    %267 = arith.truncf %244 : vector<8x32xf32> to vector<8x32xbf16>
    %268 = arith.truncf %262 : vector<8x32xf32> to vector<8x32xbf16>
    %cst_145 = arith.constant dense<0.000000e+00> : vector<8x8xf32>
    %269 = tpu.matmul %267, %268, %cst_145 {dimension_numbers = #tpu.dot_dimension_numbers<[1], [1], [0], [0], [0, 0, 1, 0], [], []>} : vector<8x32xbf16>, vector<8x32xbf16>, vector<8x8xf32> -> vector<8x8xf32>
    %270 = arith.truncf %255 : vector<8x8xf32> to vector<8x8xbf16>
    %271 = arith.truncf %57 : vector<8x8xf32> to vector<8x8xbf16>
    %cst_146 = arith.constant dense<0.000000e+00> : vector<8x8xf32>
    %272 = tpu.matmul %270, %271, %cst_146 {dimension_numbers = #tpu.dot_dimension_numbers<[1], [1], [0], [0], [0, 0, 1, 0], [], []>} : vector<8x8xbf16>, vector<8x8xbf16>, vector<8x8xf32> -> vector<8x8xf32>
    %273 = arith.addf %269, %272 : vector<8x8xf32>
    %274 = arith.truncf %258 : vector<8x8xf32> to vector<8x8xbf16>
    %275 = arith.truncf %60 : vector<8x8xf32> to vector<8x8xbf16>
    %cst_147 = arith.constant dense<0.000000e+00> : vector<8x8xf32>
    %276 = tpu.matmul %274, %275, %cst_147 {dimension_numbers = #tpu.dot_dimension_numbers<[1], [1], [0], [0], [0, 0, 1, 0], [], []>} : vector<8x8xbf16>, vector<8x8xbf16>, vector<8x8xf32> -> vector<8x8xf32>
    %277 = arith.addf %273, %276 : vector<8x8xf32>
    %cst_148 = arith.constant 0.144337565 : f32
    %278 = vector.broadcast %cst_148 : f32 to vector<8x8xf32>
    %279 = arith.mulf %277, %278 : vector<8x8xf32>
    %cst_149 = arith.constant -1.000000e+30 : f32
    %280 = vector.broadcast %cst_149 : f32 to vector<8x8xf32>
    %281 = arith.select %63, %279, %280 : vector<8x8xi1>, vector<8x8xf32>
    %cst_150 = arith.constant dense<0xFF800000> : vector<8xf32>
    %282 = vector.multi_reduction <maximumf>, %281, %cst_150 [1] : vector<8x8xf32> to vector<8xf32>
    %283 = vector.shape_cast %282 : vector<8xf32> to vector<8x1xf32>
    %284 = vector.broadcast %283 : vector<8x1xf32> to vector<8x8xf32>
    %285 = arith.subf %281, %284 : vector<8x8xf32>
    %286 = math.exp %285 : vector<8x8xf32>
    %cst_151 = arith.constant dense<0.000000e+00> : vector<8xf32>
    %287 = vector.multi_reduction <add>, %286, %cst_151 [1] : vector<8x8xf32> to vector<8xf32>
    %288 = vector.shape_cast %287 : vector<8xf32> to vector<8x1xf32>
    %289 = tpu.reciprocal %288 {approx = true} : vector<8x1xf32> -> vector<8x1xf32>
    %290 = vector.broadcast %289 : vector<8x1xf32> to vector<8x8xf32>
    %291 = arith.mulf %286, %290 : vector<8x8xf32>
    %292 = arith.truncf %291 : vector<8x8xf32> to vector<8x8xbf16>
    %293 = arith.truncf %266 : vector<8x32xf32> to vector<8x32xbf16>
    %cst_152 = arith.constant dense<0.000000e+00> : vector<8x32xf32>
    %294 = tpu.matmul %292, %293, %cst_152 {dimension_numbers = #tpu.dot_dimension_numbers<[1], [0], [0], [1], [0, 0, 1, 1], [], []>} : vector<8x8xbf16>, vector<8x32xbf16>, vector<8x32xf32> -> vector<8x32xf32>
    %c3_153 = arith.constant 3 : index
    %c0_154 = arith.constant 0 : index
    %c0_155 = arith.constant 0 : index
    %295 = vector.load %arg16[%c3_153, %c0_154, %c0_155] : memref<4x32x256xbf16, #tpu.memory_space<vmem>>, vector<1x32x256xbf16>
    %296 = vector.shape_cast %295 : vector<1x32x256xbf16> to vector<32x256xbf16>
    %297 = arith.truncf %294 : vector<8x32xf32> to vector<8x32xbf16>
    %cst_156 = arith.constant dense<0.000000e+00> : vector<8x256xf32>
    %298 = tpu.matmul %297, %296, %cst_156 {dimension_numbers = #tpu.dot_dimension_numbers<[1], [0], [0], [1], [0, 0, 1, 1], [], []>} : vector<8x32xbf16>, vector<32x256xbf16>, vector<8x256xf32> -> vector<8x256xf32>
    %299 = arith.addf %240, %298 : vector<8x256xf32>
    %c0_157 = arith.constant 0 : index
    %c0_158 = arith.constant 0 : index
    %300 = vector.load %arg17[%c0_157, %c0_158] : memref<1x256xf32, #tpu.memory_space<vmem>>, vector<1x256xf32>
    %301 = arith.mulf %299, %299 : vector<8x256xf32>
    %cst_159 = arith.constant dense<0.000000e+00> : vector<8xf32>
    %302 = vector.multi_reduction <add>, %301, %cst_159 [1] : vector<8x256xf32> to vector<8xf32>
    %303 = vector.shape_cast %302 : vector<8xf32> to vector<8x1xf32>
    %cst_160 = arith.constant 2.560000e+02 : f32
    %304 = vector.broadcast %cst_160 : f32 to vector<8x1xf32>
    %305 = arith.divf %303, %304 : vector<8x1xf32>
    %cst_161 = arith.constant 9.99999997E-7 : f32
    %306 = vector.broadcast %cst_161 : f32 to vector<8x1xf32>
    %307 = arith.addf %305, %306 : vector<8x1xf32>
    %308 = math.rsqrt %307 : vector<8x1xf32>
    %309 = vector.broadcast %308 : vector<8x1xf32> to vector<8x256xf32>
    %310 = arith.mulf %299, %309 : vector<8x256xf32>
    %311 = vector.broadcast %300 : vector<1x256xf32> to vector<8x256xf32>
    %312 = arith.mulf %310, %311 : vector<8x256xf32>
    %c0_162 = arith.constant 0 : index
    %c0_163 = arith.constant 0 : index
    %313 = vector.load %arg18[%c0_162, %c0_163] : memref<256x512xbf16, #tpu.memory_space<vmem>>, vector<256x512xbf16>
    %314 = arith.truncf %312 : vector<8x256xf32> to vector<8x256xbf16>
    %cst_164 = arith.constant dense<0.000000e+00> : vector<8x512xf32>
    %315 = tpu.matmul %314, %313, %cst_164 {dimension_numbers = #tpu.dot_dimension_numbers<[1], [0], [0], [1], [0, 0, 1, 1], [], []>} : vector<8x256xbf16>, vector<256x512xbf16>, vector<8x512xf32> -> vector<8x512xf32>
    %c0_165 = arith.constant 0 : index
    %c0_166 = arith.constant 0 : index
    %316 = vector.load %arg19[%c0_165, %c0_166] : memref<256x512xbf16, #tpu.memory_space<vmem>>, vector<256x512xbf16>
    %317 = arith.truncf %312 : vector<8x256xf32> to vector<8x256xbf16>
    %cst_167 = arith.constant dense<0.000000e+00> : vector<8x512xf32>
    %318 = tpu.matmul %317, %316, %cst_167 {dimension_numbers = #tpu.dot_dimension_numbers<[1], [0], [0], [1], [0, 0, 1, 1], [], []>} : vector<8x256xbf16>, vector<256x512xbf16>, vector<8x512xf32> -> vector<8x512xf32>
    %319 = arith.negf %315 : vector<8x512xf32>
    %320 = math.exp %319 : vector<8x512xf32>
    %cst_168 = arith.constant 1.000000e+00 : f32
    %321 = vector.broadcast %cst_168 : f32 to vector<8x512xf32>
    %322 = arith.addf %321, %320 : vector<8x512xf32>
    %323 = arith.divf %321, %322 : vector<8x512xf32>
    %324 = arith.mulf %315, %323 : vector<8x512xf32>
    %325 = arith.mulf %324, %318 : vector<8x512xf32>
    %c0_169 = arith.constant 0 : index
    %c0_170 = arith.constant 0 : index
    %326 = vector.load %arg20[%c0_169, %c0_170] : memref<512x256xbf16, #tpu.memory_space<vmem>>, vector<512x256xbf16>
    %327 = arith.truncf %325 : vector<8x512xf32> to vector<8x512xbf16>
    %cst_171 = arith.constant dense<0.000000e+00> : vector<8x256xf32>
    %328 = tpu.matmul %327, %326, %cst_171 {dimension_numbers = #tpu.dot_dimension_numbers<[1], [0], [0], [1], [0, 0, 1, 1], [], []>} : vector<8x512xbf16>, vector<512x256xbf16>, vector<8x256xf32> -> vector<8x256xf32>
    %329 = arith.addf %299, %328 : vector<8x256xf32>
    %c0_172 = arith.constant 0 : index
    %c0_173 = arith.constant 0 : index
    %c0_174 = arith.constant 0 : index
    %330 = vector.load %arg21[%c0_172, %c0_173, %c0_174] : memref<1x8x256xf32, #tpu.memory_space<vmem>>, vector<1x8x256xf32>
    %331 = vector.shape_cast %330 : vector<1x8x256xf32> to vector<8x256xf32>
    %332 = vector.shape_cast %329 : vector<8x256xf32> to vector<1x8x256xf32>
    tpu.vector_store %arg21[%c0_172, %c0_173, %c0_174], %332 {strides = array<i32>} : memref<1x8x256xf32, #tpu.memory_space<vmem>>, vector<1x8x256xf32>,
    return
  }
  func.func @transform_0(%arg0: i32) -> (i32, i32, i32) {
    %c0_i32 = arith.constant 0 : i32
    %c0_i32_0 = arith.constant 0 : i32
    %c0_i32_1 = arith.constant 0 : i32
    return %arg0, %c0_i32, %c0_i32_0 : i32, i32, i32
  }
  func.func @transform_1(%arg0: i32) -> (i32, i32) {
    %c0_i32 = arith.constant 0 : i32
    %c0_i32_0 = arith.constant 0 : i32
    %c0_i32_1 = arith.constant 0 : i32
    return %c0_i32, %c0_i32_0 : i32, i32
  }
  func.func @transform_2(%arg0: i32) -> (i32, i32) {
    %c0_i32 = arith.constant 0 : i32
    %c0_i32_0 = arith.constant 0 : i32
    %c0_i32_1 = arith.constant 0 : i32
    return %c0_i32, %c0_i32_0 : i32, i32
  }
  func.func @transform_3(%arg0: i32) -> (i32, i32) {
    %c0_i32 = arith.constant 0 : i32
    %c0_i32_0 = arith.constant 0 : i32
    %c0_i32_1 = arith.constant 0 : i32
    return %c0_i32, %c0_i32_0 : i32, i32
  }
  func.func @transform_4(%arg0: i32) -> (i32, i32) {
    %c0_i32 = arith.constant 0 : i32
    %c0_i32_0 = arith.constant 0 : i32
    %c0_i32_1 = arith.constant 0 : i32
    return %c0_i32, %c0_i32_0 : i32, i32
  }
  func.func @transform_5(%arg0: i32) -> (i32, i32) {
    %c0_i32 = arith.constant 0 : i32
    %c0_i32_0 = arith.constant 0 : i32
    %c0_i32_1 = arith.constant 0 : i32
    return %c0_i32, %c0_i32_0 : i32, i32
  }
  func.func @transform_6(%arg0: i32) -> (i32, i32) {
    %c0_i32 = arith.constant 0 : i32
    %c0_i32_0 = arith.constant 0 : i32
    %c0_i32_1 = arith.constant 0 : i32
    return %c0_i32, %c0_i32_0 : i32, i32
  }
  func.func @transform_7(%arg0: i32) -> (i32, i32) {
    %c0_i32 = arith.constant 0 : i32
    %c0_i32_0 = arith.constant 0 : i32
    %c0_i32_1 = arith.constant 0 : i32
    return %c0_i32, %c0_i32_0 : i32, i32
  }
  func.func @transform_8(%arg0: i32) -> (i32, i32) {
    %c0_i32 = arith.constant 0 : i32
    %c0_i32_0 = arith.constant 0 : i32
    %c0_i32_1 = arith.constant 0 : i32
    return %c0_i32, %c0_i32_0 : i32, i32
  }
  func.func @transform_9(%arg0: i32) -> (i32, i32) {
    %c0_i32 = arith.constant 0 : i32
    %c0_i32_0 = arith.constant 0 : i32
    %c0_i32_1 = arith.constant 0 : i32
    return %c0_i32, %c0_i32_0 : i32, i32
  }
  func.func @transform_10(%arg0: i32) -> (i32, i32, i32) {
    %c0_i32 = arith.constant 0 : i32
    %c0_i32_0 = arith.constant 0 : i32
    %c0_i32_1 = arith.constant 0 : i32
    %c0_i32_2 = arith.constant 0 : i32
    return %c0_i32, %c0_i32_0, %c0_i32_1 : i32, i32, i32
  }
  func.func @transform_11(%arg0: i32) -> (i32, i32, i32) {
    %c0_i32 = arith.constant 0 : i32
    %c0_i32_0 = arith.constant 0 : i32
    %c0_i32_1 = arith.constant 0 : i32
    %c0_i32_2 = arith.constant 0 : i32
    return %c0_i32, %c0_i32_0, %c0_i32_1 : i32, i32, i32
  }
  func.func @transform_12(%arg0: i32) -> (i32, i32, i32) {
    %c0_i32 = arith.constant 0 : i32
    %c0_i32_0 = arith.constant 0 : i32
    %c0_i32_1 = arith.constant 0 : i32
    %c0_i32_2 = arith.constant 0 : i32
    return %c0_i32, %c0_i32_0, %c0_i32_1 : i32, i32, i32
  }
  func.func @transform_13(%arg0: i32) -> (i32, i32, i32) {
    %c0_i32 = arith.constant 0 : i32
    %c0_i32_0 = arith.constant 0 : i32
    %c0_i32_1 = arith.constant 0 : i32
    %c0_i32_2 = arith.constant 0 : i32
    return %c0_i32, %c0_i32_0, %c0_i32_1 : i32, i32, i32
  }
  func.func @transform_14(%arg0: i32) -> (i32, i32, i32) {
    %c0_i32 = arith.constant 0 : i32
    %c0_i32_0 = arith.constant 0 : i32
    %c0_i32_1 = arith.constant 0 : i32
    %c0_i32_2 = arith.constant 0 : i32
    return %c0_i32, %c0_i32_0, %c0_i32_1 : i32, i32, i32
  }
  func.func @transform_15(%arg0: i32) -> (i32, i32, i32) {
    %c0_i32 = arith.constant 0 : i32
    %c0_i32_0 = arith.constant 0 : i32
    %c0_i32_1 = arith.constant 0 : i32
    %c0_i32_2 = arith.constant 0 : i32
    return %c0_i32, %c0_i32_0, %c0_i32_1 : i32, i32, i32
  }
  func.func @transform_16(%arg0: i32) -> (i32, i32) {
    %c0_i32 = arith.constant 0 : i32
    %c0_i32_0 = arith.constant 0 : i32
    %c0_i32_1 = arith.constant 0 : i32
    return %c0_i32, %c0_i32_0 : i32, i32
  }
  func.func @transform_17(%arg0: i32) -> (i32, i32) {
    %c0_i32 = arith.constant 0 : i32
    %c0_i32_0 = arith.constant 0 : i32
    %c0_i32_1 = arith.constant 0 : i32
    return %c0_i32, %c0_i32_0 : i32, i32
  }
  func.func @transform_18(%arg0: i32) -> (i32, i32) {
    %c0_i32 = arith.constant 0 : i32
    %c0_i32_0 = arith.constant 0 : i32
    %c0_i32_1 = arith.constant 0 : i32
    return %c0_i32, %c0_i32_0 : i32, i32
  }
  func.func @transform_19(%arg0: i32) -> (i32, i32) {
    %c0_i32 = arith.constant 0 : i32
    %c0_i32_0 = arith.constant 0 : i32
    %c0_i32_1 = arith.constant 0 : i32
    return %c0_i32, %c0_i32_0 : i32, i32
  }
  func.func @transform_20(%arg0: i32) -> (i32, i32, i32) {
    %c0_i32 = arith.constant 0 : i32
    %c0_i32_0 = arith.constant 0 : i32
    %c0_i32_1 = arith.constant 0 : i32
    return %arg0, %c0_i32, %c0_i32_0 : i32, i32, i32
  }
}

</mosaic_0001>

<llo_original>
// kernel: deepseekv2_decoder_layer.1
$region0: #{deepseekv2_decoder_layer.1}
  #allocation0 [shape = 'u32[]', space=smem, size = 0x4, offset = 0x4, fixed_abs, tag = 'smem constant byte address 0x4 - core index']
  #allocation1 [shape = 'u32[144,128]{1,0:T(1,128)}', space=vmem, size = 0x12000, scoped, tag = 'internal scratch']
  %s0 = inlined_call_operand.vmem [shape: f32[2,8,256], index: 0, kind: input, shape index: {}]
  %s1 = inlined_call_operand.vmem [shape: f32[8,8], index: 1, kind: input, shape index: {}]
  %s2 = inlined_call_operand.vmem [shape: f32[8,8], index: 2, kind: input, shape index: {}]
  %s3 = inlined_call_operand.vmem [shape: f32[1,256], index: 3, kind: input, shape index: {}]
  %s4 = inlined_call_operand.vmem [shape: bf16[256,64], index: 4, kind: input, shape index: {}]
  %s5 = inlined_call_operand.vmem [shape: f32[1,64], index: 5, kind: input, shape index: {}]
  %s6 = inlined_call_operand.vmem [shape: bf16[256,64], index: 6, kind: input, shape index: {}]
  %s7 = inlined_call_operand.hbm [shape: f32[1,64], index: 7, kind: input, shape index: {}]
  %s8 = inlined_call_operand.vmem [shape: bf16[256,8], index: 8, kind: input, shape index: {}]
  %s9 = inlined_call_operand.vmem [shape: bf16[256,8], index: 9, kind: input, shape index: {}]
  %s10 = inlined_call_operand.vmem [shape: bf16[4,64,32], index: 10, kind: input, shape index: {}]
  %s11 = inlined_call_operand.vmem [shape: bf16[4,64,8], index: 11, kind: input, shape index: {}]
  %s12 = inlined_call_operand.vmem [shape: bf16[4,64,8], index: 12, kind: input, shape index: {}]
  %s13 = inlined_call_operand.vmem [shape: bf16[4,64,32], index: 13, kind: input, shape index: {}]
  %s14 = inlined_call_operand.vmem [shape: bf16[4,64,32], index: 14, kind: input, shape index: {}]
  %s15 = inlined_call_operand.hbm [shape: bf16[4,32,256], index: 15, kind: input, shape index: {}]
  %s16 = inlined_call_operand.vmem [shape: f32[1,256], index: 16, kind: input, shape index: {}]
  %s17 = inlined_call_operand.vmem [shape: bf16[256,512], index: 17, kind: input, shape index: {}]
  %s18 = inlined_call_operand.vmem [shape: bf16[256,512], index: 18, kind: input, shape index: {}]
  %s19 = inlined_call_operand.vmem [shape: bf16[512,256], index: 19, kind: input, shape index: {}]
  %s20 = inlined_call_operand.hbm [shape: f32[2,8,256], index: 20, kind: output, shape index: {}]
  %s21 = sld [smem:[#allocation0]]
  $region121: #{deepseekv2_decoder_layer.1} parent=0
    _
  %s23 = ssub.s32 1, %s21
  %s24 = scalar_select 0, %s23, %s21
  $region1: #{deepseekv2_decoder_layer.1} parent=0
    #allocation2 [shape = 'u8[512]{0}', space=vmem, size = 0x400, scoped, tag = 'input window, operand 7, single buffered']
    #allocation3 [shape = 's32[2]{0}', space=sflag, size = 0x8, scoped, tag = 'scoped memory for deepseekv2_decoder_layer.1']
    #allocation4 [shape = 's32[2]{0}', space=sflag, size = 0x8, scoped, tag = 'scoped memory for deepseekv2_decoder_layer.1']
    #allocation5 [shape = 'u8[65536]{0}', space=vmem, size = 0x10000, scoped, tag = 'input window, operand 15, single buffered']
    #allocation6 [shape = 's32[1]{0}', space=sflag, size = 0x4, scoped, tag = 'scoped memory for deepseekv2_decoder_layer.1']
    #allocation7 [shape = 'u8[16384]{0}', space=vmem, size = 0x4000, scoped, tag = 'output window, operand 0']
    %25 = vsyncpa [#allocation3], 0
    %26 = vsyncpa [#allocation6], 0
    %27 = vsyncpa [#allocation4], 0
    %s28 = scalar_lea.sflag [#allocation4], 1
    %29 = vsyncpa %s28, 0
    loop: start=0, step=1, limit=4
    $region2: #{deepseekv2_decoder_layer.1} parent=1 // loop_pre_header
      _
    $region3: #{deepseekv2_decoder_layer.1} parent=1 // loop_header
      %s31 = sphi 0, %s35
      %p32 = scmp.ge.s32.totalorder %s31, 4
      %s41 = sphi 0, %s43
      %s44 = sphi 0, %s41
      %s45 = sphi 0, %s44
      %s61 = sphi 0, %s45
      %s65 = sphi 0, %s65
      %s67 = sphi 0, %s65
      %s68 = sphi 0, %s67
      %s82 = sphi 0, %s68
      %s86 = sphi 0, %s86
      %s88 = sphi 0, %s86
      %s89 = sphi 0, %s88
      %s103 = sphi 0, %s89
      %s107 = sphi 0, %s107
      %s109 = sphi 0, %s107
      %s110 = sphi 0, %s109
      %s124 = sphi 0, %s110
      %s128 = sphi 0, %s128
      %s130 = sphi 0, %s128
      %s131 = sphi 0, %s130
      %s145 = sphi 0, %s131
      %s149 = sphi 0, %s149
      %s151 = sphi 0, %s149
      %s152 = sphi 0, %s151
      %s166 = sphi 0, %s152
      %s170 = sphi 0, %s170
      %s172 = sphi 0, %s170
      %s173 = sphi 0, %s172
      %s187 = sphi 0, %s173
      %s191 = sphi 0, %s191
      %s193 = sphi 0, %s191
      %s194 = sphi 0, %s193
      %s208 = sphi 0, %s194
      %s212 = sphi 0, %s212
      %s214 = sphi 0, %s212
      %s215 = sphi 0, %s214
      %s229 = sphi 0, %s215
      %s233 = sphi 0, %s233
      %s235 = sphi 0, %s233
      %s236 = sphi 0, %s235
      %s250 = sphi 0, %s236
      %s254 = sphi 0, %s254
      %s256 = sphi 0, %s254
      %s257 = sphi 0, %s256
      %s271 = sphi 0, %s257
      %s275 = sphi 0, %s275
      %s277 = sphi 0, %s275
      %s278 = sphi 0, %s277
      %s292 = sphi 0, %s278
      %s296 = sphi 0, %s296
      %s298 = sphi 0, %s296
      %s299 = sphi 0, %s298
      %s313 = sphi 0, %s299
      %s317 = sphi 0, %s317
      %s319 = sphi 0, %s317
      %s320 = sphi 0, %s319
      %s334 = sphi 0, %s320
      %s338 = sphi 0, %s338
      %s340 = sphi 0, %s338
      %s341 = sphi 0, %s340
      %s355 = sphi 0, %s341
      %s359 = sphi 0, %s359
      %s361 = sphi 0, %s359
      %s362 = sphi 0, %s361
      %s376 = sphi 0, %s362
      %s380 = sphi 0, %s380
      %s382 = sphi 0, %s380
      %s383 = sphi 0, %s382
      %s397 = sphi 0, %s383
      %s401 = sphi 0, %s401
      %s403 = sphi 0, %s401
      %s404 = sphi 0, %s403
      %s418 = sphi 0, %s404
      %s422 = sphi 0, %s422
      %s424 = sphi 0, %s422
      %s425 = sphi 0, %s424
      %s439 = sphi 0, %s425
      %s443 = sphi 0, %s443
      %s445 = sphi 0, %s443
      %s446 = sphi 0, %s445
      %s460 = sphi 0, %s446
      %s466 = sphi 0, %s468
      %s469 = sphi 0, %s466
      %s470 = sphi 0, %s469
      %s486 = sphi 0, %s470
    $region4: #{deepseekv2_decoder_layer.1} parent=1 // loop_header_branch
      %34 = sbr.rel (%p32) target = $region8
    $region5: #{deepseekv2_decoder_layer.1} parent=1 // loop_body
      %s36 = ssub.s32 %s31, 1
      %s37 = ssub.s32 %s31, 2
      %s38 = sadd.s32 %s31, 1
      %s39 = ssub.s32 %s31, %s38
      %p40 = scmp.eq.s32.totalorder %s39, 0
      %s42 = sadd.s32 %s41, 1
      %s43 = scalar_select %p40, %s41, %s42
      %p46 = pneg %p40
      %p47 = scmp.eq.s32.totalorder %s31, 1
      %p48 = por %p46, %p47
      %p49 = scmp.ne.s32.totalorder %s41, %s44
      %p50 = scmp.eq.s32.totalorder %s31, 0
      %p51 = por %p49, %p50
      %p52 = scmp.ne.s32.totalorder %s41, %s44
      %p53 = scmp.eq.s32.totalorder %s36, 1
      %p54 = por %p52, %p53
      %p55 = scmp.ne.s32.totalorder %s44, %s45
      %p56 = scmp.eq.s32.totalorder %s36, 0
      %p57 = por %p55, %p56
      %p58 = scmp.ne.s32.totalorder %s44, %s45
      %p59 = scmp.eq.s32.totalorder %s37, 1
      %p60 = por %p58, %p59
      %p62 = scmp.ne.s32.totalorder %s45, %s61
      %p63 = scmp.eq.s32.totalorder %s37, 0
      %p64 = por %p62, %p63
      %s66 = sadd.s32 %s65, 1
      %p69 = scmp.eq.s32.totalorder %s31, 1
      %p70 = scmp.ne.s32.totalorder %s65, %s67
      %p71 = scmp.eq.s32.totalorder %s31, 0
      %p72 = por %p70, %p71
      %p73 = scmp.ne.s32.totalorder %s65, %s67
      %p74 = scmp.eq.s32.totalorder %s36, 1
      %p75 = por %p73, %p74
      %p76 = scmp.ne.s32.totalorder %s67, %s68
      %p77 = scmp.eq.s32.totalorder %s36, 0
      %p78 = por %p76, %p77
      %p79 = scmp.ne.s32.totalorder %s67, %s68
      %p80 = scmp.eq.s32.totalorder %s37, 1
      %p81 = por %p79, %p80
      %p83 = scmp.ne.s32.totalorder %s68, %s82
      %p84 = scmp.eq.s32.totalorder %s37, 0
      %p85 = por %p83, %p84
      %s87 = sadd.s32 %s86, 1
      %p90 = scmp.eq.s32.totalorder %s31, 1
      %p91 = scmp.ne.s32.totalorder %s86, %s88
      %p92 = scmp.eq.s32.totalorder %s31, 0
      %p93 = por %p91, %p92
      %p94 = scmp.ne.s32.totalorder %s86, %s88
      %p95 = scmp.eq.s32.totalorder %s36, 1
      %p96 = por %p94, %p95
      %p97 = scmp.ne.s32.totalorder %s88, %s89
      %p98 = scmp.eq.s32.totalorder %s36, 0
      %p99 = por %p97, %p98
      %p100 = scmp.ne.s32.totalorder %s88, %s89
      %p101 = scmp.eq.s32.totalorder %s37, 1
      %p102 = por %p100, %p101
      %p104 = scmp.ne.s32.totalorder %s89, %s103
      %p105 = scmp.eq.s32.totalorder %s37, 0
      %p106 = por %p104, %p105
      %s108 = sadd.s32 %s107, 1
      %p111 = scmp.eq.s32.totalorder %s31, 1
      %p112 = scmp.ne.s32.totalorder %s107, %s109
      %p113 = scmp.eq.s32.totalorder %s31, 0
      %p114 = por %p112, %p113
      %p115 = scmp.ne.s32.totalorder %s107, %s109
      %p116 = scmp.eq.s32.totalorder %s36, 1
      %p117 = por %p115, %p116
      %p118 = scmp.ne.s32.totalorder %s109, %s110
      %p119 = scmp.eq.s32.totalorder %s36, 0
      %p120 = por %p118, %p119
      %p121 = scmp.ne.s32.totalorder %s109, %s110
      %p122 = scmp.eq.s32.totalorder %s37, 1
      %p123 = por %p121, %p122
      %p125 = scmp.ne.s32.totalorder %s110, %s124
      %p126 = scmp.eq.s32.totalorder %s37, 0
      %p127 = por %p125, %p126
      %s129 = sadd.s32 %s128, 1
      %p132 = scmp.eq.s32.totalorder %s31, 1
      %p133 = scmp.ne.s32.totalorder %s128, %s130
      %p134 = scmp.eq.s32.totalorder %s31, 0
      %p135 = por %p133, %p134
      %p136 = scmp.ne.s32.totalorder %s128, %s130
      %p137 = scmp.eq.s32.totalorder %s36, 1
      %p138 = por %p136, %p137
      %p139 = scmp.ne.s32.totalorder %s130, %s131
      %p140 = scmp.eq.s32.totalorder %s36, 0
      %p141 = por %p139, %p140
      %p142 = scmp.ne.s32.totalorder %s130, %s131
      %p143 = scmp.eq.s32.totalorder %s37, 1
      %p144 = por %p142, %p143
      %p146 = scmp.ne.s32.totalorder %s131, %s145
      %p147 = scmp.eq.s32.totalorder %s37, 0
      %p148 = por %p146, %p147
      %s150 = sadd.s32 %s149, 1
      %p153 = scmp.eq.s32.totalorder %s31, 1
      %p154 = scmp.ne.s32.totalorder %s149, %s151
      %p155 = scmp.eq.s32.totalorder %s31, 0
      %p156 = por %p154, %p155
      %p157 = scmp.ne.s32.totalorder %s149, %s151
      %p158 = scmp.eq.s32.totalorder %s36, 1
      %p159 = por %p157, %p158
      %p160 = scmp.ne.s32.totalorder %s151, %s152
      %p161 = scmp.eq.s32.totalorder %s36, 0
      %p162 = por %p160, %p161
      %p163 = scmp.ne.s32.totalorder %s151, %s152
      %p164 = scmp.eq.s32.totalorder %s37, 1
      %p165 = por %p163, %p164
      %p167 = scmp.ne.s32.totalorder %s152, %s166
      %p168 = scmp.eq.s32.totalorder %s37, 0
      %p169 = por %p167, %p168
      %s171 = sadd.s32 %s170, 1
      %p174 = scmp.eq.s32.totalorder %s31, 1
      %p175 = scmp.ne.s32.totalorder %s170, %s172
      %p176 = scmp.eq.s32.totalorder %s31, 0
      %p177 = por %p175, %p176
      %p178 = scmp.ne.s32.totalorder %s170, %s172
      %p179 = scmp.eq.s32.totalorder %s36, 1
      %p180 = por %p178, %p179
      %p181 = scmp.ne.s32.totalorder %s172, %s173
      %p182 = scmp.eq.s32.totalorder %s36, 0
      %p183 = por %p181, %p182
      %p184 = scmp.ne.s32.totalorder %s172, %s173
      %p185 = scmp.eq.s32.totalorder %s37, 1
      %p186 = por %p184, %p185
      %p188 = scmp.ne.s32.totalorder %s173, %s187
      %p189 = scmp.eq.s32.totalorder %s37, 0
      %p190 = por %p188, %p189
      %s192 = sadd.s32 %s191, 1
      %p195 = scmp.eq.s32.totalorder %s31, 1
      %p196 = scmp.ne.s32.totalorder %s191, %s193
      %p197 = scmp.eq.s32.totalorder %s31, 0
      %p198 = por %p196, %p197
      %p199 = scmp.ne.s32.totalorder %s191, %s193
      %p200 = scmp.eq.s32.totalorder %s36, 1
      %p201 = por %p199, %p200
      %p202 = scmp.ne.s32.totalorder %s193, %s194
      %p203 = scmp.eq.s32.totalorder %s36, 0
      %p204 = por %p202, %p203
      %p205 = scmp.ne.s32.totalorder %s193, %s194
      %p206 = scmp.eq.s32.totalorder %s37, 1
      %p207 = por %p205, %p206
      %p209 = scmp.ne.s32.totalorder %s194, %s208
      %p210 = scmp.eq.s32.totalorder %s37, 0
      %p211 = por %p209, %p210
      %s213 = sadd.s32 %s212, 1
      %p216 = scmp.eq.s32.totalorder %s31, 1
      %p217 = scmp.ne.s32.totalorder %s212, %s214
      %p218 = scmp.eq.s32.totalorder %s31, 0
      %p219 = por %p217, %p218
      %p220 = scmp.ne.s32.totalorder %s212, %s214
      %p221 = scmp.eq.s32.totalorder %s36, 1
      %p222 = por %p220, %p221
      %p223 = scmp.ne.s32.totalorder %s214, %s215
      %p224 = scmp.eq.s32.totalorder %s36, 0
      %p225 = por %p223, %p224
      %p226 = scmp.ne.s32.totalorder %s214, %s215
      %p227 = scmp.eq.s32.totalorder %s37, 1
      %p228 = por %p226, %p227
      %p230 = scmp.ne.s32.totalorder %s215, %s229
      %p231 = scmp.eq.s32.totalorder %s37, 0
      %p232 = por %p230, %p231
      %s234 = sadd.s32 %s233, 1
      %p237 = scmp.eq.s32.totalorder %s31, 1
      %p238 = scmp.ne.s32.totalorder %s233, %s235
      %p239 = scmp.eq.s32.totalorder %s31, 0
      %p240 = por %p238, %p239
      %p241 = scmp.ne.s32.totalorder %s233, %s235
      %p242 = scmp.eq.s32.totalorder %s36, 1
      %p243 = por %p241, %p242
      %p244 = scmp.ne.s32.totalorder %s235, %s236
      %p245 = scmp.eq.s32.totalorder %s36, 0
      %p246 = por %p244, %p245
      %p247 = scmp.ne.s32.totalorder %s235, %s236
      %p248 = scmp.eq.s32.totalorder %s37, 1
      %p249 = por %p247, %p248
      %p251 = scmp.ne.s32.totalorder %s236, %s250
      %p252 = scmp.eq.s32.totalorder %s37, 0
      %p253 = por %p251, %p252
      %s255 = sadd.s32 %s254, 1
      %p258 = scmp.eq.s32.totalorder %s31, 1
      %p259 = scmp.ne.s32.totalorder %s254, %s256
      %p260 = scmp.eq.s32.totalorder %s31, 0
      %p261 = por %p259, %p260
      %p262 = scmp.ne.s32.totalorder %s254, %s256
      %p263 = scmp.eq.s32.totalorder %s36, 1
      %p264 = por %p262, %p263
      %p265 = scmp.ne.s32.totalorder %s256, %s257
      %p266 = scmp.eq.s32.totalorder %s36, 0
      %p267 = por %p265, %p266
      %p268 = scmp.ne.s32.totalorder %s256, %s257
      %p269 = scmp.eq.s32.totalorder %s37, 1
      %p270 = por %p268, %p269
      %p272 = scmp.ne.s32.totalorder %s257, %s271
      %p273 = scmp.eq.s32.totalorder %s37, 0
      %p274 = por %p272, %p273
      %s276 = sadd.s32 %s275, 1
      %p279 = scmp.eq.s32.totalorder %s31, 1
      %p280 = scmp.ne.s32.totalorder %s275, %s277
      %p281 = scmp.eq.s32.totalorder %s31, 0
      %p282 = por %p280, %p281
      %p283 = scmp.ne.s32.totalorder %s275, %s277
      %p284 = scmp.eq.s32.totalorder %s36, 1
      %p285 = por %p283, %p284
      %p286 = scmp.ne.s32.totalorder %s277, %s278
      %p287 = scmp.eq.s32.totalorder %s36, 0
      %p288 = por %p286, %p287
      %p289 = scmp.ne.s32.totalorder %s277, %s278
      %p290 = scmp.eq.s32.totalorder %s37, 1
      %p291 = por %p289, %p290
      %p293 = scmp.ne.s32.totalorder %s278, %s292
      %p294 = scmp.eq.s32.totalorder %s37, 0
      %p295 = por %p293, %p294
      %s297 = sadd.s32 %s296, 1
      %p300 = scmp.eq.s32.totalorder %s31, 1
      %p301 = scmp.ne.s32.totalorder %s296, %s298
      %p302 = scmp.eq.s32.totalorder %s31, 0
      %p303 = por %p301, %p302
      %p304 = scmp.ne.s32.totalorder %s296, %s298
      %p305 = scmp.eq.s32.totalorder %s36, 1
      %p306 = por %p304, %p305
      %p307 = scmp.ne.s32.totalorder %s298, %s299
      %p308 = scmp.eq.s32.totalorder %s36, 0
      %p309 = por %p307, %p308
      %p310 = scmp.ne.s32.totalorder %s298, %s299
      %p311 = scmp.eq.s32.totalorder %s37, 1
      %p312 = por %p310, %p311
      %p314 = scmp.ne.s32.totalorder %s299, %s313
      %p315 = scmp.eq.s32.totalorder %s37, 0
      %p316 = por %p314, %p315
      %s318 = sadd.s32 %s317, 1
      %p321 = scmp.eq.s32.totalorder %s31, 1
      %p322 = scmp.ne.s32.totalorder %s317, %s319
      %p323 = scmp.eq.s32.totalorder %s31, 0
      %p324 = por %p322, %p323
      %p325 = scmp.ne.s32.totalorder %s317, %s319
      %p326 = scmp.eq.s32.totalorder %s36, 1
      %p327 = por %p325, %p326
      %p328 = scmp.ne.s32.totalorder %s319, %s320
      %p329 = scmp.eq.s32.totalorder %s36, 0
      %p330 = por %p328, %p329
      %p331 = scmp.ne.s32.totalorder %s319, %s320
      %p332 = scmp.eq.s32.totalorder %s37, 1
      %p333 = por %p331, %p332
      %p335 = scmp.ne.s32.totalorder %s320, %s334
      %p336 = scmp.eq.s32.totalorder %s37, 0
      %p337 = por %p335, %p336
      %s339 = sadd.s32 %s338, 1
      %p342 = scmp.eq.s32.totalorder %s31, 1
      %p343 = scmp.ne.s32.totalorder %s338, %s340
      %p344 = scmp.eq.s32.totalorder %s31, 0
      %p345 = por %p343, %p344
      %p346 = scmp.ne.s32.totalorder %s338, %s340
      %p347 = scmp.eq.s32.totalorder %s36, 1
      %p348 = por %p346, %p347
      %p349 = scmp.ne.s32.totalorder %s340, %s341
      %p350 = scmp.eq.s32.totalorder %s36, 0
      %p351 = por %p349, %p350
      %p352 = scmp.ne.s32.totalorder %s340, %s341
      %p353 = scmp.eq.s32.totalorder %s37, 1
      %p354 = por %p352, %p353
      %p356 = scmp.ne.s32.totalorder %s341, %s355
      %p357 = scmp.eq.s32.totalorder %s37, 0
      %p358 = por %p356, %p357
      %s360 = sadd.s32 %s359, 1
      %p363 = scmp.eq.s32.totalorder %s31, 1
      %p364 = scmp.ne.s32.totalorder %s359, %s361
      %p365 = scmp.eq.s32.totalorder %s31, 0
      %p366 = por %p364, %p365
      %p367 = scmp.ne.s32.totalorder %s359, %s361
      %p368 = scmp.eq.s32.totalorder %s36, 1
      %p369 = por %p367, %p368
      %p370 = scmp.ne.s32.totalorder %s361, %s362
      %p371 = scmp.eq.s32.totalorder %s36, 0
      %p372 = por %p370, %p371
      %p373 = scmp.ne.s32.totalorder %s361, %s362
      %p374 = scmp.eq.s32.totalorder %s37, 1
      %p375 = por %p373, %p374
      %p377 = scmp.ne.s32.totalorder %s362, %s376
      %p378 = scmp.eq.s32.totalorder %s37, 0
      %p379 = por %p377, %p378
      %s381 = sadd.s32 %s380, 1
      %p384 = scmp.eq.s32.totalorder %s31, 1
      %p385 = scmp.ne.s32.totalorder %s380, %s382
      %p386 = scmp.eq.s32.totalorder %s31, 0
      %p387 = por %p385, %p386
      %p388 = scmp.ne.s32.totalorder %s380, %s382
      %p389 = scmp.eq.s32.totalorder %s36, 1
      %p390 = por %p388, %p389
      %p391 = scmp.ne.s32.totalorder %s382, %s383
      %p392 = scmp.eq.s32.totalorder %s36, 0
      %p393 = por %p391, %p392
      %p394 = scmp.ne.s32.totalorder %s382, %s383
      %p395 = scmp.eq.s32.totalorder %s37, 1
      %p396 = por %p394, %p395
      %p398 = scmp.ne.s32.totalorder %s383, %s397
      %p399 = scmp.eq.s32.totalorder %s37, 0
      %p400 = por %p398, %p399
      %s402 = sadd.s32 %s401, 1
      %p405 = scmp.eq.s32.totalorder %s31, 1
      %p406 = scmp.ne.s32.totalorder %s401, %s403
      %p407 = scmp.eq.s32.totalorder %s31, 0
      %p408 = por %p406, %p407
      %p409 = scmp.ne.s32.totalorder %s401, %s403
      %p410 = scmp.eq.s32.totalorder %s36, 1
      %p411 = por %p409, %p410
      %p412 = scmp.ne.s32.totalorder %s403, %s404
      %p413 = scmp.eq.s32.totalorder %s36, 0
      %p414 = por %p412, %p413
      %p415 = scmp.ne.s32.totalorder %s403, %s404
      %p416 = scmp.eq.s32.totalorder %s37, 1
      %p417 = por %p415, %p416
      %p419 = scmp.ne.s32.totalorder %s404, %s418
      %p420 = scmp.eq.s32.totalorder %s37, 0
      %p421 = por %p419, %p420
      %s423 = sadd.s32 %s422, 1
      %p426 = scmp.eq.s32.totalorder %s31, 1
      %p427 = scmp.ne.s32.totalorder %s422, %s424
      %p428 = scmp.eq.s32.totalorder %s31, 0
      %p429 = por %p427, %p428
      %p430 = scmp.ne.s32.totalorder %s422, %s424
      %p431 = scmp.eq.s32.totalorder %s36, 1
      %p432 = por %p430, %p431
      %p433 = scmp.ne.s32.totalorder %s424, %s425
      %p434 = scmp.eq.s32.totalorder %s36, 0
      %p435 = por %p433, %p434
      %p436 = scmp.ne.s32.totalorder %s424, %s425
      %p437 = scmp.eq.s32.totalorder %s37, 1
      %p438 = por %p436, %p437
      %p440 = scmp.ne.s32.totalorder %s425, %s439
      %p441 = scmp.eq.s32.totalorder %s37, 0
      %p442 = por %p440, %p441
      %s444 = sadd.s32 %s443, 1
      %p447 = scmp.eq.s32.totalorder %s31, 1
      %p448 = scmp.ne.s32.totalorder %s443, %s445
      %p449 = scmp.eq.s32.totalorder %s31, 0
      %p450 = por %p448, %p449
      %p451 = scmp.ne.s32.totalorder %s443, %s445
      %p452 = scmp.eq.s32.totalorder %s36, 1
      %p453 = por %p451, %p452
      %p454 = scmp.ne.s32.totalorder %s445, %s446
      %p455 = scmp.eq.s32.totalorder %s36, 0
      %p456 = por %p454, %p455
      %p457 = scmp.ne.s32.totalorder %s445, %s446
      %p458 = scmp.eq.s32.totalorder %s37, 1
      %p459 = por %p457, %p458
      %p461 = scmp.ne.s32.totalorder %s446, %s460
      %p462 = scmp.eq.s32.totalorder %s37, 0
      %p463 = por %p461, %p462
      %s464 = ssub.s32 %s31, %s38
      %p465 = scmp.eq.s32.totalorder %s464, 0
      %s467 = sadd.s32 %s466, 1
      %s468 = scalar_select %p465, %s466, %s467
      %p471 = pneg %p465
      %p472 = scmp.eq.s32.totalorder %s31, 1
      %p473 = por %p471, %p472
      %p474 = scmp.ne.s32.totalorder %s466, %s469
      %p475 = scmp.eq.s32.totalorder %s31, 0
      %p476 = por %p474, %p475
      %p477 = scmp.ne.s32.totalorder %s466, %s469
      %p478 = scmp.eq.s32.totalorder %s36, 1
      %p479 = por %p477, %p478
      %p480 = scmp.ne.s32.totalorder %s469, %s470
      %p481 = scmp.eq.s32.totalorder %s36, 0
      %p482 = por %p480, %p481
      %p483 = scmp.ne.s32.totalorder %s469, %s470
      %p484 = scmp.eq.s32.totalorder %s37, 1
      %p485 = por %p483, %p484
      %p487 = scmp.ne.s32.totalorder %s470, %s486
      %p488 = scmp.eq.s32.totalorder %s37, 0
      %p489 = por %p487, %p488
      %p490 = scmp.le.s32.totalorder 1, %s31
      %p491 = scmp.lt.s32.totalorder %s31, 3
      %p492 = pnand %p490, %p491
      %p493 = pneg %p492
      // Predicated region
      $region9: #{deepseekv2_decoder_layer.1} parent=5 // pred_check
        _
      $region10: #{deepseekv2_decoder_layer.1} parent=5 // pred_check_branch
        %495 = sbr.rel (%p492) target = $region12
      $region11: #{deepseekv2_decoder_layer.1} parent=5 // pred_region
        %s496 = ssub.s32 %s31, 1
        // Predicated region
        $region13: #{deepseekv2_decoder_layer.1} parent=11 // pred_check
          %p497 = pneg %p78
        $region14: #{deepseekv2_decoder_layer.1} parent=11 // pred_check_branch
          %499 = sbr.rel (%p497) target = $region16
        $region15: #{deepseekv2_decoder_layer.1} parent=11 // pred_region
          _
        $region16: #{deepseekv2_decoder_layer.1} parent=11 // pred_fallthru
          _
        // Predicated region
        $region17: #{deepseekv2_decoder_layer.1} parent=11 // pred_check
          %p500 = pneg %p99
        $region18: #{deepseekv2_decoder_layer.1} parent=11 // pred_check_branch
          %502 = sbr.rel (%p500) target = $region20
        $region19: #{deepseekv2_decoder_layer.1} parent=11 // pred_region
          _
        $region20: #{deepseekv2_decoder_layer.1} parent=11 // pred_fallthru
          _
        // Predicated region
        $region21: #{deepseekv2_decoder_layer.1} parent=11 // pred_check
          %p503 = pneg %p120
        $region22: #{deepseekv2_decoder_layer.1} parent=11 // pred_check_branch
          %505 = sbr.rel (%p503) target = $region24
        $region23: #{deepseekv2_decoder_layer.1} parent=11 // pred_region
          _
        $region24: #{deepseekv2_decoder_layer.1} parent=11 // pred_fallthru
          _
        // Predicated region
        $region25: #{deepseekv2_decoder_layer.1} parent=11 // pred_check
          %p506 = pneg %p141
        $region26: #{deepseekv2_decoder_layer.1} parent=11 // pred_check_branch
          %508 = sbr.rel (%p506) target = $region28
        $region27: #{deepseekv2_decoder_layer.1} parent=11 // pred_region
          _
        $region28: #{deepseekv2_decoder_layer.1} parent=11 // pred_fallthru
          _
        // Predicated region
        $region29: #{deepseekv2_decoder_layer.1} parent=11 // pred_check
          %p509 = pneg %p162
        $region30: #{deepseekv2_decoder_layer.1} parent=11 // pred_check_branch
          %511 = sbr.rel (%p509) target = $region32
        $region31: #{deepseekv2_decoder_layer.1} parent=11 // pred_region
          _
        $region32: #{deepseekv2_decoder_layer.1} parent=11 // pred_fallthru
          _
        // Predicated region
        $region33: #{deepseekv2_decoder_layer.1} parent=11 // pred_check
          %p512 = pneg %p183
        $region34: #{deepseekv2_decoder_layer.1} parent=11 // pred_check_branch
          %514 = sbr.rel (%p512) target = $region36
        $region35: #{deepseekv2_decoder_layer.1} parent=11 // pred_region
          _
        $region36: #{deepseekv2_decoder_layer.1} parent=11 // pred_fallthru
          _
        // Predicated region
        $region37: #{deepseekv2_decoder_layer.1} parent=11 // pred_check
          %p515 = pneg %p204
        $region38: #{deepseekv2_decoder_layer.1} parent=11 // pred_check_branch
          %517 = sbr.rel (%p515) target = $region40
        $region39: #{deepseekv2_decoder_layer.1} parent=11 // pred_region
          %s519 = ssub.s32 16, 16
          %520 = vsyncadd [#allocation3], %s519
          %s522 = sshll.u32 [#allocation2], 4
          %s523 = int_to_ptr.vmem [resolvable:$true] %s522
          %525 = dma.hbm_to_vmem [thread:$0]  %s7, 16, %s523, [#allocation3]
        $region40: #{deepseekv2_decoder_layer.1} parent=11 // pred_fallthru
          _
        // Predicated region
        $region41: #{deepseekv2_decoder_layer.1} parent=11 // pred_check
          %p526 = pneg %p225
        $region42: #{deepseekv2_decoder_layer.1} parent=11 // pred_check_branch
          %528 = sbr.rel (%p526) target = $region44
        $region43: #{deepseekv2_decoder_layer.1} parent=11 // pred_region
          _
        $region44: #{deepseekv2_decoder_layer.1} parent=11 // pred_fallthru
          _
        // Predicated region
        $region45: #{deepseekv2_decoder_layer.1} parent=11 // pred_check
          %p529 = pneg %p246
        $region46: #{deepseekv2_decoder_layer.1} parent=11 // pred_check_branch
          %531 = sbr.rel (%p529) target = $region48
        $region47: #{deepseekv2_decoder_layer.1} parent=11 // pred_region
          _
        $region48: #{deepseekv2_decoder_layer.1} parent=11 // pred_fallthru
          _
        // Predicated region
        $region49: #{deepseekv2_decoder_layer.1} parent=11 // pred_check
          %p532 = pneg %p267
        $region50: #{deepseekv2_decoder_layer.1} parent=11 // pred_check_branch
          %534 = sbr.rel (%p532) target = $region52
        $region51: #{deepseekv2_decoder_layer.1} parent=11 // pred_region
          _
        $region52: #{deepseekv2_decoder_layer.1} parent=11 // pred_fallthru
          _
        // Predicated region
        $region53: #{deepseekv2_decoder_layer.1} parent=11 // pred_check
          %p535 = pneg %p288
        $region54: #{deepseekv2_decoder_layer.1} parent=11 // pred_check_branch
          %537 = sbr.rel (%p535) target = $region56
        $region55: #{deepseekv2_decoder_layer.1} parent=11 // pred_region
          _
        $region56: #{deepseekv2_decoder_layer.1} parent=11 // pred_fallthru
          _
        // Predicated region
        $region57: #{deepseekv2_decoder_layer.1} parent=11 // pred_check
          %p538 = pneg %p309
        $region58: #{deepseekv2_decoder_layer.1} parent=11 // pred_check_branch
          %540 = sbr.rel (%p538) target = $region60
        $region59: #{deepseekv2_decoder_layer.1} parent=11 // pred_region
          _
        $region60: #{deepseekv2_decoder_layer.1} parent=11 // pred_fallthru
          _
        // Predicated region
        $region61: #{deepseekv2_decoder_layer.1} parent=11 // pred_check
          %p541 = pneg %p330
        $region62: #{deepseekv2_decoder_layer.1} parent=11 // pred_check_branch
          %543 = sbr.rel (%p541) target = $region64
        $region63: #{deepseekv2_decoder_layer.1} parent=11 // pred_region
          _
        $region64: #{deepseekv2_decoder_layer.1} parent=11 // pred_fallthru
          _
        // Predicated region
        $region65: #{deepseekv2_decoder_layer.1} parent=11 // pred_check
          %p544 = pneg %p351
        $region66: #{deepseekv2_decoder_layer.1} parent=11 // pred_check_branch
          %546 = sbr.rel (%p544) target = $region68
        $region67: #{deepseekv2_decoder_layer.1} parent=11 // pred_region
          _
        $region68: #{deepseekv2_decoder_layer.1} parent=11 // pred_fallthru
          _
        // Predicated region
        $region69: #{deepseekv2_decoder_layer.1} parent=11 // pred_check
          %p547 = pneg %p372
        $region70: #{deepseekv2_decoder_layer.1} parent=11 // pred_check_branch
          %549 = sbr.rel (%p547) target = $region72
        $region71: #{deepseekv2_decoder_layer.1} parent=11 // pred_region
          %s551 = ssub.s32 2048, 2048
          %552 = vsyncadd [#allocation6], %s551
          %s553 = sshll.u32 [#allocation5], 4
          %s554 = int_to_ptr.vmem [resolvable:$true] %s553
          %559 = dma.hbm_to_vmem [thread:$0]  %s15, 2048, %s554, [#allocation6], 128, 128, 8
        $region72: #{deepseekv2_decoder_layer.1} parent=11 // pred_fallthru
          _
        // Predicated region
        $region73: #{deepseekv2_decoder_layer.1} parent=11 // pred_check
          %p560 = pneg %p393
        $region74: #{deepseekv2_decoder_layer.1} parent=11 // pred_check_branch
          %562 = sbr.rel (%p560) target = $region76
        $region75: #{deepseekv2_decoder_layer.1} parent=11 // pred_region
          _
        $region76: #{deepseekv2_decoder_layer.1} parent=11 // pred_fallthru
          _
        // Predicated region
        $region77: #{deepseekv2_decoder_layer.1} parent=11 // pred_check
          %p563 = pneg %p414
        $region78: #{deepseekv2_decoder_layer.1} parent=11 // pred_check_branch
          %565 = sbr.rel (%p563) target = $region80
        $region79: #{deepseekv2_decoder_layer.1} parent=11 // pred_region
          _
        $region80: #{deepseekv2_decoder_layer.1} parent=11 // pred_fallthru
          _
        // Predicated region
        $region81: #{deepseekv2_decoder_layer.1} parent=11 // pred_check
          %p566 = pneg %p435
        $region82: #{deepseekv2_decoder_layer.1} parent=11 // pred_check_branch
          %568 = sbr.rel (%p566) target = $region84
        $region83: #{deepseekv2_decoder_layer.1} parent=11 // pred_region
          _
        $region84: #{deepseekv2_decoder_layer.1} parent=11 // pred_fallthru
          _
        // Predicated region
        $region85: #{deepseekv2_decoder_layer.1} parent=11 // pred_check
          %p569 = pneg %p456
        $region86: #{deepseekv2_decoder_layer.1} parent=11 // pred_check_branch
          %571 = sbr.rel (%p569) target = $region88
        $region87: #{deepseekv2_decoder_layer.1} parent=11 // pred_region
          _
        $region88: #{deepseekv2_decoder_layer.1} parent=11 // pred_fallthru
          _
      $region12: #{deepseekv2_decoder_layer.1} parent=5 // pred_fallthru
        _
      %p572 = scmp.lt.s32.totalorder %s31, 2
      // Predicated region
      $region89: #{deepseekv2_decoder_layer.1} parent=5 // pred_check
        %p573 = pneg %p572
      $region90: #{deepseekv2_decoder_layer.1} parent=5 // pred_check_branch
        %575 = sbr.rel (%p573) target = $region92
      $region91: #{deepseekv2_decoder_layer.1} parent=5 // pred_region
        // Predicated region
        $region93: #{deepseekv2_decoder_layer.1} parent=91 // pred_check
          %p576 = pneg %p51
        $region94: #{deepseekv2_decoder_layer.1} parent=91 // pred_check_branch
          %578 = sbr.rel (%p576) target = $region96
        $region95: #{deepseekv2_decoder_layer.1} parent=91 // pred_region
          %p579 = scmp.lt.s32.totalorder %s31, 1
          %s580 = scalar_select %p579, %s31, 1
          %s581 = smul.addr %s580, 2
          %s582 = smul.addr %s581, 8
          %s583 = scalar_lea.vmem %s0, %s582
        $region96: #{deepseekv2_decoder_layer.1} parent=91 // pred_fallthru
          _
      $region92: #{deepseekv2_decoder_layer.1} parent=5 // pred_fallthru
        _
      %p584 = scmp.le.s32.totalorder 1, %s31
      %p585 = scmp.lt.s32.totalorder %s31, 3
      %p586 = pnand %p584, %p585
      %p587 = pneg %p586
      // Predicated region
      $region97: #{deepseekv2_decoder_layer.1} parent=5 // pred_check
        _
      $region98: #{deepseekv2_decoder_layer.1} parent=5 // pred_check_branch
        %589 = sbr.rel (%p586) target = $region100
      $region99: #{deepseekv2_decoder_layer.1} parent=5 // pred_region
        %s590 = ssub.s32 %s31, 1
        // Predicated region
        $region101: #{deepseekv2_decoder_layer.1} parent=99 // pred_check
          %p591 = pneg %p204
        $region102: #{deepseekv2_decoder_layer.1} parent=99 // pred_check_branch
          %593 = sbr.rel (%p591) target = $region104
        $region103: #{deepseekv2_decoder_layer.1} parent=99 // pred_region
          %594 = dma.done [#allocation3], 16
        $region104: #{deepseekv2_decoder_layer.1} parent=99 // pred_fallthru
          _
        // Predicated region
        $region105: #{deepseekv2_decoder_layer.1} parent=99 // pred_check
          %p595 = pneg %p372
        $region106: #{deepseekv2_decoder_layer.1} parent=99 // pred_check_branch
          %597 = sbr.rel (%p595) target = $region108
        $region107: #{deepseekv2_decoder_layer.1} parent=99 // pred_region
          %598 = dma.done [#allocation6], 2048
        $region108: #{deepseekv2_decoder_layer.1} parent=99 // pred_fallthru
          _
        %p599 = scmp.lt.s32.totalorder %s36, 1
        %s600 = scalar_select %p599, %s36, 1
        %s601 = smul.addr %s600, 2
        %s602 = smul.addr %s601, 8
        %s603 = scalar_lea.vmem %s0, %s602
        %p604 = pneg %p57
        %p605 = pneg %p54
        %p606 = pneg %p78
        %p607 = pneg %p75
        %p608 = pneg %p99
        %p609 = pneg %p96
        %p610 = pneg %p120
        %p611 = pneg %p117
        %p612 = pneg %p141
        %p613 = pneg %p138
        %p614 = pneg %p162
        %p615 = pneg %p159
        %p616 = pneg %p183
        %p617 = pneg %p180
        %p618 = pneg %p204
        %p619 = pneg %p201
        %p620 = pneg %p225
        %p621 = pneg %p222
        %p622 = pneg %p246
        %p623 = pneg %p243
        %p624 = pneg %p267
        %p625 = pneg %p264
        %p626 = pneg %p288
        %p627 = pneg %p285
        %p628 = pneg %p309
        %p629 = pneg %p306
        %p630 = pneg %p330
        %p631 = pneg %p327
        %p632 = pneg %p351
        %p633 = pneg %p348
        %p634 = pneg %p372
        %p635 = pneg %p369
        %p636 = pneg %p393
        %p637 = pneg %p390
        %p638 = pneg %p414
        %p639 = pneg %p411
        %p640 = pneg %p435
        %p641 = pneg %p432
        %p642 = pneg %p456
        %p643 = pneg %p453
        %p644 = pneg %p482
        %p645 = pneg %p479
        %s646 = sand.u32 %s469, 1
        %s647 = scalar_lea.sflag [#allocation4], %s646
        %s648 = sand.u32 %s469, 1
        %s649 = smul.addr %s648, 16
        %s650 = scalar_lea.vmem [#allocation7], %s649
        %p651 = scmp.lt.s32.totalorder %s36, 1
        %s652 = scalar_select %p651, %s36, 1
        %s653 = smul.addr %s652, 2
        %s654 = smul.addr %s653, 8
        %s655 = scalar_lea.vmem %s0, %s654
        %v657 = vld [vmem:[%s655] sm:$0xff]
        %v658 = vld [vmem:[%s655 + $0x8] sm:$0xff]
        %v659 = vld [vmem:[%s3] sm:$0x3]
        %v660 = vmul.f32 %v657, %v657
        %v661 = vmul.f32 %v658, %v658
        %v662 = vadd.f32 %v660, %v661
        %663 = vadd.xlane.f32.xlu0 %v662
        %v664 = vpop.xlane.xlu0 %663
        %v665 = vrcp.pop 256.0
        %v666 = vmul.f32 %v664, %v665
        %v667 = vadd.f32 %v666, 1e-06
        %v668 = vrsqrt.pop %v667
        %v669 = vmul.f32 %v657, %v668
        %v670 = vmul.f32 %v658, %v668
        %v672 = vlaneseq
        %v673 = vshrl.u32 %v672, 7
        %v674 = vsub.s32 0, %v673
        %v675 = vrot.slane %v659, %v674
        %v676 = vlaneseq
        %v677 = vshrl.u32 %v676, 7
        %v678 = vsub.s32 1, %v677
        %v679 = vrot.slane %v659, %v678
        %v682 = vmul.f32 %v669, %v675
        %v683 = vmul.f32 %v670, %v679
        %v684 = vld [vmem:[%s4] sm:$0xf]
        %v685 = vld [vmem:[%s4 + $0x4] sm:$0xf]
        %v686 = vld [vmem:[%s4 + $0x8] sm:$0xf]
        %v687 = vld [vmem:[%s4 + $0xc] sm:$0xf]
        %v688 = vld [vmem:[%s4 + $0x10] sm:$0xf]
        %v689 = vld [vmem:[%s4 + $0x14] sm:$0xf]
        %v690 = vld [vmem:[%s4 + $0x18] sm:$0xf]
        %v691 = vld [vmem:[%s4 + $0x1c] sm:$0xf]
        %v692 = vld [vmem:[%s4 + $0x20] sm:$0xf]
        %v693 = vld [vmem:[%s4 + $0x24] sm:$0xf]
        %v694 = vld [vmem:[%s4 + $0x28] sm:$0xf]
        %v695 = vld [vmem:[%s4 + $0x2c] sm:$0xf]
        %v696 = vld [vmem:[%s4 + $0x30] sm:$0xf]
        %v697 = vld [vmem:[%s4 + $0x34] sm:$0xf]
        %v698 = vld [vmem:[%s4 + $0x38] sm:$0xf]
        %v699 = vld [vmem:[%s4 + $0x3c] sm:$0xf]
        %v700 = vld [vmem:[%s4 + $0x40] sm:$0xf]
        %v701 = vld [vmem:[%s4 + $0x44] sm:$0xf]
        %v702 = vld [vmem:[%s4 + $0x48] sm:$0xf]
        %v703 = vld [vmem:[%s4 + $0x4c] sm:$0xf]
        %v704 = vld [vmem:[%s4 + $0x50] sm:$0xf]
        %v705 = vld [vmem:[%s4 + $0x54] sm:$0xf]
        %v706 = vld [vmem:[%s4 + $0x58] sm:$0xf]
        %v707 = vld [vmem:[%s4 + $0x5c] sm:$0xf]
        %v708 = vld [vmem:[%s4 + $0x60] sm:$0xf]
        %v709 = vld [vmem:[%s4 + $0x64] sm:$0xf]
        %v710 = vld [vmem:[%s4 + $0x68] sm:$0xf]
        %v711 = vld [vmem:[%s4 + $0x6c] sm:$0xf]
        %v712 = vld [vmem:[%s4 + $0x70] sm:$0xf]
        %v713 = vld [vmem:[%s4 + $0x74] sm:$0xf]
        %v714 = vld [vmem:[%s4 + $0x78] sm:$0xf]
        %v715 = vld [vmem:[%s4 + $0x7c] sm:$0xf]
        %v716 = vpack.c.bf16 %v682, %v682
        %v717 = vpack.c.bf16 %v683, %v683
        %v750 = vunpack.c.l.b16 %v684
        %v751 = vunpack.c.l.b16 %v685
        %v752 = vunpack.c.l.b16 %v686
        %v753 = vunpack.c.l.b16 %v687
        %v754 = vunpack.c.l.b16 %v688
        %v755 = vunpack.c.l.b16 %v689
        %v756 = vunpack.c.l.b16 %v690
        %v757 = vunpack.c.l.b16 %v691
        %v758 = vunpack.c.l.b16 %v692
        %v759 = vunpack.c.l.b16 %v693
        %v760 = vunpack.c.l.b16 %v694
        %v761 = vunpack.c.l.b16 %v695
        %v762 = vunpack.c.l.b16 %v696
        %v763 = vunpack.c.l.b16 %v697
        %v764 = vunpack.c.l.b16 %v698
        %v765 = vunpack.c.l.b16 %v699
        %v766 = vunpack.c.l.b16 %v700
        %v767 = vunpack.c.l.b16 %v701
        %v768 = vunpack.c.l.b16 %v702
        %v769 = vunpack.c.l.b16 %v703
        %v770 = vunpack.c.l.b16 %v704
        %v771 = vunpack.c.l.b16 %v705
        %v772 = vunpack.c.l.b16 %v706
        %v773 = vunpack.c.l.b16 %v707
        %v774 = vunpack.c.l.b16 %v708
        %v775 = vunpack.c.l.b16 %v709
        %v776 = vunpack.c.l.b16 %v710
        %v777 = vunpack.c.l.b16 %v711
        %v778 = vunpack.c.l.b16 %v712
        %v779 = vunpack.c.l.b16 %v713
        %v780 = vunpack.c.l.b16 %v714
        %v781 = vunpack.c.l.b16 %v715
        %v782 = vpack.c.b16 %v751, %v750
        %v783 = vpack.c.b16 %v753, %v752
        %v784 = vpack.c.b16 %v755, %v754
        %v785 = vpack.c.b16 %v757, %v756
        %v786 = vpack.c.b16 %v759, %v758
        %v787 = vpack.c.b16 %v761, %v760
        %v788 = vpack.c.b16 %v763, %v762
        %v789 = vpack.c.b16 %v765, %v764
        %v790 = vpack.c.b16 %v767, %v766
        %v791 = vpack.c.b16 %v769, %v768
        %v792 = vpack.c.b16 %v771, %v770
        %v793 = vpack.c.b16 %v773, %v772
        %v794 = vpack.c.b16 %v775, %v774
        %v795 = vpack.c.b16 %v777, %v776
        %v796 = vpack.c.b16 %v779, %v778
        %v797 = vpack.c.b16 %v781, %v780
        %814 = vmatprep.subr.bf16.mxu0 0
        %815 = vmatpush1.bf16.msra.mxu0 %v789
        %816 = vmatprep.subr.bf16.mxu0 0
        %817 = vmatpush1.bf16.msra.mxu0 %v788
        %818 = vmatprep.subr.bf16.mxu0 0
        %819 = vmatpush1.bf16.msra.mxu0 %v787
        %820 = vmatprep.subr.bf16.mxu0 0
        %821 = vmatpush1.bf16.msra.mxu0 %v786
        %822 = vmatprep.subr.bf16.mxu0 0
        %823 = vmatpush1.bf16.msra.mxu0 %v785
        %824 = vmatprep.subr.bf16.mxu0 0
        %825 = vmatpush1.bf16.msra.mxu0 %v784
        %826 = vmatprep.subr.bf16.mxu0 0
        %827 = vmatpush1.bf16.msra.mxu0 %v783
        %828 = vmatprep.subr.bf16.mxu0 0
        %829 = vmatpush1.bf16.msra.mxu0 %v782
        %830 = vmatprep.subr.bf16.mxu0 0
        %831 = vmatpush2.bf16.msra.mxu0 %v797
        %832 = vmatprep.subr.bf16.mxu0 0
        %833 = vmatpush2.bf16.msra.mxu0 %v796
        %834 = vmatprep.subr.bf16.mxu0 0
        %835 = vmatpush2.bf16.msra.mxu0 %v795
        %836 = vmatprep.subr.bf16.mxu0 0
        %837 = vmatpush2.bf16.msra.mxu0 %v794
        %838 = vmatprep.subr.bf16.mxu0 0
        %839 = vmatpush2.bf16.msra.mxu0 %v793
        %840 = vmatprep.subr.bf16.mxu0 0
        %841 = vmatpush2.bf16.msra.mxu0 %v792
        %842 = vmatprep.subr.bf16.mxu0 0
        %843 = vmatpush2.bf16.msra.mxu0 %v791
        %844 = vmatprep.subr.bf16.mxu0 0
        %845 = vmatpush2.bf16.msra.mxu0 %v790
        %846 = vmatprep.mubr.bf16.mxu0 %v717
        %847 = vmatmul.mubr.bf16.gmra.mxu0 %v716
        %v848 = vpop.f32.mrf.mxu0
        %v849 = vadd.f32 0.0, %v848
        %v850 = vpop.f32.mrf.mxu0
        %v851 = vpop.f32.mrf.mxu0
        %v852 = vpop.f32.mrf.mxu0
        %853 = vdwg.mxu0
        %v854 = vld [vmem:[%s5] sm:$0x1]
        %v855 = vmul.f32 %v849, %v849
        %vm856 = vcmask 523264
        %v857 = vsel %vm856, %v855, 0.0
        %858 = vadd.xlane.f32.xlu0 %v857
        %v859 = vpop.xlane.xlu0 %858
        %v860 = vrcp.pop 64.0
        %v861 = vmul.f32 %v859, %v860
        %v862 = vadd.f32 %v861, 1e-06
        %v863 = vrsqrt.pop %v862
        %v864 = vmul.f32 %v849, %v863
        %v866 = vlaneseq
        %v867 = vshrl.u32 %v866, 7
        %v868 = vsub.s32 0, %v867
        %v869 = vrot.slane %v854, %v868
        %v871 = vmul.f32 %v864, %v869
        %v872 = vld [vmem:[%s6] sm:$0xf]
        %v873 = vld [vmem:[%s6 + $0x4] sm:$0xf]
        %v874 = vld [vmem:[%s6 + $0x8] sm:$0xf]
        %v875 = vld [vmem:[%s6 + $0xc] sm:$0xf]
        %v876 = vld [vmem:[%s6 + $0x10] sm:$0xf]
        %v877 = vld [vmem:[%s6 + $0x14] sm:$0xf]
        %v878 = vld [vmem:[%s6 + $0x18] sm:$0xf]
        %v879 = vld [vmem:[%s6 + $0x1c] sm:$0xf]
        %v880 = vld [vmem:[%s6 + $0x20] sm:$0xf]
        %v881 = vld [vmem:[%s6 + $0x24] sm:$0xf]
        %v882 = vld [vmem:[%s6 + $0x28] sm:$0xf]
        %v883 = vld [vmem:[%s6 + $0x2c] sm:$0xf]
        %v884 = vld [vmem:[%s6 + $0x30] sm:$0xf]
        %v885 = vld [vmem:[%s6 + $0x34] sm:$0xf]
        %v886 = vld [vmem:[%s6 + $0x38] sm:$0xf]
        %v887 = vld [vmem:[%s6 + $0x3c] sm:$0xf]
        %v888 = vld [vmem:[%s6 + $0x40] sm:$0xf]
        %v889 = vld [vmem:[%s6 + $0x44] sm:$0xf]
        %v890 = vld [vmem:[%s6 + $0x48] sm:$0xf]
        %v891 = vld [vmem:[%s6 + $0x4c] sm:$0xf]
        %v892 = vld [vmem:[%s6 + $0x50] sm:$0xf]
        %v893 = vld [vmem:[%s6 + $0x54] sm:$0xf]
        %v894 = vld [vmem:[%s6 + $0x58] sm:$0xf]
        %v895 = vld [vmem:[%s6 + $0x5c] sm:$0xf]
        %v896 = vld [vmem:[%s6 + $0x60] sm:$0xf]
        %v897 = vld [vmem:[%s6 + $0x64] sm:$0xf]
        %v898 = vld [vmem:[%s6 + $0x68] sm:$0xf]
        %v899 = vld [vmem:[%s6 + $0x6c] sm:$0xf]
        %v900 = vld [vmem:[%s6 + $0x70] sm:$0xf]
        %v901 = vld [vmem:[%s6 + $0x74] sm:$0xf]
        %v902 = vld [vmem:[%s6 + $0x78] sm:$0xf]
        %v903 = vld [vmem:[%s6 + $0x7c] sm:$0xf]
        %v936 = vunpack.c.l.b16 %v872
        %v937 = vunpack.c.l.b16 %v873
        %v938 = vunpack.c.l.b16 %v874
        %v939 = vunpack.c.l.b16 %v875
        %v940 = vunpack.c.l.b16 %v876
        %v941 = vunpack.c.l.b16 %v877
        %v942 = vunpack.c.l.b16 %v878
        %v943 = vunpack.c.l.b16 %v879
        %v944 = vunpack.c.l.b16 %v880
        %v945 = vunpack.c.l.b16 %v881
        %v946 = vunpack.c.l.b16 %v882
        %v947 = vunpack.c.l.b16 %v883
        %v948 = vunpack.c.l.b16 %v884
        %v949 = vunpack.c.l.b16 %v885
        %v950 = vunpack.c.l.b16 %v886
        %v951 = vunpack.c.l.b16 %v887
        %v952 = vunpack.c.l.b16 %v888
        %v953 = vunpack.c.l.b16 %v889
        %v954 = vunpack.c.l.b16 %v890
        %v955 = vunpack.c.l.b16 %v891
        %v956 = vunpack.c.l.b16 %v892
        %v957 = vunpack.c.l.b16 %v893
        %v958 = vunpack.c.l.b16 %v894
        %v959 = vunpack.c.l.b16 %v895
        %v960 = vunpack.c.l.b16 %v896
        %v961 = vunpack.c.l.b16 %v897
        %v962 = vunpack.c.l.b16 %v898
        %v963 = vunpack.c.l.b16 %v899
        %v964 = vunpack.c.l.b16 %v900
        %v965 = vunpack.c.l.b16 %v901
        %v966 = vunpack.c.l.b16 %v902
        %v967 = vunpack.c.l.b16 %v903
        %v968 = vpack.c.b16 %v937, %v936
        %v969 = vpack.c.b16 %v939, %v938
        %v970 = vpack.c.b16 %v941, %v940
        %v971 = vpack.c.b16 %v943, %v942
        %v972 = vpack.c.b16 %v945, %v944
        %v973 = vpack.c.b16 %v947, %v946
        %v974 = vpack.c.b16 %v949, %v948
        %v975 = vpack.c.b16 %v951, %v950
        %v976 = vpack.c.b16 %v953, %v952
        %v977 = vpack.c.b16 %v955, %v954
        %v978 = vpack.c.b16 %v957, %v956
        %v979 = vpack.c.b16 %v959, %v958
        %v980 = vpack.c.b16 %v961, %v960
        %v981 = vpack.c.b16 %v963, %v962
        %v982 = vpack.c.b16 %v965, %v964
        %v983 = vpack.c.b16 %v967, %v966
        %1000 = vmatprep.subr.bf16.mxu0 0
        %1001 = vmatpush1.bf16.msra.mxu0 %v975
        %1002 = vmatprep.subr.bf16.mxu0 0
        %1003 = vmatpush1.bf16.msra.mxu0 %v974
        %1004 = vmatprep.subr.bf16.mxu0 0
        %1005 = vmatpush1.bf16.msra.mxu0 %v973
        %1006 = vmatprep.subr.bf16.mxu0 0
        %1007 = vmatpush1.bf16.msra.mxu0 %v972
        %1008 = vmatprep.subr.bf16.mxu0 0
        %1009 = vmatpush1.bf16.msra.mxu0 %v971
        %1010 = vmatprep.subr.bf16.mxu0 0
        %1011 = vmatpush1.bf16.msra.mxu0 %v970
        %1012 = vmatprep.subr.bf16.mxu0 0
        %1013 = vmatpush1.bf16.msra.mxu0 %v969
        %1014 = vmatprep.subr.bf16.mxu0 0
        %1015 = vmatpush1.bf16.msra.mxu0 %v968
        %1016 = vmatprep.subr.bf16.mxu0 0
        %1017 = vmatpush2.bf16.msra.mxu0 %v983
        %1018 = vmatprep.subr.bf16.mxu0 0
        %1019 = vmatpush2.bf16.msra.mxu0 %v982
        %1020 = vmatprep.subr.bf16.mxu0 0
        %1021 = vmatpush2.bf16.msra.mxu0 %v981
        %1022 = vmatprep.subr.bf16.mxu0 0
        %1023 = vmatpush2.bf16.msra.mxu0 %v980
        %1024 = vmatprep.subr.bf16.mxu0 0
        %1025 = vmatpush2.bf16.msra.mxu0 %v979
        %1026 = vmatprep.subr.bf16.mxu0 0
        %1027 = vmatpush2.bf16.msra.mxu0 %v978
        %1028 = vmatprep.subr.bf16.mxu0 0
        %1029 = vmatpush2.bf16.msra.mxu0 %v977
        %1030 = vmatprep.subr.bf16.mxu0 0
        %1031 = vmatpush2.bf16.msra.mxu0 %v976
        %1032 = vmatprep.mubr.bf16.mxu0 %v717
        %1033 = vmatmul.mubr.bf16.gmra.mxu0 %v716
        %v1034 = vpop.f32.mrf.mxu0
        %v1035 = vadd.f32 0.0, %v1034
        %v1036 = vpop.f32.mrf.mxu0
        %v1037 = vpop.f32.mrf.mxu0
        %v1038 = vpop.f32.mrf.mxu0
        %1039 = vdwg.mxu0
        %v1040 = vld [vmem:[#allocation2] sm:$0x1]
        %v1041 = vmul.f32 %v1035, %v1035
        %v1042 = vsel %vm856, %v1041, 0.0
        %1043 = vadd.xlane.f32.xlu0 %v1042
        %v1044 = vpop.xlane.xlu0 %1043
        %v1045 = vmul.f32 %v1044, %v860
        %v1046 = vadd.f32 %v1045, 1e-06
        %v1047 = vrsqrt.pop %v1046
        %v1048 = vmul.f32 %v1035, %v1047
        %v1050 = vlaneseq
        %v1051 = vshrl.u32 %v1050, 7
        %v1052 = vsub.s32 0, %v1051
        %v1053 = vrot.slane %v1040, %v1052
        %v1055 = vmul.f32 %v1048, %v1053
        %v1056 = vld [vmem:[%s8] sm:$0xf]
        %v1057 = vld [vmem:[%s8 + $0x4] sm:$0xf]
        %v1058 = vld [vmem:[%s8 + $0x8] sm:$0xf]
        %v1059 = vld [vmem:[%s8 + $0xc] sm:$0xf]
        %v1060 = vld [vmem:[%s8 + $0x10] sm:$0xf]
        %v1061 = vld [vmem:[%s8 + $0x14] sm:$0xf]
        %v1062 = vld [vmem:[%s8 + $0x18] sm:$0xf]
        %v1063 = vld [vmem:[%s8 + $0x1c] sm:$0xf]
        %v1064 = vld [vmem:[%s8 + $0x20] sm:$0xf]
        %v1065 = vld [vmem:[%s8 + $0x24] sm:$0xf]
        %v1066 = vld [vmem:[%s8 + $0x28] sm:$0xf]
        %v1067 = vld [vmem:[%s8 + $0x2c] sm:$0xf]
        %v1068 = vld [vmem:[%s8 + $0x30] sm:$0xf]
        %v1069 = vld [vmem:[%s8 + $0x34] sm:$0xf]
        %v1070 = vld [vmem:[%s8 + $0x38] sm:$0xf]
        %v1071 = vld [vmem:[%s8 + $0x3c] sm:$0xf]
        %v1072 = vld [vmem:[%s8 + $0x40] sm:$0xf]
        %v1073 = vld [vmem:[%s8 + $0x44] sm:$0xf]
        %v1074 = vld [vmem:[%s8 + $0x48] sm:$0xf]
        %v1075 = vld [vmem:[%s8 + $0x4c] sm:$0xf]
        %v1076 = vld [vmem:[%s8 + $0x50] sm:$0xf]
        %v1077 = vld [vmem:[%s8 + $0x54] sm:$0xf]
        %v1078 = vld [vmem:[%s8 + $0x58] sm:$0xf]
        %v1079 = vld [vmem:[%s8 + $0x5c] sm:$0xf]
        %v1080 = vld [vmem:[%s8 + $0x60] sm:$0xf]
        %v1081 = vld [vmem:[%s8 + $0x64] sm:$0xf]
        %v1082 = vld [vmem:[%s8 + $0x68] sm:$0xf]
        %v1083 = vld [vmem:[%s8 + $0x6c] sm:$0xf]
        %v1084 = vld [vmem:[%s8 + $0x70] sm:$0xf]
        %v1085 = vld [vmem:[%s8 + $0x74] sm:$0xf]
        %v1086 = vld [vmem:[%s8 + $0x78] sm:$0xf]
        %v1087 = vld [vmem:[%s8 + $0x7c] sm:$0xf]
        %v1120 = vunpack.c.l.b16 %v1056
        %v1121 = vunpack.c.l.b16 %v1057
        %v1122 = vunpack.c.l.b16 %v1058
        %v1123 = vunpack.c.l.b16 %v1059
        %v1124 = vunpack.c.l.b16 %v1060
        %v1125 = vunpack.c.l.b16 %v1061
        %v1126 = vunpack.c.l.b16 %v1062
        %v1127 = vunpack.c.l.b16 %v1063
        %v1128 = vunpack.c.l.b16 %v1064
        %v1129 = vunpack.c.l.b16 %v1065
        %v1130 = vunpack.c.l.b16 %v1066
        %v1131 = vunpack.c.l.b16 %v1067
        %v1132 = vunpack.c.l.b16 %v1068
        %v1133 = vunpack.c.l.b16 %v1069
        %v1134 = vunpack.c.l.b16 %v1070
        %v1135 = vunpack.c.l.b16 %v1071
        %v1136 = vunpack.c.l.b16 %v1072
        %v1137 = vunpack.c.l.b16 %v1073
        %v1138 = vunpack.c.l.b16 %v1074
        %v1139 = vunpack.c.l.b16 %v1075
        %v1140 = vunpack.c.l.b16 %v1076
        %v1141 = vunpack.c.l.b16 %v1077
        %v1142 = vunpack.c.l.b16 %v1078
        %v1143 = vunpack.c.l.b16 %v1079
        %v1144 = vunpack.c.l.b16 %v1080
        %v1145 = vunpack.c.l.b16 %v1081
        %v1146 = vunpack.c.l.b16 %v1082
        %v1147 = vunpack.c.l.b16 %v1083
        %v1148 = vunpack.c.l.b16 %v1084
        %v1149 = vunpack.c.l.b16 %v1085
        %v1150 = vunpack.c.l.b16 %v1086
        %v1151 = vunpack.c.l.b16 %v1087
        %v1152 = vpack.c.b16 %v1121, %v1120
        %v1153 = vpack.c.b16 %v1123, %v1122
        %v1154 = vpack.c.b16 %v1125, %v1124
        %v1155 = vpack.c.b16 %v1127, %v1126
        %v1156 = vpack.c.b16 %v1129, %v1128
        %v1157 = vpack.c.b16 %v1131, %v1130
        %v1158 = vpack.c.b16 %v1133, %v1132
        %v1159 = vpack.c.b16 %v1135, %v1134
        %v1160 = vpack.c.b16 %v1137, %v1136
        %v1161 = vpack.c.b16 %v1139, %v1138
        %v1162 = vpack.c.b16 %v1141, %v1140
        %v1163 = vpack.c.b16 %v1143, %v1142
        %v1164 = vpack.c.b16 %v1145, %v1144
        %v1165 = vpack.c.b16 %v1147, %v1146
        %v1166 = vpack.c.b16 %v1149, %v1148
        %v1167 = vpack.c.b16 %v1151, %v1150
        %1184 = vmatprep.subr.bf16.mxu0 0
        %1185 = vmatpush1.bf16.msra.mxu0 %v1159
        %1186 = vmatprep.subr.bf16.mxu0 0
        %1187 = vmatpush1.bf16.msra.mxu0 %v1158
        %1188 = vmatprep.subr.bf16.mxu0 0
        %1189 = vmatpush1.bf16.msra.mxu0 %v1157
        %1190 = vmatprep.subr.bf16.mxu0 0
        %1191 = vmatpush1.bf16.msra.mxu0 %v1156
        %1192 = vmatprep.subr.bf16.mxu0 0
        %1193 = vmatpush1.bf16.msra.mxu0 %v1155
        %1194 = vmatprep.subr.bf16.mxu0 0
        %1195 = vmatpush1.bf16.msra.mxu0 %v1154
        %1196 = vmatprep.subr.bf16.mxu0 0
        %1197 = vmatpush1.bf16.msra.mxu0 %v1153
        %1198 = vmatprep.subr.bf16.mxu0 0
        %1199 = vmatpush1.bf16.msra.mxu0 %v1152
        %1200 = vmatprep.subr.bf16.mxu0 0
        %1201 = vmatpush2.bf16.msra.mxu0 %v1167
        %1202 = vmatprep.subr.bf16.mxu0 0
        %1203 = vmatpush2.bf16.msra.mxu0 %v1166
        %1204 = vmatprep.subr.bf16.mxu0 0
        %1205 = vmatpush2.bf16.msra.mxu0 %v1165
        %1206 = vmatprep.subr.bf16.mxu0 0
        %1207 = vmatpush2.bf16.msra.mxu0 %v1164
        %1208 = vmatprep.subr.bf16.mxu0 0
        %1209 = vmatpush2.bf16.msra.mxu0 %v1163
        %1210 = vmatprep.subr.bf16.mxu0 0
        %1211 = vmatpush2.bf16.msra.mxu0 %v1162
        %1212 = vmatprep.subr.bf16.mxu0 0
        %1213 = vmatpush2.bf16.msra.mxu0 %v1161
        %1214 = vmatprep.subr.bf16.mxu0 0
        %1215 = vmatpush2.bf16.msra.mxu0 %v1160
        %1216 = vmatprep.mubr.bf16.mxu0 %v717
        %1217 = vmatmul.mubr.bf16.gmra.mxu0 %v716
        %v1218 = vpop.f32.mrf.mxu0
        %v1219 = vadd.f32 0.0, %v1218
        %v1220 = vpop.f32.mrf.mxu0
        %v1221 = vpop.f32.mrf.mxu0
        %v1222 = vpop.f32.mrf.mxu0
        %1223 = vdwg.mxu0
        %v1224 = vld [vmem:[%s9] sm:$0xf]
        %v1225 = vld [vmem:[%s9 + $0x4] sm:$0xf]
        %v1226 = vld [vmem:[%s9 + $0x8] sm:$0xf]
        %v1227 = vld [vmem:[%s9 + $0xc] sm:$0xf]
        %v1228 = vld [vmem:[%s9 + $0x10] sm:$0xf]
        %v1229 = vld [vmem:[%s9 + $0x14] sm:$0xf]
        %v1230 = vld [vmem:[%s9 + $0x18] sm:$0xf]
        %v1231 = vld [vmem:[%s9 + $0x1c] sm:$0xf]
        %v1232 = vld [vmem:[%s9 + $0x20] sm:$0xf]
        %v1233 = vld [vmem:[%s9 + $0x24] sm:$0xf]
        %v1234 = vld [vmem:[%s9 + $0x28] sm:$0xf]
        %v1235 = vld [vmem:[%s9 + $0x2c] sm:$0xf]
        %v1236 = vld [vmem:[%s9 + $0x30] sm:$0xf]
        %v1237 = vld [vmem:[%s9 + $0x34] sm:$0xf]
        %v1238 = vld [vmem:[%s9 + $0x38] sm:$0xf]
        %v1239 = vld [vmem:[%s9 + $0x3c] sm:$0xf]
        %v1240 = vld [vmem:[%s9 + $0x40] sm:$0xf]
        %v1241 = vld [vmem:[%s9 + $0x44] sm:$0xf]
        %v1242 = vld [vmem:[%s9 + $0x48] sm:$0xf]
        %v1243 = vld [vmem:[%s9 + $0x4c] sm:$0xf]
        %v1244 = vld [vmem:[%s9 + $0x50] sm:$0xf]
        %v1245 = vld [vmem:[%s9 + $0x54] sm:$0xf]
        %v1246 = vld [vmem:[%s9 + $0x58] sm:$0xf]
        %v1247 = vld [vmem:[%s9 + $0x5c] sm:$0xf]
        %v1248 = vld [vmem:[%s9 + $0x60] sm:$0xf]
        %v1249 = vld [vmem:[%s9 + $0x64] sm:$0xf]
        %v1250 = vld [vmem:[%s9 + $0x68] sm:$0xf]
        %v1251 = vld [vmem:[%s9 + $0x6c] sm:$0xf]
        %v1252 = vld [vmem:[%s9 + $0x70] sm:$0xf]
        %v1253 = vld [vmem:[%s9 + $0x74] sm:$0xf]
        %v1254 = vld [vmem:[%s9 + $0x78] sm:$0xf]
        %v1255 = vld [vmem:[%s9 + $0x7c] sm:$0xf]
        %v1288 = vunpack.c.l.b16 %v1224
        %v1289 = vunpack.c.l.b16 %v1225
        %v1290 = vunpack.c.l.b16 %v1226
        %v1291 = vunpack.c.l.b16 %v1227
        %v1292 = vunpack.c.l.b16 %v1228
        %v1293 = vunpack.c.l.b16 %v1229
        %v1294 = vunpack.c.l.b16 %v1230
        %v1295 = vunpack.c.l.b16 %v1231
        %v1296 = vunpack.c.l.b16 %v1232
        %v1297 = vunpack.c.l.b16 %v1233
        %v1298 = vunpack.c.l.b16 %v1234
        %v1299 = vunpack.c.l.b16 %v1235
        %v1300 = vunpack.c.l.b16 %v1236
        %v1301 = vunpack.c.l.b16 %v1237
        %v1302 = vunpack.c.l.b16 %v1238
        %v1303 = vunpack.c.l.b16 %v1239
        %v1304 = vunpack.c.l.b16 %v1240
        %v1305 = vunpack.c.l.b16 %v1241
        %v1306 = vunpack.c.l.b16 %v1242
        %v1307 = vunpack.c.l.b16 %v1243
        %v1308 = vunpack.c.l.b16 %v1244
        %v1309 = vunpack.c.l.b16 %v1245
        %v1310 = vunpack.c.l.b16 %v1246
        %v1311 = vunpack.c.l.b16 %v1247
        %v1312 = vunpack.c.l.b16 %v1248
        %v1313 = vunpack.c.l.b16 %v1249
        %v1314 = vunpack.c.l.b16 %v1250
        %v1315 = vunpack.c.l.b16 %v1251
        %v1316 = vunpack.c.l.b16 %v1252
        %v1317 = vunpack.c.l.b16 %v1253
        %v1318 = vunpack.c.l.b16 %v1254
        %v1319 = vunpack.c.l.b16 %v1255
        %v1320 = vpack.c.b16 %v1289, %v1288
        %v1321 = vpack.c.b16 %v1291, %v1290
        %v1322 = vpack.c.b16 %v1293, %v1292
        %v1323 = vpack.c.b16 %v1295, %v1294
        %v1324 = vpack.c.b16 %v1297, %v1296
        %v1325 = vpack.c.b16 %v1299, %v1298
        %v1326 = vpack.c.b16 %v1301, %v1300
        %v1327 = vpack.c.b16 %v1303, %v1302
        %v1328 = vpack.c.b16 %v1305, %v1304
        %v1329 = vpack.c.b16 %v1307, %v1306
        %v1330 = vpack.c.b16 %v1309, %v1308
        %v1331 = vpack.c.b16 %v1311, %v1310
        %v1332 = vpack.c.b16 %v1313, %v1312
        %v1333 = vpack.c.b16 %v1315, %v1314
        %v1334 = vpack.c.b16 %v1317, %v1316
        %v1335 = vpack.c.b16 %v1319, %v1318
        %1352 = vmatprep.subr.bf16.mxu0 0
        %1353 = vmatpush1.bf16.msra.mxu0 %v1327
        %1354 = vmatprep.subr.bf16.mxu0 0
        %1355 = vmatpush1.bf16.msra.mxu0 %v1326
        %1356 = vmatprep.subr.bf16.mxu0 0
        %1357 = vmatpush1.bf16.msra.mxu0 %v1325
        %1358 = vmatprep.subr.bf16.mxu0 0
        %1359 = vmatpush1.bf16.msra.mxu0 %v1324
        %1360 = vmatprep.subr.bf16.mxu0 0
        %1361 = vmatpush1.bf16.msra.mxu0 %v1323
        %1362 = vmatprep.subr.bf16.mxu0 0
        %1363 = vmatpush1.bf16.msra.mxu0 %v1322
        %1364 = vmatprep.subr.bf16.mxu0 0
        %1365 = vmatpush1.bf16.msra.mxu0 %v1321
        %1366 = vmatprep.subr.bf16.mxu0 0
        %1367 = vmatpush1.bf16.msra.mxu0 %v1320
        %1368 = vmatprep.subr.bf16.mxu0 0
        %1369 = vmatpush2.bf16.msra.mxu0 %v1335
        %1370 = vmatprep.subr.bf16.mxu0 0
        %1371 = vmatpush2.bf16.msra.mxu0 %v1334
        %1372 = vmatprep.subr.bf16.mxu0 0
        %1373 = vmatpush2.bf16.msra.mxu0 %v1333
        %1374 = vmatprep.subr.bf16.mxu0 0
        %1375 = vmatpush2.bf16.msra.mxu0 %v1332
        %1376 = vmatprep.subr.bf16.mxu0 0
        %1377 = vmatpush2.bf16.msra.mxu0 %v1331
        %1378 = vmatprep.subr.bf16.mxu0 0
        %1379 = vmatpush2.bf16.msra.mxu0 %v1330
        %1380 = vmatprep.subr.bf16.mxu0 0
        %1381 = vmatpush2.bf16.msra.mxu0 %v1329
        %1382 = vmatprep.subr.bf16.mxu0 0
        %1383 = vmatpush2.bf16.msra.mxu0 %v1328
        %1384 = vmatprep.mubr.bf16.mxu0 %v717
        %1385 = vmatmul.mubr.bf16.gmra.mxu0 %v716
        %v1386 = vpop.f32.mrf.mxu0
        %v1387 = vadd.f32 0.0, %v1386
        %v1388 = vpop.f32.mrf.mxu0
        %v1389 = vpop.f32.mrf.mxu0
        %v1390 = vpop.f32.mrf.mxu0
        %1391 = vdwg.mxu0
        %v1392 = vld [vmem:[%s1] sm:$0xff]
        %v1393 = vld [vmem:[%s2] sm:$0xff]
        %v1394 = vmul.f32 %v1219, %v1392
        %v1395 = vmul.f32 %v1387, %v1393
        %v1396 = vsub.f32 %v1394, %v1395
        %v1397 = vmul.f32 %v1387, %v1392
        %v1398 = vmul.f32 %v1219, %v1393
        %v1399 = vadd.f32 %v1397, %v1398
        %v1400 = vlaneseq
        %v1401 = vshrl.u32 %v1400, 7
        %v1402 = vlaneseq
        %v1403 = vand.u32 %v1402, 127
        %vm1404 = vcmp.le.s32.totalorder %v1403, %v1401
        %v1405 = vld [vmem:[%s10] sm:$0xf]
        %v1406 = vld [vmem:[%s10 + $0x4] sm:$0xf]
        %v1407 = vld [vmem:[%s10 + $0x8] sm:$0xf]
        %v1408 = vld [vmem:[%s10 + $0xc] sm:$0xf]
        %v1409 = vld [vmem:[%s10 + $0x10] sm:$0xf]
        %v1410 = vld [vmem:[%s10 + $0x14] sm:$0xf]
        %v1411 = vld [vmem:[%s10 + $0x18] sm:$0xf]
        %v1412 = vld [vmem:[%s10 + $0x1c] sm:$0xf]
        %v1413 = vpack.c.bf16 %v871, %v871
        %v1422 = vunpack.c.l.b16 %v1405
        %v1423 = vunpack.c.l.b16 %v1406
        %v1424 = vunpack.c.l.b16 %v1407
        %v1425 = vunpack.c.l.b16 %v1408
        %v1426 = vunpack.c.l.b16 %v1409
        %v1427 = vunpack.c.l.b16 %v1410
        %v1428 = vunpack.c.l.b16 %v1411
        %v1429 = vunpack.c.l.b16 %v1412
        %v1430 = vpack.c.b16 %v1423, %v1422
        %v1431 = vpack.c.b16 %v1425, %v1424
        %v1432 = vpack.c.b16 %v1427, %v1426
        %v1433 = vpack.c.b16 %v1429, %v1428
        %v1439 = vsel %vm856, %v1413, 0
        %1441 = vmatprep.subr.bf16.mxu0 0
        %1442 = vmatpush1.bf16.msra.mxu0 0
        %1443 = vmatprep.subr.bf16.mxu0 0
        %1444 = vmatpush1.bf16.msra.mxu0 0
        %1445 = vmatprep.subr.bf16.mxu0 0
        %1446 = vmatpush1.bf16.msra.mxu0 0
        %1447 = vmatprep.subr.bf16.mxu0 0
        %1448 = vmatpush1.bf16.msra.mxu0 0
        %1449 = vmatprep.subr.bf16.mxu0 0
        %1450 = vmatpush1.bf16.msra.mxu0 %v1433
        %1451 = vmatprep.subr.bf16.mxu0 0
        %1452 = vmatpush1.bf16.msra.mxu0 %v1432
        %1453 = vmatprep.subr.bf16.mxu0 0
        %1454 = vmatpush1.bf16.msra.mxu0 %v1431
        %1455 = vmatprep.subr.bf16.mxu0 0
        %1456 = vmatpush1.bf16.msra.mxu0 %v1430
        %1457 = vmatprep.subr.bf16.mxu0 0
        %1458 = vmatpush2.bf16.msra.mxu0 0
        %1459 = vmatprep.subr.bf16.mxu0 0
        %1460 = vmatpush2.bf16.msra.mxu0 0
        %1461 = vmatprep.subr.bf16.mxu0 0
        %1462 = vmatpush2.bf16.msra.mxu0 0
        %1463 = vmatprep.subr.bf16.mxu0 0
        %1464 = vmatpush2.bf16.msra.mxu0 0
        %1465 = vmatprep.subr.bf16.mxu0 0
        %1466 = vmatpush2.bf16.msra.mxu0 0
        %1467 = vmatprep.subr.bf16.mxu0 0
        %1468 = vmatpush2.bf16.msra.mxu0 0
        %1469 = vmatprep.subr.bf16.mxu0 0
        %1470 = vmatpush2.bf16.msra.mxu0 0
        %1471 = vmatprep.subr.bf16.mxu0 0
        %1472 = vmatpush2.bf16.msra.mxu0 0
        %1473 = vmatprep.mubr.bf16.mxu0 0
        %1474 = vmatmul.mubr.bf16.gmra.mxu0 %v1439
        %v1475 = vpop.f32.mrf.mxu0
        %v1476 = vadd.f32 0.0, %v1475
        %v1477 = vpop.f32.mrf.mxu0
        %v1478 = vpop.f32.mrf.mxu0
        %v1479 = vpop.f32.mrf.mxu0
        %1480 = vdwg.mxu0
        %v1481 = vld [vmem:[%s11] sm:$0xf]
        %v1482 = vld [vmem:[%s11 + $0x4] sm:$0xf]
        %v1483 = vld [vmem:[%s11 + $0x8] sm:$0xf]
        %v1484 = vld [vmem:[%s11 + $0xc] sm:$0xf]
        %v1485 = vld [vmem:[%s11 + $0x10] sm:$0xf]
        %v1486 = vld [vmem:[%s11 + $0x14] sm:$0xf]
        %v1487 = vld [vmem:[%s11 + $0x18] sm:$0xf]
        %v1488 = vld [vmem:[%s11 + $0x1c] sm:$0xf]
        %v1497 = vunpack.c.l.b16 %v1481
        %v1498 = vunpack.c.l.b16 %v1482
        %v1499 = vunpack.c.l.b16 %v1483
        %v1500 = vunpack.c.l.b16 %v1484
        %v1501 = vunpack.c.l.b16 %v1485
        %v1502 = vunpack.c.l.b16 %v1486
        %v1503 = vunpack.c.l.b16 %v1487
        %v1504 = vunpack.c.l.b16 %v1488
        %v1505 = vpack.c.b16 %v1498, %v1497
        %v1506 = vpack.c.b16 %v1500, %v1499
        %v1507 = vpack.c.b16 %v1502, %v1501
        %v1508 = vpack.c.b16 %v1504, %v1503
        %1513 = vmatprep.subr.bf16.mxu0 0
        %1514 = vmatpush1.bf16.msra.mxu0 0
        %1515 = vmatprep.subr.bf16.mxu0 0
        %1516 = vmatpush1.bf16.msra.mxu0 0
        %1517 = vmatprep.subr.bf16.mxu0 0
        %1518 = vmatpush1.bf16.msra.mxu0 0
        %1519 = vmatprep.subr.bf16.mxu0 0
        %1520 = vmatpush1.bf16.msra.mxu0 0
        %1521 = vmatprep.subr.bf16.mxu0 0
        %1522 = vmatpush1.bf16.msra.mxu0 %v1508
        %1523 = vmatprep.subr.bf16.mxu0 0
        %1524 = vmatpush1.bf16.msra.mxu0 %v1507
        %1525 = vmatprep.subr.bf16.mxu0 0
        %1526 = vmatpush1.bf16.msra.mxu0 %v1506
        %1527 = vmatprep.subr.bf16.mxu0 0
        %1528 = vmatpush1.bf16.msra.mxu0 %v1505
        %1529 = vmatprep.subr.bf16.mxu0 0
        %1530 = vmatpush2.bf16.msra.mxu0 0
        %1531 = vmatprep.subr.bf16.mxu0 0
        %1532 = vmatpush2.bf16.msra.mxu0 0
        %1533 = vmatprep.subr.bf16.mxu0 0
        %1534 = vmatpush2.bf16.msra.mxu0 0
        %1535 = vmatprep.subr.bf16.mxu0 0
        %1536 = vmatpush2.bf16.msra.mxu0 0
        %1537 = vmatprep.subr.bf16.mxu0 0
        %1538 = vmatpush2.bf16.msra.mxu0 0
        %1539 = vmatprep.subr.bf16.mxu0 0
        %1540 = vmatpush2.bf16.msra.mxu0 0
        %1541 = vmatprep.subr.bf16.mxu0 0
        %1542 = vmatpush2.bf16.msra.mxu0 0
        %1543 = vmatprep.subr.bf16.mxu0 0
        %1544 = vmatpush2.bf16.msra.mxu0 0
        %1545 = vmatprep.mubr.bf16.mxu0 0
        %1546 = vmatmul.mubr.bf16.gmra.mxu0 %v1439
        %v1547 = vpop.f32.mrf.mxu0
        %v1548 = vadd.f32 0.0, %v1547
        %v1549 = vpop.f32.mrf.mxu0
        %v1550 = vpop.f32.mrf.mxu0
        %v1551 = vpop.f32.mrf.mxu0
        %1552 = vdwg.mxu0
        %v1553 = vld [vmem:[%s12] sm:$0xf]
        %v1554 = vld [vmem:[%s12 + $0x4] sm:$0xf]
        %v1555 = vld [vmem:[%s12 + $0x8] sm:$0xf]
        %v1556 = vld [vmem:[%s12 + $0xc] sm:$0xf]
        %v1557 = vld [vmem:[%s12 + $0x10] sm:$0xf]
        %v1558 = vld [vmem:[%s12 + $0x14] sm:$0xf]
        %v1559 = vld [vmem:[%s12 + $0x18] sm:$0xf]
        %v1560 = vld [vmem:[%s12 + $0x1c] sm:$0xf]
        %v1569 = vunpack.c.l.b16 %v1553
        %v1570 = vunpack.c.l.b16 %v1554
        %v1571 = vunpack.c.l.b16 %v1555
        %v1572 = vunpack.c.l.b16 %v1556
        %v1573 = vunpack.c.l.b16 %v1557
        %v1574 = vunpack.c.l.b16 %v1558
        %v1575 = vunpack.c.l.b16 %v1559
        %v1576 = vunpack.c.l.b16 %v1560
        %v1577 = vpack.c.b16 %v1570, %v1569
        %v1578 = vpack.c.b16 %v1572, %v1571
        %v1579 = vpack.c.b16 %v1574, %v1573
        %v1580 = vpack.c.b16 %v1576, %v1575
        %1585 = vmatprep.subr.bf16.mxu0 0
        %1586 = vmatpush1.bf16.msra.mxu0 0
        %1587 = vmatprep.subr.bf16.mxu0 0
        %1588 = vmatpush1.bf16.msra.mxu0 0
        %1589 = vmatprep.subr.bf16.mxu0 0
        %1590 = vmatpush1.bf16.msra.mxu0 0
        %1591 = vmatprep.subr.bf16.mxu0 0
        %1592 = vmatpush1.bf16.msra.mxu0 0
        %1593 = vmatprep.subr.bf16.mxu0 0
        %1594 = vmatpush1.bf16.msra.mxu0 %v1580
        %1595 = vmatprep.subr.bf16.mxu0 0
        %1596 = vmatpush1.bf16.msra.mxu0 %v1579
        %1597 = vmatprep.subr.bf16.mxu0 0
        %1598 = vmatpush1.bf16.msra.mxu0 %v1578
        %1599 = vmatprep.subr.bf16.mxu0 0
        %1600 = vmatpush1.bf16.msra.mxu0 %v1577
        %1601 = vmatprep.subr.bf16.mxu0 0
        %1602 = vmatpush2.bf16.msra.mxu0 0
        %1603 = vmatprep.subr.bf16.mxu0 0
        %1604 = vmatpush2.bf16.msra.mxu0 0
        %1605 = vmatprep.subr.bf16.mxu0 0
        %1606 = vmatpush2.bf16.msra.mxu0 0
        %1607 = vmatprep.subr.bf16.mxu0 0
        %1608 = vmatpush2.bf16.msra.mxu0 0
        %1609 = vmatprep.subr.bf16.mxu0 0
        %1610 = vmatpush2.bf16.msra.mxu0 0
        %1611 = vmatprep.subr.bf16.mxu0 0
        %1612 = vmatpush2.bf16.msra.mxu0 0
        %1613 = vmatprep.subr.bf16.mxu0 0
        %1614 = vmatpush2.bf16.msra.mxu0 0
        %1615 = vmatprep.subr.bf16.mxu0 0
        %1616 = vmatpush2.bf16.msra.mxu0 0
        %1617 = vmatprep.mubr.bf16.mxu0 0
        %1618 = vmatmul.mubr.bf16.gmra.mxu0 %v1439
        %v1619 = vpop.f32.mrf.mxu0
        %v1620 = vadd.f32 0.0, %v1619
        %v1621 = vpop.f32.mrf.mxu0
        %v1622 = vpop.f32.mrf.mxu0
        %v1623 = vpop.f32.mrf.mxu0
        %1624 = vdwg.mxu0
        %v1625 = vmul.f32 %v1548, %v1392
        %v1626 = vmul.f32 %v1620, %v1393
        %v1627 = vsub.f32 %v1625, %v1626
        %v1628 = vmul.f32 %v1620, %v1392
        %v1629 = vmul.f32 %v1548, %v1393
        %v1630 = vadd.f32 %v1628, %v1629
        %v1631 = vld [vmem:[%s13] sm:$0xf]
        %v1632 = vld [vmem:[%s13 + $0x4] sm:$0xf]
        %v1633 = vld [vmem:[%s13 + $0x8] sm:$0xf]
        %v1634 = vld [vmem:[%s13 + $0xc] sm:$0xf]
        %v1635 = vld [vmem:[%s13 + $0x10] sm:$0xf]
        %v1636 = vld [vmem:[%s13 + $0x14] sm:$0xf]
        %v1637 = vld [vmem:[%s13 + $0x18] sm:$0xf]
        %v1638 = vld [vmem:[%s13 + $0x1c] sm:$0xf]
        %v1639 = vpack.c.bf16 %v1055, %v1055
        %v1648 = vunpack.c.l.b16 %v1631
        %v1649 = vunpack.c.l.b16 %v1632
        %v1650 = vunpack.c.l.b16 %v1633
        %v1651 = vunpack.c.l.b16 %v1634
        %v1652 = vunpack.c.l.b16 %v1635
        %v1653 = vunpack.c.l.b16 %v1636
        %v1654 = vunpack.c.l.b16 %v1637
        %v1655 = vunpack.c.l.b16 %v1638
        %v1656 = vpack.c.b16 %v1649, %v1648
        %v1657 = vpack.c.b16 %v1651, %v1650
        %v1658 = vpack.c.b16 %v1653, %v1652
        %v1659 = vpack.c.b16 %v1655, %v1654
        %v1665 = vsel %vm856, %v1639, 0
        %1667 = vmatprep.subr.bf16.mxu0 0
        %1668 = vmatpush1.bf16.msra.mxu0 0
        %1669 = vmatprep.subr.bf16.mxu0 0
        %1670 = vmatpush1.bf16.msra.mxu0 0
        %1671 = vmatprep.subr.bf16.mxu0 0
        %1672 = vmatpush1.bf16.msra.mxu0 0
        %1673 = vmatprep.subr.bf16.mxu0 0
        %1674 = vmatpush1.bf16.msra.mxu0 0
        %1675 = vmatprep.subr.bf16.mxu0 0
        %1676 = vmatpush1.bf16.msra.mxu0 %v1659
        %1677 = vmatprep.subr.bf16.mxu0 0
        %1678 = vmatpush1.bf16.msra.mxu0 %v1658
        %1679 = vmatprep.subr.bf16.mxu0 0
        %1680 = vmatpush1.bf16.msra.mxu0 %v1657
        %1681 = vmatprep.subr.bf16.mxu0 0
        %1682 = vmatpush1.bf16.msra.mxu0 %v1656
        %1683 = vmatprep.subr.bf16.mxu0 0
        %1684 = vmatpush2.bf16.msra.mxu0 0
        %1685 = vmatprep.subr.bf16.mxu0 0
        %1686 = vmatpush2.bf16.msra.mxu0 0
        %1687 = vmatprep.subr.bf16.mxu0 0
        %1688 = vmatpush2.bf16.msra.mxu0 0
        %1689 = vmatprep.subr.bf16.mxu0 0
        %1690 = vmatpush2.bf16.msra.mxu0 0
        %1691 = vmatprep.subr.bf16.mxu0 0
        %1692 = vmatpush2.bf16.msra.mxu0 0
        %1693 = vmatprep.subr.bf16.mxu0 0
        %1694 = vmatpush2.bf16.msra.mxu0 0
        %1695 = vmatprep.subr.bf16.mxu0 0
        %1696 = vmatpush2.bf16.msra.mxu0 0
        %1697 = vmatprep.subr.bf16.mxu0 0
        %1698 = vmatpush2.bf16.msra.mxu0 0
        %1699 = vmatprep.mubr.bf16.mxu0 0
        %1700 = vmatmul.mubr.bf16.gmra.mxu0 %v1665
        %v1701 = vpop.f32.mrf.mxu0
        %v1702 = vadd.f32 0.0, %v1701
        %v1703 = vpop.f32.mrf.mxu0
        %v1704 = vpop.f32.mrf.mxu0
        %v1705 = vpop.f32.mrf.mxu0
        %1706 = vdwg.mxu0
        %v1707 = vld [vmem:[%s14] sm:$0xf]
        %v1708 = vld [vmem:[%s14 + $0x4] sm:$0xf]
        %v1709 = vld [vmem:[%s14 + $0x8] sm:$0xf]
        %v1710 = vld [vmem:[%s14 + $0xc] sm:$0xf]
        %v1711 = vld [vmem:[%s14 + $0x10] sm:$0xf]
        %v1712 = vld [vmem:[%s14 + $0x14] sm:$0xf]
        %v1713 = vld [vmem:[%s14 + $0x18] sm:$0xf]
        %v1714 = vld [vmem:[%s14 + $0x1c] sm:$0xf]
        %v1723 = vunpack.c.l.b16 %v1707
        %v1724 = vunpack.c.l.b16 %v1708
        %v1725 = vunpack.c.l.b16 %v1709
        %v1726 = vunpack.c.l.b16 %v1710
        %v1727 = vunpack.c.l.b16 %v1711
        %v1728 = vunpack.c.l.b16 %v1712
        %v1729 = vunpack.c.l.b16 %v1713
        %v1730 = vunpack.c.l.b16 %v1714
        %v1731 = vpack.c.b16 %v1724, %v1723
        %v1732 = vpack.c.b16 %v1726, %v1725
        %v1733 = vpack.c.b16 %v1728, %v1727
        %v1734 = vpack.c.b16 %v1730, %v1729
        %1739 = vmatprep.subr.bf16.mxu0 0
        %1740 = vmatpush1.bf16.msra.mxu0 0
        %1741 = vmatprep.subr.bf16.mxu0 0
        %1742 = vmatpush1.bf16.msra.mxu0 0
        %1743 = vmatprep.subr.bf16.mxu0 0
        %1744 = vmatpush1.bf16.msra.mxu0 0
        %1745 = vmatprep.subr.bf16.mxu0 0
        %1746 = vmatpush1.bf16.msra.mxu0 0
        %1747 = vmatprep.subr.bf16.mxu0 0
        %1748 = vmatpush1.bf16.msra.mxu0 %v1734
        %1749 = vmatprep.subr.bf16.mxu0 0
        %1750 = vmatpush1.bf16.msra.mxu0 %v1733
        %1751 = vmatprep.subr.bf16.mxu0 0
        %1752 = vmatpush1.bf16.msra.mxu0 %v1732
        %1753 = vmatprep.subr.bf16.mxu0 0
        %1754 = vmatpush1.bf16.msra.mxu0 %v1731
        %1755 = vmatprep.subr.bf16.mxu0 0
        %1756 = vmatpush2.bf16.msra.mxu0 0
        %1757 = vmatprep.subr.bf16.mxu0 0
        %1758 = vmatpush2.bf16.msra.mxu0 0
        %1759 = vmatprep.subr.bf16.mxu0 0
        %1760 = vmatpush2.bf16.msra.mxu0 0
        %1761 = vmatprep.subr.bf16.mxu0 0
        %1762 = vmatpush2.bf16.msra.mxu0 0
        %1763 = vmatprep.subr.bf16.mxu0 0
        %1764 = vmatpush2.bf16.msra.mxu0 0
        %1765 = vmatprep.subr.bf16.mxu0 0
        %1766 = vmatpush2.bf16.msra.mxu0 0
        %1767 = vmatprep.subr.bf16.mxu0 0
        %1768 = vmatpush2.bf16.msra.mxu0 0
        %1769 = vmatprep.subr.bf16.mxu0 0
        %1770 = vmatpush2.bf16.msra.mxu0 0
        %1771 = vmatprep.mubr.bf16.mxu0 0
        %1772 = vmatmul.mubr.bf16.gmra.mxu0 %v1665
        %v1773 = vpop.f32.mrf.mxu0
        %v1774 = vadd.f32 0.0, %v1773
        %v1775 = vpop.f32.mrf.mxu0
        %v1776 = vpop.f32.mrf.mxu0
        %v1777 = vpop.f32.mrf.mxu0
        %1778 = vdwg.mxu0
        %v1779 = vpack.c.bf16 %v1476, %v1476
        %v1780 = vpack.c.bf16 %v1702, %v1702
        %v1781 = vpack.c.bf16 %v1627, %v1627
        %v1782 = vpack.c.bf16 %v1396, %v1396
        %vm1783 = vcmask 64512
        %v1785 = vsel %vm1783, %v1781, 0
        %v1788 = vsel %vm1783, %v1782, 0
        %1790 = vmatprep.subr.bf16.mxu0 0
        %1791 = vmatpush1.bf16.xpose.msra.mxu0 0
        %1792 = vmatprep.subr.bf16.mxu0 0
        %1793 = vmatpush1.bf16.xpose.msra.mxu0 0
        %1794 = vmatprep.subr.bf16.mxu0 0
        %1795 = vmatpush1.bf16.xpose.msra.mxu0 0
        %1796 = vmatprep.subr.bf16.mxu0 0
        %1797 = vmatpush1.bf16.xpose.msra.mxu0 0
        %1798 = vmatprep.subr.bf16.mxu0 0
        %1799 = vmatpush1.bf16.xpose.msra.mxu0 0
        %1800 = vmatprep.subr.bf16.mxu0 0
        %1801 = vmatpush1.bf16.xpose.msra.mxu0 0
        %1802 = vmatprep.subr.bf16.mxu0 0
        %1803 = vmatpush1.bf16.xpose.msra.mxu0 0
        %1804 = vmatprep.subr.bf16.mxu0 0
        %1805 = vmatpush1.bf16.xpose.msra.mxu0 %v1788
        %1806 = vmatprep.subr.bf16.mxu0 0
        %1807 = vmatpush2.bf16.xpose.msra.mxu0 0
        %1808 = vmatprep.subr.bf16.mxu0 0
        %1809 = vmatpush2.bf16.xpose.msra.mxu0 0
        %1810 = vmatprep.subr.bf16.mxu0 0
        %1811 = vmatpush2.bf16.xpose.msra.mxu0 0
        %1812 = vmatprep.subr.bf16.mxu0 0
        %1813 = vmatpush2.bf16.xpose.msra.mxu0 0
        %1814 = vmatprep.subr.bf16.mxu0 0
        %1815 = vmatpush2.bf16.xpose.msra.mxu0 0
        %1816 = vmatprep.subr.bf16.mxu0 0
        %1817 = vmatpush2.bf16.xpose.msra.mxu0 0
        %1818 = vmatprep.subr.bf16.mxu0 0
        %1819 = vmatpush2.bf16.xpose.msra.mxu0 0
        %1820 = vmatprep.subr.bf16.mxu0 0
        %1821 = vmatpush2.bf16.xpose.msra.mxu0 0
        %1822 = vmatprep.mubr.bf16.mxu0 0
        %1823 = vmatmul.mubr.bf16.gmra.mxu0 %v1785
        %v1824 = vpop.f32.mrf.mxu0
        %v1825 = vadd.f32 0.0, %v1824
        %v1826 = vpop.f32.mrf.mxu0
        %v1827 = vpop.f32.mrf.mxu0
        %v1828 = vpop.f32.mrf.mxu0
        %1829 = vdwg.mxu0
        %vm1830 = vcmask 261120
        %v1832 = vsel %vm1830, %v1779, 0
        %v1835 = vsel %vm1830, %v1780, 0
        %1837 = vmatprep.subr.bf16.mxu0 0
        %1838 = vmatpush1.bf16.xpose.msra.mxu0 0
        %1839 = vmatprep.subr.bf16.mxu0 0
        %1840 = vmatpush1.bf16.xpose.msra.mxu0 0
        %1841 = vmatprep.subr.bf16.mxu0 0
        %1842 = vmatpush1.bf16.xpose.msra.mxu0 0
        %1843 = vmatprep.subr.bf16.mxu0 0
        %1844 = vmatpush1.bf16.xpose.msra.mxu0 0
        %1845 = vmatprep.subr.bf16.mxu0 0
        %1846 = vmatpush1.bf16.xpose.msra.mxu0 0
        %1847 = vmatprep.subr.bf16.mxu0 0
        %1848 = vmatpush1.bf16.xpose.msra.mxu0 0
        %1849 = vmatprep.subr.bf16.mxu0 0
        %1850 = vmatpush1.bf16.xpose.msra.mxu0 0
        %1851 = vmatprep.subr.bf16.mxu0 0
        %1852 = vmatpush1.bf16.xpose.msra.mxu0 %v1835
        %1853 = vmatprep.subr.bf16.mxu0 0
        %1854 = vmatpush2.bf16.xpose.msra.mxu0 0
        %1855 = vmatprep.subr.bf16.mxu0 0
        %1856 = vmatpush2.bf16.xpose.msra.mxu0 0
        %1857 = vmatprep.subr.bf16.mxu0 0
        %1858 = vmatpush2.bf16.xpose.msra.mxu0 0
        %1859 = vmatprep.subr.bf16.mxu0 0
        %1860 = vmatpush2.bf16.xpose.msra.mxu0 0
        %1861 = vmatprep.subr.bf16.mxu0 0
        %1862 = vmatpush2.bf16.xpose.msra.mxu0 0
        %1863 = vmatprep.subr.bf16.mxu0 0
        %1864 = vmatpush2.bf16.xpose.msra.mxu0 0
        %1865 = vmatprep.subr.bf16.mxu0 0
        %1866 = vmatpush2.bf16.xpose.msra.mxu0 0
        %1867 = vmatprep.subr.bf16.mxu0 0
        %1868 = vmatpush2.bf16.xpose.msra.mxu0 0
        %1869 = vmatprep.mubr.bf16.mxu0 0
        %1870 = vmatmul.mubr.bf16.gmra.mxu0 %v1832
        %v1871 = vpop.f32.mrf.mxu0
        %v1872 = vadd.f32 %v1825, %v1871
        %v1873 = vpop.f32.mrf.mxu0
        %v1874 = vpop.f32.mrf.mxu0
        %v1875 = vpop.f32.mrf.mxu0
        %1876 = vdwg.mxu0
        %v1877 = vpack.c.bf16 %v1630, %v1630
        %v1878 = vpack.c.bf16 %v1399, %v1399
        %v1880 = vsel %vm1783, %v1877, 0
        %v1883 = vsel %vm1783, %v1878, 0
        %1885 = vmatprep.subr.bf16.mxu0 0
        %1886 = vmatpush1.bf16.xpose.msra.mxu0 0
        %1887 = vmatprep.subr.bf16.mxu0 0
        %1888 = vmatpush1.bf16.xpose.msra.mxu0 0
        %1889 = vmatprep.subr.bf16.mxu0 0
        %1890 = vmatpush1.bf16.xpose.msra.mxu0 0
        %1891 = vmatprep.subr.bf16.mxu0 0
        %1892 = vmatpush1.bf16.xpose.msra.mxu0 0
        %1893 = vmatprep.subr.bf16.mxu0 0
        %1894 = vmatpush1.bf16.xpose.msra.mxu0 0
        %1895 = vmatprep.subr.bf16.mxu0 0
        %1896 = vmatpush1.bf16.xpose.msra.mxu0 0
        %1897 = vmatprep.subr.bf16.mxu0 0
        %1898 = vmatpush1.bf16.xpose.msra.mxu0 0
        %1899 = vmatprep.subr.bf16.mxu0 0
        %1900 = vmatpush1.bf16.xpose.msra.mxu0 %v1883
        %1901 = vmatprep.subr.bf16.mxu0 0
        %1902 = vmatpush2.bf16.xpose.msra.mxu0 0
        %1903 = vmatprep.subr.bf16.mxu0 0
        %1904 = vmatpush2.bf16.xpose.msra.mxu0 0
        %1905 = vmatprep.subr.bf16.mxu0 0
        %1906 = vmatpush2.bf16.xpose.msra.mxu0 0
        %1907 = vmatprep.subr.bf16.mxu0 0
        %1908 = vmatpush2.bf16.xpose.msra.mxu0 0
        %1909 = vmatprep.subr.bf16.mxu0 0
        %1910 = vmatpush2.bf16.xpose.msra.mxu0 0
        %1911 = vmatprep.subr.bf16.mxu0 0
        %1912 = vmatpush2.bf16.xpose.msra.mxu0 0
        %1913 = vmatprep.subr.bf16.mxu0 0
        %1914 = vmatpush2.bf16.xpose.msra.mxu0 0
        %1915 = vmatprep.subr.bf16.mxu0 0
        %1916 = vmatpush2.bf16.xpose.msra.mxu0 0
        %1917 = vmatprep.mubr.bf16.mxu0 0
        %1918 = vmatmul.mubr.bf16.gmra.mxu0 %v1880
        %v1919 = vpop.f32.mrf.mxu0
        %v1920 = vadd.f32 0.0, %v1919
        %v1921 = vpop.f32.mrf.mxu0
        %v1922 = vpop.f32.mrf.mxu0
        %v1923 = vpop.f32.mrf.mxu0
        %1924 = vdwg.mxu0
        %v1925 = vadd.f32 %v1872, %v1920
        %v1926 = vmul.f32 %v1925, 0.14433756
        %v1927 = vsel %vm1404, %v1926, -1e+30
        %v1928 = vsel %vm1783, %v1927, -inf
        %1929 = vmax.xlane.f32.xlu0 %v1928
        %v1930 = vpop.xlane.xlu0 %1929
        %v1931 = vsub.f32 %v1927, %v1930
        %v1932 = vmul.f32 %v1931, 1.442695
        %v1933 = vpow.pop %v1932
        %v1934 = vsel %vm1783, %v1933, 0.0
        %1935 = vadd.xlane.f32.xlu0 %v1934
        %v1936 = vpop.xlane.xlu0 %1935
        %v1937 = vrcp.pop %v1936
        %v1938 = vmul.f32 %v1933, %v1937
        %v1939 = vpack.c.bf16 %v1938, %v1938
        %v1940 = vpack.c.bf16 %v1774, %v1774
        %v1942 = vsel %vm1783, %v1939, 0
        %vm1944 = vcmask 1043456
        %v1946 = vsel %vm1944, %v1940, 0
        %1948 = vmatprep.subr.bf16.mxu0 0
        %1949 = vmatpush1.bf16.msra.mxu0 0
        %1950 = vmatprep.subr.bf16.mxu0 0
        %1951 = vmatpush1.bf16.msra.mxu0 0
        %1952 = vmatprep.subr.bf16.mxu0 0
        %1953 = vmatpush1.bf16.msra.mxu0 0
        %1954 = vmatprep.subr.bf16.mxu0 0
        %1955 = vmatpush1.bf16.msra.mxu0 0
        %1956 = vmatprep.subr.bf16.mxu0 0
        %1957 = vmatpush1.bf16.msra.mxu0 0
        %1958 = vmatprep.subr.bf16.mxu0 0
        %1959 = vmatpush1.bf16.msra.mxu0 0
        %1960 = vmatprep.subr.bf16.mxu0 0
        %1961 = vmatpush1.bf16.msra.mxu0 0
        %1962 = vmatprep.subr.bf16.mxu0 0
        %1963 = vmatpush1.bf16.msra.mxu0 %v1946
        %1964 = vmatprep.subr.bf16.mxu0 0
        %1965 = vmatpush2.bf16.msra.mxu0 0
        %1966 = vmatprep.subr.bf16.mxu0 0
        %1967 = vmatpush2.bf16.msra.mxu0 0
        %1968 = vmatprep.subr.bf16.mxu0 0
        %1969 = vmatpush2.bf16.msra.mxu0 0
        %1970 = vmatprep.subr.bf16.mxu0 0
        %1971 = vmatpush2.bf16.msra.mxu0 0
        %1972 = vmatprep.subr.bf16.mxu0 0
        %1973 = vmatpush2.bf16.msra.mxu0 0
        %1974 = vmatprep.subr.bf16.mxu0 0
        %1975 = vmatpush2.bf16.msra.mxu0 0
        %1976 = vmatprep.subr.bf16.mxu0 0
        %1977 = vmatpush2.bf16.msra.mxu0 0
        %1978 = vmatprep.subr.bf16.mxu0 0
        %1979 = vmatpush2.bf16.msra.mxu0 0
        %1980 = vmatprep.mubr.bf16.mxu0 0
        %1981 = vmatmul.mubr.bf16.gmra.mxu0 %v1942
        %v1982 = vpop.f32.mrf.mxu0
        %v1983 = vadd.f32 0.0, %v1982
        %v1984 = vpop.f32.mrf.mxu0
        %v1985 = vpop.f32.mrf.mxu0
        %v1986 = vpop.f32.mrf.mxu0
        %1987 = vdwg.mxu0
        %v1988 = vld [vmem:[#allocation5] sm:$0xff]
        %v1989 = vld [vmem:[#allocation5 + $0x8] sm:$0xff]
        %v1990 = vld [vmem:[#allocation5 + $0x10] sm:$0xff]
        %v1991 = vld [vmem:[#allocation5 + $0x18] sm:$0xff]
        %v1992 = vpack.c.bf16 %v1983, %v1983
        %v1997 = vunpack.c.l.b16 %v1988
        %v1998 = vunpack.c.h.b16 %v1988
        %v1999 = vunpack.c.l.b16 %v1989
        %v2000 = vunpack.c.h.b16 %v1989
        %v2001 = vunpack.c.l.b16 %v1990
        %v2002 = vunpack.c.h.b16 %v1990
        %v2003 = vunpack.c.l.b16 %v1991
        %v2004 = vunpack.c.h.b16 %v1991
        %v2005 = vpack.c.b16 %v1999, %v1997
        %v2006 = vpack.c.b16 %v2000, %v1998
        %v2007 = vpack.c.b16 %v2003, %v2001
        %v2008 = vpack.c.b16 %v2004, %v2002
        %v2014 = vsel %vm1830, %v1992, 0
        %2016 = vmatprep.subr.bf16.mxu0 0
        %2017 = vmatpush1.bf16.msra.mxu0 0
        %2018 = vmatprep.subr.bf16.mxu0 0
        %2019 = vmatpush1.bf16.msra.mxu0 0
        %2020 = vmatprep.subr.bf16.mxu0 0
        %2021 = vmatpush1.bf16.msra.mxu0 0
        %2022 = vmatprep.subr.bf16.mxu0 0
        %2023 = vmatpush1.bf16.msra.mxu0 0
        %2024 = vmatprep.subr.bf16.mxu0 0
        %2025 = vmatpush1.bf16.msra.mxu0 0
        %2026 = vmatprep.subr.bf16.mxu0 0
        %2027 = vmatpush1.bf16.msra.mxu0 0
        %2028 = vmatprep.subr.bf16.mxu0 %v2008
        %2029 = vmatpush1.bf16.msra.mxu0 %v2007
        %2030 = vmatprep.subr.bf16.mxu0 %v2006
        %2031 = vmatpush1.bf16.msra.mxu0 %v2005
        %2032 = vmatprep.subr.bf16.mxu0 0
        %2033 = vmatpush2.bf16.msra.mxu0 0
        %2034 = vmatprep.subr.bf16.mxu0 0
        %2035 = vmatpush2.bf16.msra.mxu0 0
        %2036 = vmatprep.subr.bf16.mxu0 0
        %2037 = vmatpush2.bf16.msra.mxu0 0
        %2038 = vmatprep.subr.bf16.mxu0 0
        %2039 = vmatpush2.bf16.msra.mxu0 0
        %2040 = vmatprep.subr.bf16.mxu0 0
        %2041 = vmatpush2.bf16.msra.mxu0 0
        %2042 = vmatprep.subr.bf16.mxu0 0
        %2043 = vmatpush2.bf16.msra.mxu0 0
        %2044 = vmatprep.subr.bf16.mxu0 0
        %2045 = vmatpush2.bf16.msra.mxu0 0
        %2046 = vmatprep.subr.bf16.mxu0 0
        %2047 = vmatpush2.bf16.msra.mxu0 0
        %2048 = vmatprep.mubr.bf16.mxu0 0
        %2049 = vmatmul.mubr.bf16.gmra.mxu0 %v2014
        %v2050 = vpop.f32.mrf.mxu0
        %v2051 = vadd.f32 0.0, %v2050
        %v2052 = vpop.f32.mrf.mxu0
        %v2053 = vadd.f32 0.0, %v2052
        %v2054 = vpop.f32.mrf.mxu0
        %v2055 = vpop.f32.mrf.mxu0
        %2056 = vdwg.mxu0
        %v2057 = vadd.f32 %v657, %v2051
        %v2058 = vadd.f32 %v658, %v2053
        %s2059 = scalar_lea.vmem %s10, 32
        %v2060 = vld [vmem:[%s2059] sm:$0xf]
        %v2061 = vld [vmem:[%s2059 + $0x4] sm:$0xf]
        %v2062 = vld [vmem:[%s2059 + $0x8] sm:$0xf]
        %v2063 = vld [vmem:[%s2059 + $0xc] sm:$0xf]
        %v2064 = vld [vmem:[%s2059 + $0x10] sm:$0xf]
        %v2065 = vld [vmem:[%s2059 + $0x14] sm:$0xf]
        %v2066 = vld [vmem:[%s2059 + $0x18] sm:$0xf]
        %v2067 = vld [vmem:[%s2059 + $0x1c] sm:$0xf]
        %v2076 = vunpack.c.l.b16 %v2060
        %v2077 = vunpack.c.l.b16 %v2061
        %v2078 = vunpack.c.l.b16 %v2062
        %v2079 = vunpack.c.l.b16 %v2063
        %v2080 = vunpack.c.l.b16 %v2064
        %v2081 = vunpack.c.l.b16 %v2065
        %v2082 = vunpack.c.l.b16 %v2066
        %v2083 = vunpack.c.l.b16 %v2067
        %v2084 = vpack.c.b16 %v2077, %v2076
        %v2085 = vpack.c.b16 %v2079, %v2078
        %v2086 = vpack.c.b16 %v2081, %v2080
        %v2087 = vpack.c.b16 %v2083, %v2082
        %2092 = vmatprep.subr.bf16.mxu0 0
        %2093 = vmatpush1.bf16.msra.mxu0 0
        %2094 = vmatprep.subr.bf16.mxu0 0
        %2095 = vmatpush1.bf16.msra.mxu0 0
        %2096 = vmatprep.subr.bf16.mxu0 0
        %2097 = vmatpush1.bf16.msra.mxu0 0
        %2098 = vmatprep.subr.bf16.mxu0 0
        %2099 = vmatpush1.bf16.msra.mxu0 0
        %2100 = vmatprep.subr.bf16.mxu0 0
        %2101 = vmatpush1.bf16.msra.mxu0 %v2087
        %2102 = vmatprep.subr.bf16.mxu0 0
        %2103 = vmatpush1.bf16.msra.mxu0 %v2086
        %2104 = vmatprep.subr.bf16.mxu0 0
        %2105 = vmatpush1.bf16.msra.mxu0 %v2085
        %2106 = vmatprep.subr.bf16.mxu0 0
        %2107 = vmatpush1.bf16.msra.mxu0 %v2084
        %2108 = vmatprep.subr.bf16.mxu0 0
        %2109 = vmatpush2.bf16.msra.mxu0 0
        %2110 = vmatprep.subr.bf16.mxu0 0
        %2111 = vmatpush2.bf16.msra.mxu0 0
        %2112 = vmatprep.subr.bf16.mxu0 0
        %2113 = vmatpush2.bf16.msra.mxu0 0
        %2114 = vmatprep.subr.bf16.mxu0 0
        %2115 = vmatpush2.bf16.msra.mxu0 0
        %2116 = vmatprep.subr.bf16.mxu0 0
        %2117 = vmatpush2.bf16.msra.mxu0 0
        %2118 = vmatprep.subr.bf16.mxu0 0
        %2119 = vmatpush2.bf16.msra.mxu0 0
        %2120 = vmatprep.subr.bf16.mxu0 0
        %2121 = vmatpush2.bf16.msra.mxu0 0
        %2122 = vmatprep.subr.bf16.mxu0 0
        %2123 = vmatpush2.bf16.msra.mxu0 0
        %2124 = vmatprep.mubr.bf16.mxu0 0
        %2125 = vmatmul.mubr.bf16.gmra.mxu0 %v1439
        %v2126 = vpop.f32.mrf.mxu0
        %v2127 = vadd.f32 0.0, %v2126
        %v2128 = vpop.f32.mrf.mxu0
        %v2129 = vpop.f32.mrf.mxu0
        %v2130 = vpop.f32.mrf.mxu0
        %2131 = vdwg.mxu0
        %s2132 = scalar_lea.vmem %s11, 32
        %v2133 = vld [vmem:[%s2132] sm:$0xf]
        %v2134 = vld [vmem:[%s2132 + $0x4] sm:$0xf]
        %v2135 = vld [vmem:[%s2132 + $0x8] sm:$0xf]
        %v2136 = vld [vmem:[%s2132 + $0xc] sm:$0xf]
        %v2137 = vld [vmem:[%s2132 + $0x10] sm:$0xf]
        %v2138 = vld [vmem:[%s2132 + $0x14] sm:$0xf]
        %v2139 = vld [vmem:[%s2132 + $0x18] sm:$0xf]
        %v2140 = vld [vmem:[%s2132 + $0x1c] sm:$0xf]
        %v2149 = vunpack.c.l.b16 %v2133
        %v2150 = vunpack.c.l.b16 %v2134
        %v2151 = vunpack.c.l.b16 %v2135
        %v2152 = vunpack.c.l.b16 %v2136
        %v2153 = vunpack.c.l.b16 %v2137
        %v2154 = vunpack.c.l.b16 %v2138
        %v2155 = vunpack.c.l.b16 %v2139
        %v2156 = vunpack.c.l.b16 %v2140
        %v2157 = vpack.c.b16 %v2150, %v2149
        %v2158 = vpack.c.b16 %v2152, %v2151
        %v2159 = vpack.c.b16 %v2154, %v2153
        %v2160 = vpack.c.b16 %v2156, %v2155
        %2165 = vmatprep.subr.bf16.mxu0 0
        %2166 = vmatpush1.bf16.msra.mxu0 0
        %2167 = vmatprep.subr.bf16.mxu0 0
        %2168 = vmatpush1.bf16.msra.mxu0 0
        %2169 = vmatprep.subr.bf16.mxu0 0
        %2170 = vmatpush1.bf16.msra.mxu0 0
        %2171 = vmatprep.subr.bf16.mxu0 0
        %2172 = vmatpush1.bf16.msra.mxu0 0
        %2173 = vmatprep.subr.bf16.mxu0 0
        %2174 = vmatpush1.bf16.msra.mxu0 %v2160
        %2175 = vmatprep.subr.bf16.mxu0 0
        %2176 = vmatpush1.bf16.msra.mxu0 %v2159
        %2177 = vmatprep.subr.bf16.mxu0 0
        %2178 = vmatpush1.bf16.msra.mxu0 %v2158
        %2179 = vmatprep.subr.bf16.mxu0 0
        %2180 = vmatpush1.bf16.msra.mxu0 %v2157
        %2181 = vmatprep.subr.bf16.mxu0 0
        %2182 = vmatpush2.bf16.msra.mxu0 0
        %2183 = vmatprep.subr.bf16.mxu0 0
        %2184 = vmatpush2.bf16.msra.mxu0 0
        %2185 = vmatprep.subr.bf16.mxu0 0
        %2186 = vmatpush2.bf16.msra.mxu0 0
        %2187 = vmatprep.subr.bf16.mxu0 0
        %2188 = vmatpush2.bf16.msra.mxu0 0
        %2189 = vmatprep.subr.bf16.mxu0 0
        %2190 = vmatpush2.bf16.msra.mxu0 0
        %2191 = vmatprep.subr.bf16.mxu0 0
        %2192 = vmatpush2.bf16.msra.mxu0 0
        %2193 = vmatprep.subr.bf16.mxu0 0
        %2194 = vmatpush2.bf16.msra.mxu0 0
        %2195 = vmatprep.subr.bf16.mxu0 0
        %2196 = vmatpush2.bf16.msra.mxu0 0
        %2197 = vmatprep.mubr.bf16.mxu0 0
        %2198 = vmatmul.mubr.bf16.gmra.mxu0 %v1439
        %v2199 = vpop.f32.mrf.mxu0
        %v2200 = vadd.f32 0.0, %v2199
        %v2201 = vpop.f32.mrf.mxu0
        %v2202 = vpop.f32.mrf.mxu0
        %v2203 = vpop.f32.mrf.mxu0
        %2204 = vdwg.mxu0
        %s2205 = scalar_lea.vmem %s12, 32
        %v2206 = vld [vmem:[%s2205] sm:$0xf]
        %v2207 = vld [vmem:[%s2205 + $0x4] sm:$0xf]
        %v2208 = vld [vmem:[%s2205 + $0x8] sm:$0xf]
        %v2209 = vld [vmem:[%s2205 + $0xc] sm:$0xf]
        %v2210 = vld [vmem:[%s2205 + $0x10] sm:$0xf]
        %v2211 = vld [vmem:[%s2205 + $0x14] sm:$0xf]
        %v2212 = vld [vmem:[%s2205 + $0x18] sm:$0xf]
        %v2213 = vld [vmem:[%s2205 + $0x1c] sm:$0xf]
        %v2222 = vunpack.c.l.b16 %v2206
        %v2223 = vunpack.c.l.b16 %v2207
        %v2224 = vunpack.c.l.b16 %v2208
        %v2225 = vunpack.c.l.b16 %v2209
        %v2226 = vunpack.c.l.b16 %v2210
        %v2227 = vunpack.c.l.b16 %v2211
        %v2228 = vunpack.c.l.b16 %v2212
        %v2229 = vunpack.c.l.b16 %v2213
        %v2230 = vpack.c.b16 %v2223, %v2222
        %v2231 = vpack.c.b16 %v2225, %v2224
        %v2232 = vpack.c.b16 %v2227, %v2226
        %v2233 = vpack.c.b16 %v2229, %v2228
        %2238 = vmatprep.subr.bf16.mxu0 0
        %2239 = vmatpush1.bf16.msra.mxu0 0
        %2240 = vmatprep.subr.bf16.mxu0 0
        %2241 = vmatpush1.bf16.msra.mxu0 0
        %2242 = vmatprep.subr.bf16.mxu0 0
        %2243 = vmatpush1.bf16.msra.mxu0 0
        %2244 = vmatprep.subr.bf16.mxu0 0
        %2245 = vmatpush1.bf16.msra.mxu0 0
        %2246 = vmatprep.subr.bf16.mxu0 0
        %2247 = vmatpush1.bf16.msra.mxu0 %v2233
        %2248 = vmatprep.subr.bf16.mxu0 0
        %2249 = vmatpush1.bf16.msra.mxu0 %v2232
        %2250 = vmatprep.subr.bf16.mxu0 0
        %2251 = vmatpush1.bf16.msra.mxu0 %v2231
        %2252 = vmatprep.subr.bf16.mxu0 0
        %2253 = vmatpush1.bf16.msra.mxu0 %v2230
        %2254 = vmatprep.subr.bf16.mxu0 0
        %2255 = vmatpush2.bf16.msra.mxu0 0
        %2256 = vmatprep.subr.bf16.mxu0 0
        %2257 = vmatpush2.bf16.msra.mxu0 0
        %2258 = vmatprep.subr.bf16.mxu0 0
        %2259 = vmatpush2.bf16.msra.mxu0 0
        %2260 = vmatprep.subr.bf16.mxu0 0
        %2261 = vmatpush2.bf16.msra.mxu0 0
        %2262 = vmatprep.subr.bf16.mxu0 0
        %2263 = vmatpush2.bf16.msra.mxu0 0
        %2264 = vmatprep.subr.bf16.mxu0 0
        %2265 = vmatpush2.bf16.msra.mxu0 0
        %2266 = vmatprep.subr.bf16.mxu0 0
        %2267 = vmatpush2.bf16.msra.mxu0 0
        %2268 = vmatprep.subr.bf16.mxu0 0
        %2269 = vmatpush2.bf16.msra.mxu0 0
        %2270 = vmatprep.mubr.bf16.mxu0 0
        %2271 = vmatmul.mubr.bf16.gmra.mxu0 %v1439
        %v2272 = vpop.f32.mrf.mxu0
        %v2273 = vadd.f32 0.0, %v2272
        %v2274 = vpop.f32.mrf.mxu0
        %v2275 = vpop.f32.mrf.mxu0
        %v2276 = vpop.f32.mrf.mxu0
        %2277 = vdwg.mxu0
        %v2278 = vmul.f32 %v2200, %v1392
        %v2279 = vmul.f32 %v2273, %v1393
        %v2280 = vsub.f32 %v2278, %v2279
        %v2281 = vmul.f32 %v2273, %v1392
        %v2282 = vmul.f32 %v2200, %v1393
        %v2283 = vadd.f32 %v2281, %v2282
        %s2284 = scalar_lea.vmem %s13, 32
        %v2285 = vld [vmem:[%s2284] sm:$0xf]
        %v2286 = vld [vmem:[%s2284 + $0x4] sm:$0xf]
        %v2287 = vld [vmem:[%s2284 + $0x8] sm:$0xf]
        %v2288 = vld [vmem:[%s2284 + $0xc] sm:$0xf]
        %v2289 = vld [vmem:[%s2284 + $0x10] sm:$0xf]
        %v2290 = vld [vmem:[%s2284 + $0x14] sm:$0xf]
        %v2291 = vld [vmem:[%s2284 + $0x18] sm:$0xf]
        %v2292 = vld [vmem:[%s2284 + $0x1c] sm:$0xf]
        %v2301 = vunpack.c.l.b16 %v2285
        %v2302 = vunpack.c.l.b16 %v2286
        %v2303 = vunpack.c.l.b16 %v2287
        %v2304 = vunpack.c.l.b16 %v2288
        %v2305 = vunpack.c.l.b16 %v2289
        %v2306 = vunpack.c.l.b16 %v2290
        %v2307 = vunpack.c.l.b16 %v2291
        %v2308 = vunpack.c.l.b16 %v2292
        %v2309 = vpack.c.b16 %v2302, %v2301
        %v2310 = vpack.c.b16 %v2304, %v2303
        %v2311 = vpack.c.b16 %v2306, %v2305
        %v2312 = vpack.c.b16 %v2308, %v2307
        %2317 = vmatprep.subr.bf16.mxu0 0
        %2318 = vmatpush1.bf16.msra.mxu0 0
        %2319 = vmatprep.subr.bf16.mxu0 0
        %2320 = vmatpush1.bf16.msra.mxu0 0
        %2321 = vmatprep.subr.bf16.mxu0 0
        %2322 = vmatpush1.bf16.msra.mxu0 0
        %2323 = vmatprep.subr.bf16.mxu0 0
        %2324 = vmatpush1.bf16.msra.mxu0 0
        %2325 = vmatprep.subr.bf16.mxu0 0
        %2326 = vmatpush1.bf16.msra.mxu0 %v2312
        %2327 = vmatprep.subr.bf16.mxu0 0
        %2328 = vmatpush1.bf16.msra.mxu0 %v2311
        %2329 = vmatprep.subr.bf16.mxu0 0
        %2330 = vmatpush1.bf16.msra.mxu0 %v2310
        %2331 = vmatprep.subr.bf16.mxu0 0
        %2332 = vmatpush1.bf16.msra.mxu0 %v2309
        %2333 = vmatprep.subr.bf16.mxu0 0
        %2334 = vmatpush2.bf16.msra.mxu0 0
        %2335 = vmatprep.subr.bf16.mxu0 0
        %2336 = vmatpush2.bf16.msra.mxu0 0
        %2337 = vmatprep.subr.bf16.mxu0 0
        %2338 = vmatpush2.bf16.msra.mxu0 0
        %2339 = vmatprep.subr.bf16.mxu0 0
        %2340 = vmatpush2.bf16.msra.mxu0 0
        %2341 = vmatprep.subr.bf16.mxu0 0
        %2342 = vmatpush2.bf16.msra.mxu0 0
        %2343 = vmatprep.subr.bf16.mxu0 0
        %2344 = vmatpush2.bf16.msra.mxu0 0
        %2345 = vmatprep.subr.bf16.mxu0 0
        %2346 = vmatpush2.bf16.msra.mxu0 0
        %2347 = vmatprep.subr.bf16.mxu0 0
        %2348 = vmatpush2.bf16.msra.mxu0 0
        %2349 = vmatprep.mubr.bf16.mxu0 0
        %2350 = vmatmul.mubr.bf16.gmra.mxu0 %v1665
        %v2351 = vpop.f32.mrf.mxu0
        %v2352 = vadd.f32 0.0, %v2351
        %v2353 = vpop.f32.mrf.mxu0
        %v2354 = vpop.f32.mrf.mxu0
        %v2355 = vpop.f32.mrf.mxu0
        %2356 = vdwg.mxu0
        %s2357 = scalar_lea.vmem %s14, 32
        %v2358 = vld [vmem:[%s2357] sm:$0xf]
        %v2359 = vld [vmem:[%s2357 + $0x4] sm:$0xf]
        %v2360 = vld [vmem:[%s2357 + $0x8] sm:$0xf]
        %v2361 = vld [vmem:[%s2357 + $0xc] sm:$0xf]
        %v2362 = vld [vmem:[%s2357 + $0x10] sm:$0xf]
        %v2363 = vld [vmem:[%s2357 + $0x14] sm:$0xf]
        %v2364 = vld [vmem:[%s2357 + $0x18] sm:$0xf]
        %v2365 = vld [vmem:[%s2357 + $0x1c] sm:$0xf]
        %v2374 = vunpack.c.l.b16 %v2358
        %v2375 = vunpack.c.l.b16 %v2359
        %v2376 = vunpack.c.l.b16 %v2360
        %v2377 = vunpack.c.l.b16 %v2361
        %v2378 = vunpack.c.l.b16 %v2362
        %v2379 = vunpack.c.l.b16 %v2363
        %v2380 = vunpack.c.l.b16 %v2364
        %v2381 = vunpack.c.l.b16 %v2365
        %v2382 = vpack.c.b16 %v2375, %v2374
        %v2383 = vpack.c.b16 %v2377, %v2376
        %v2384 = vpack.c.b16 %v2379, %v2378
        %v2385 = vpack.c.b16 %v2381, %v2380
        %2390 = vmatprep.subr.bf16.mxu0 0
        %2391 = vmatpush1.bf16.msra.mxu0 0
        %2392 = vmatprep.subr.bf16.mxu0 0
        %2393 = vmatpush1.bf16.msra.mxu0 0
        %2394 = vmatprep.subr.bf16.mxu0 0
        %2395 = vmatpush1.bf16.msra.mxu0 0
        %2396 = vmatprep.subr.bf16.mxu0 0
        %2397 = vmatpush1.bf16.msra.mxu0 0
        %2398 = vmatprep.subr.bf16.mxu0 0
        %2399 = vmatpush1.bf16.msra.mxu0 %v2385
        %2400 = vmatprep.subr.bf16.mxu0 0
        %2401 = vmatpush1.bf16.msra.mxu0 %v2384
        %2402 = vmatprep.subr.bf16.mxu0 0
        %2403 = vmatpush1.bf16.msra.mxu0 %v2383
        %2404 = vmatprep.subr.bf16.mxu0 0
        %2405 = vmatpush1.bf16.msra.mxu0 %v2382
        %2406 = vmatprep.subr.bf16.mxu0 0
        %2407 = vmatpush2.bf16.msra.mxu0 0
        %2408 = vmatprep.subr.bf16.mxu0 0
        %2409 = vmatpush2.bf16.msra.mxu0 0
        %2410 = vmatprep.subr.bf16.mxu0 0
        %2411 = vmatpush2.bf16.msra.mxu0 0
        %2412 = vmatprep.subr.bf16.mxu0 0
        %2413 = vmatpush2.bf16.msra.mxu0 0
        %2414 = vmatprep.subr.bf16.mxu0 0
        %2415 = vmatpush2.bf16.msra.mxu0 0
        %2416 = vmatprep.subr.bf16.mxu0 0
        %2417 = vmatpush2.bf16.msra.mxu0 0
        %2418 = vmatprep.subr.bf16.mxu0 0
        %2419 = vmatpush2.bf16.msra.mxu0 0
        %2420 = vmatprep.subr.bf16.mxu0 0
        %2421 = vmatpush2.bf16.msra.mxu0 0
        %2422 = vmatprep.mubr.bf16.mxu0 0
        %2423 = vmatmul.mubr.bf16.gmra.mxu0 %v1665
        %v2424 = vpop.f32.mrf.mxu0
        %v2425 = vadd.f32 0.0, %v2424
        %v2426 = vpop.f32.mrf.mxu0
        %v2427 = vpop.f32.mrf.mxu0
        %v2428 = vpop.f32.mrf.mxu0
        %2429 = vdwg.mxu0
        %v2430 = vpack.c.bf16 %v2127, %v2127
        %v2431 = vpack.c.bf16 %v2352, %v2352
        %v2432 = vpack.c.bf16 %v2280, %v2280
        %v2434 = vsel %vm1783, %v2432, 0
        %2436 = vmatprep.subr.bf16.mxu0 0
        %2437 = vmatpush1.bf16.xpose.msra.mxu0 0
        %2438 = vmatprep.subr.bf16.mxu0 0
        %2439 = vmatpush1.bf16.xpose.msra.mxu0 0
        %2440 = vmatprep.subr.bf16.mxu0 0
        %2441 = vmatpush1.bf16.xpose.msra.mxu0 0
        %2442 = vmatprep.subr.bf16.mxu0 0
        %2443 = vmatpush1.bf16.xpose.msra.mxu0 0
        %2444 = vmatprep.subr.bf16.mxu0 0
        %2445 = vmatpush1.bf16.xpose.msra.mxu0 0
        %2446 = vmatprep.subr.bf16.mxu0 0
        %2447 = vmatpush1.bf16.xpose.msra.mxu0 0
        %2448 = vmatprep.subr.bf16.mxu0 0
        %2449 = vmatpush1.bf16.xpose.msra.mxu0 0
        %2450 = vmatprep.subr.bf16.mxu0 0
        %2451 = vmatpush1.bf16.xpose.msra.mxu0 %v1788
        %2452 = vmatprep.subr.bf16.mxu0 0
        %2453 = vmatpush2.bf16.xpose.msra.mxu0 0
        %2454 = vmatprep.subr.bf16.mxu0 0
        %2455 = vmatpush2.bf16.xpose.msra.mxu0 0
        %2456 = vmatprep.subr.bf16.mxu0 0
        %2457 = vmatpush2.bf16.xpose.msra.mxu0 0
        %2458 = vmatprep.subr.bf16.mxu0 0
        %2459 = vmatpush2.bf16.xpose.msra.mxu0 0
        %2460 = vmatprep.subr.bf16.mxu0 0
        %2461 = vmatpush2.bf16.xpose.msra.mxu0 0
        %2462 = vmatprep.subr.bf16.mxu0 0
        %2463 = vmatpush2.bf16.xpose.msra.mxu0 0
        %2464 = vmatprep.subr.bf16.mxu0 0
        %2465 = vmatpush2.bf16.xpose.msra.mxu0 0
        %2466 = vmatprep.subr.bf16.mxu0 0
        %2467 = vmatpush2.bf16.xpose.msra.mxu0 0
        %2468 = vmatprep.mubr.bf16.mxu0 0
        %2469 = vmatmul.mubr.bf16.gmra.mxu0 %v2434
        %v2470 = vpop.f32.mrf.mxu0
        %v2471 = vadd.f32 0.0, %v2470
        %v2472 = vpop.f32.mrf.mxu0
        %v2473 = vpop.f32.mrf.mxu0
        %v2474 = vpop.f32.mrf.mxu0
        %2475 = vdwg.mxu0
        %v2477 = vsel %vm1830, %v2430, 0
        %v2480 = vsel %vm1830, %v2431, 0
        %2482 = vmatprep.subr.bf16.mxu0 0
        %2483 = vmatpush1.bf16.xpose.msra.mxu0 0
        %2484 = vmatprep.subr.bf16.mxu0 0
        %2485 = vmatpush1.bf16.xpose.msra.mxu0 0
        %2486 = vmatprep.subr.bf16.mxu0 0
        %2487 = vmatpush1.bf16.xpose.msra.mxu0 0
        %2488 = vmatprep.subr.bf16.mxu0 0
        %2489 = vmatpush1.bf16.xpose.msra.mxu0 0
        %2490 = vmatprep.subr.bf16.mxu0 0
        %2491 = vmatpush1.bf16.xpose.msra.mxu0 0
        %2492 = vmatprep.subr.bf16.mxu0 0
        %2493 = vmatpush1.bf16.xpose.msra.mxu0 0
        %2494 = vmatprep.subr.bf16.mxu0 0
        %2495 = vmatpush1.bf16.xpose.msra.mxu0 0
        %2496 = vmatprep.subr.bf16.mxu0 0
        %2497 = vmatpush1.bf16.xpose.msra.mxu0 %v2480
        %2498 = vmatprep.subr.bf16.mxu0 0
        %2499 = vmatpush2.bf16.xpose.msra.mxu0 0
        %2500 = vmatprep.subr.bf16.mxu0 0
        %2501 = vmatpush2.bf16.xpose.msra.mxu0 0
        %2502 = vmatprep.subr.bf16.mxu0 0
        %2503 = vmatpush2.bf16.xpose.msra.mxu0 0
        %2504 = vmatprep.subr.bf16.mxu0 0
        %2505 = vmatpush2.bf16.xpose.msra.mxu0 0
        %2506 = vmatprep.subr.bf16.mxu0 0
        %2507 = vmatpush2.bf16.xpose.msra.mxu0 0
        %2508 = vmatprep.subr.bf16.mxu0 0
        %2509 = vmatpush2.bf16.xpose.msra.mxu0 0
        %2510 = vmatprep.subr.bf16.mxu0 0
        %2511 = vmatpush2.bf16.xpose.msra.mxu0 0
        %2512 = vmatprep.subr.bf16.mxu0 0
        %2513 = vmatpush2.bf16.xpose.msra.mxu0 0
        %2514 = vmatprep.mubr.bf16.mxu0 0
        %2515 = vmatmul.mubr.bf16.gmra.mxu0 %v2477
        %v2516 = vpop.f32.mrf.mxu0
        %v2517 = vadd.f32 %v2471, %v2516
        %v2518 = vpop.f32.mrf.mxu0
        %v2519 = vpop.f32.mrf.mxu0
        %v2520 = vpop.f32.mrf.mxu0
        %2521 = vdwg.mxu0
        %v2522 = vpack.c.bf16 %v2283, %v2283
        %v2524 = vsel %vm1783, %v2522, 0
        %2526 = vmatprep.subr.bf16.mxu0 0
        %2527 = vmatpush1.bf16.xpose.msra.mxu0 0
        %2528 = vmatprep.subr.bf16.mxu0 0
        %2529 = vmatpush1.bf16.xpose.msra.mxu0 0
        %2530 = vmatprep.subr.bf16.mxu0 0
        %2531 = vmatpush1.bf16.xpose.msra.mxu0 0
        %2532 = vmatprep.subr.bf16.mxu0 0
        %2533 = vmatpush1.bf16.xpose.msra.mxu0 0
        %2534 = vmatprep.subr.bf16.mxu0 0
        %2535 = vmatpush1.bf16.xpose.msra.mxu0 0
        %2536 = vmatprep.subr.bf16.mxu0 0
        %2537 = vmatpush1.bf16.xpose.msra.mxu0 0
        %2538 = vmatprep.subr.bf16.mxu0 0
        %2539 = vmatpush1.bf16.xpose.msra.mxu0 0
        %2540 = vmatprep.subr.bf16.mxu0 0
        %2541 = vmatpush1.bf16.xpose.msra.mxu0 %v1883
        %2542 = vmatprep.subr.bf16.mxu0 0
        %2543 = vmatpush2.bf16.xpose.msra.mxu0 0
        %2544 = vmatprep.subr.bf16.mxu0 0
        %2545 = vmatpush2.bf16.xpose.msra.mxu0 0
        %2546 = vmatprep.subr.bf16.mxu0 0
        %2547 = vmatpush2.bf16.xpose.msra.mxu0 0
        %2548 = vmatprep.subr.bf16.mxu0 0
        %2549 = vmatpush2.bf16.xpose.msra.mxu0 0
        %2550 = vmatprep.subr.bf16.mxu0 0
        %2551 = vmatpush2.bf16.xpose.msra.mxu0 0
        %2552 = vmatprep.subr.bf16.mxu0 0
        %2553 = vmatpush2.bf16.xpose.msra.mxu0 0
        %2554 = vmatprep.subr.bf16.mxu0 0
        %2555 = vmatpush2.bf16.xpose.msra.mxu0 0
        %2556 = vmatprep.subr.bf16.mxu0 0
        %2557 = vmatpush2.bf16.xpose.msra.mxu0 0
        %2558 = vmatprep.mubr.bf16.mxu0 0
        %2559 = vmatmul.mubr.bf16.gmra.mxu0 %v2524
        %v2560 = vpop.f32.mrf.mxu0
        %v2561 = vadd.f32 0.0, %v2560
        %v2562 = vpop.f32.mrf.mxu0
        %v2563 = vpop.f32.mrf.mxu0
        %v2564 = vpop.f32.mrf.mxu0
        %2565 = vdwg.mxu0
        %v2566 = vadd.f32 %v2517, %v2561
        %v2567 = vmul.f32 %v2566, 0.14433756
        %v2568 = vsel %vm1404, %v2567, -1e+30
        %v2569 = vsel %vm1783, %v2568, -inf
        %2570 = vmax.xlane.f32.xlu0 %v2569
        %v2571 = vpop.xlane.xlu0 %2570
        %v2572 = vsub.f32 %v2568, %v2571
        %v2573 = vmul.f32 %v2572, 1.442695
        %v2574 = vpow.pop %v2573
        %v2575 = vsel %vm1783, %v2574, 0.0
        %2576 = vadd.xlane.f32.xlu0 %v2575
        %v2577 = vpop.xlane.xlu0 %2576
        %v2578 = vrcp.pop %v2577
        %v2579 = vmul.f32 %v2574, %v2578
        %v2580 = vpack.c.bf16 %v2579, %v2579
        %v2581 = vpack.c.bf16 %v2425, %v2425
        %v2583 = vsel %vm1783, %v2580, 0
        %v2586 = vsel %vm1944, %v2581, 0
        %2588 = vmatprep.subr.bf16.mxu0 0
        %2589 = vmatpush1.bf16.msra.mxu0 0
        %2590 = vmatprep.subr.bf16.mxu0 0
        %2591 = vmatpush1.bf16.msra.mxu0 0
        %2592 = vmatprep.subr.bf16.mxu0 0
        %2593 = vmatpush1.bf16.msra.mxu0 0
        %2594 = vmatprep.subr.bf16.mxu0 0
        %2595 = vmatpush1.bf16.msra.mxu0 0
        %2596 = vmatprep.subr.bf16.mxu0 0
        %2597 = vmatpush1.bf16.msra.mxu0 0
        %2598 = vmatprep.subr.bf16.mxu0 0
        %2599 = vmatpush1.bf16.msra.mxu0 0
        %2600 = vmatprep.subr.bf16.mxu0 0
        %2601 = vmatpush1.bf16.msra.mxu0 0
        %2602 = vmatprep.subr.bf16.mxu0 0
        %2603 = vmatpush1.bf16.msra.mxu0 %v2586
        %2604 = vmatprep.subr.bf16.mxu0 0
        %2605 = vmatpush2.bf16.msra.mxu0 0
        %2606 = vmatprep.subr.bf16.mxu0 0
        %2607 = vmatpush2.bf16.msra.mxu0 0
        %2608 = vmatprep.subr.bf16.mxu0 0
        %2609 = vmatpush2.bf16.msra.mxu0 0
        %2610 = vmatprep.subr.bf16.mxu0 0
        %2611 = vmatpush2.bf16.msra.mxu0 0
        %2612 = vmatprep.subr.bf16.mxu0 0
        %2613 = vmatpush2.bf16.msra.mxu0 0
        %2614 = vmatprep.subr.bf16.mxu0 0
        %2615 = vmatpush2.bf16.msra.mxu0 0
        %2616 = vmatprep.subr.bf16.mxu0 0
        %2617 = vmatpush2.bf16.msra.mxu0 0
        %2618 = vmatprep.subr.bf16.mxu0 0
        %2619 = vmatpush2.bf16.msra.mxu0 0
        %2620 = vmatprep.mubr.bf16.mxu0 0
        %2621 = vmatmul.mubr.bf16.gmra.mxu0 %v2583
        %v2622 = vpop.f32.mrf.mxu0
        %v2623 = vadd.f32 0.0, %v2622
        %v2624 = vpop.f32.mrf.mxu0
        %v2625 = vpop.f32.mrf.mxu0
        %v2626 = vpop.f32.mrf.mxu0
        %2627 = vdwg.mxu0
        %s2628 = scalar_lea.vmem [#allocation5], 32
        %v2629 = vld [vmem:[%s2628] sm:$0xff]
        %v2630 = vld [vmem:[%s2628 + $0x8] sm:$0xff]
        %v2631 = vld [vmem:[%s2628 + $0x10] sm:$0xff]
        %v2632 = vld [vmem:[%s2628 + $0x18] sm:$0xff]
        %v2633 = vpack.c.bf16 %v2623, %v2623
        %v2638 = vunpack.c.l.b16 %v2629
        %v2639 = vunpack.c.h.b16 %v2629
        %v2640 = vunpack.c.l.b16 %v2630
        %v2641 = vunpack.c.h.b16 %v2630
        %v2642 = vunpack.c.l.b16 %v2631
        %v2643 = vunpack.c.h.b16 %v2631
        %v2644 = vunpack.c.l.b16 %v2632
        %v2645 = vunpack.c.h.b16 %v2632
        %v2646 = vpack.c.b16 %v2640, %v2638
        %v2647 = vpack.c.b16 %v2641, %v2639
        %v2648 = vpack.c.b16 %v2644, %v2642
        %v2649 = vpack.c.b16 %v2645, %v2643
        %v2655 = vsel %vm1830, %v2633, 0
        %2657 = vmatprep.subr.bf16.mxu0 0
        %2658 = vmatpush1.bf16.msra.mxu0 0
        %2659 = vmatprep.subr.bf16.mxu0 0
        %2660 = vmatpush1.bf16.msra.mxu0 0
        %2661 = vmatprep.subr.bf16.mxu0 0
        %2662 = vmatpush1.bf16.msra.mxu0 0
        %2663 = vmatprep.subr.bf16.mxu0 0
        %2664 = vmatpush1.bf16.msra.mxu0 0
        %2665 = vmatprep.subr.bf16.mxu0 0
        %2666 = vmatpush1.bf16.msra.mxu0 0
        %2667 = vmatprep.subr.bf16.mxu0 0
        %2668 = vmatpush1.bf16.msra.mxu0 0
        %2669 = vmatprep.subr.bf16.mxu0 %v2649
        %2670 = vmatpush1.bf16.msra.mxu0 %v2648
        %2671 = vmatprep.subr.bf16.mxu0 %v2647
        %2672 = vmatpush1.bf16.msra.mxu0 %v2646
        %2673 = vmatprep.subr.bf16.mxu0 0
        %2674 = vmatpush2.bf16.msra.mxu0 0
        %2675 = vmatprep.subr.bf16.mxu0 0
        %2676 = vmatpush2.bf16.msra.mxu0 0
        %2677 = vmatprep.subr.bf16.mxu0 0
        %2678 = vmatpush2.bf16.msra.mxu0 0
        %2679 = vmatprep.subr.bf16.mxu0 0
        %2680 = vmatpush2.bf16.msra.mxu0 0
        %2681 = vmatprep.subr.bf16.mxu0 0
        %2682 = vmatpush2.bf16.msra.mxu0 0
        %2683 = vmatprep.subr.bf16.mxu0 0
        %2684 = vmatpush2.bf16.msra.mxu0 0
        %2685 = vmatprep.subr.bf16.mxu0 0
        %2686 = vmatpush2.bf16.msra.mxu0 0
        %2687 = vmatprep.subr.bf16.mxu0 0
        %2688 = vmatpush2.bf16.msra.mxu0 0
        %2689 = vmatprep.mubr.bf16.mxu0 0
        %2690 = vmatmul.mubr.bf16.gmra.mxu0 %v2655
        %v2691 = vpop.f32.mrf.mxu0
        %v2692 = vadd.f32 0.0, %v2691
        %v2693 = vpop.f32.mrf.mxu0
        %v2694 = vadd.f32 0.0, %v2693
        %v2695 = vpop.f32.mrf.mxu0
        %v2696 = vpop.f32.mrf.mxu0
        %2697 = vdwg.mxu0
        %v2698 = vadd.f32 %v2057, %v2692
        %v2699 = vadd.f32 %v2058, %v2694
        %s2700 = scalar_lea.vmem %s10, 64
        %v2701 = vld [vmem:[%s2700] sm:$0xf]
        %v2702 = vld [vmem:[%s2700 + $0x4] sm:$0xf]
        %v2703 = vld [vmem:[%s2700 + $0x8] sm:$0xf]
        %v2704 = vld [vmem:[%s2700 + $0xc] sm:$0xf]
        %v2705 = vld [vmem:[%s2700 + $0x10] sm:$0xf]
        %v2706 = vld [vmem:[%s2700 + $0x14] sm:$0xf]
        %v2707 = vld [vmem:[%s2700 + $0x18] sm:$0xf]
        %v2708 = vld [vmem:[%s2700 + $0x1c] sm:$0xf]
        %v2717 = vunpack.c.l.b16 %v2701
        %v2718 = vunpack.c.l.b16 %v2702
        %v2719 = vunpack.c.l.b16 %v2703
        %v2720 = vunpack.c.l.b16 %v2704
        %v2721 = vunpack.c.l.b16 %v2705
        %v2722 = vunpack.c.l.b16 %v2706
        %v2723 = vunpack.c.l.b16 %v2707
        %v2724 = vunpack.c.l.b16 %v2708
        %v2725 = vpack.c.b16 %v2718, %v2717
        %v2726 = vpack.c.b16 %v2720, %v2719
        %v2727 = vpack.c.b16 %v2722, %v2721
        %v2728 = vpack.c.b16 %v2724, %v2723
        %2733 = vmatprep.subr.bf16.mxu0 0
        %2734 = vmatpush1.bf16.msra.mxu0 0
        %2735 = vmatprep.subr.bf16.mxu0 0
        %2736 = vmatpush1.bf16.msra.mxu0 0
        %2737 = vmatprep.subr.bf16.mxu0 0
        %2738 = vmatpush1.bf16.msra.mxu0 0
        %2739 = vmatprep.subr.bf16.mxu0 0
        %2740 = vmatpush1.bf16.msra.mxu0 0
        %2741 = vmatprep.subr.bf16.mxu0 0
        %2742 = vmatpush1.bf16.msra.mxu0 %v2728
        %2743 = vmatprep.subr.bf16.mxu0 0
        %2744 = vmatpush1.bf16.msra.mxu0 %v2727
        %2745 = vmatprep.subr.bf16.mxu0 0
        %2746 = vmatpush1.bf16.msra.mxu0 %v2726
        %2747 = vmatprep.subr.bf16.mxu0 0
        %2748 = vmatpush1.bf16.msra.mxu0 %v2725
        %2749 = vmatprep.subr.bf16.mxu0 0
        %2750 = vmatpush2.bf16.msra.mxu0 0
        %2751 = vmatprep.subr.bf16.mxu0 0
        %2752 = vmatpush2.bf16.msra.mxu0 0
        %2753 = vmatprep.subr.bf16.mxu0 0
        %2754 = vmatpush2.bf16.msra.mxu0 0
        %2755 = vmatprep.subr.bf16.mxu0 0
        %2756 = vmatpush2.bf16.msra.mxu0 0
        %2757 = vmatprep.subr.bf16.mxu0 0
        %2758 = vmatpush2.bf16.msra.mxu0 0
        %2759 = vmatprep.subr.bf16.mxu0 0
        %2760 = vmatpush2.bf16.msra.mxu0 0
        %2761 = vmatprep.subr.bf16.mxu0 0
        %2762 = vmatpush2.bf16.msra.mxu0 0
        %2763 = vmatprep.subr.bf16.mxu0 0
        %2764 = vmatpush2.bf16.msra.mxu0 0
        %2765 = vmatprep.mubr.bf16.mxu0 0
        %2766 = vmatmul.mubr.bf16.gmra.mxu0 %v1439
        %v2767 = vpop.f32.mrf.mxu0
        %v2768 = vadd.f32 0.0, %v2767
        %v2769 = vpop.f32.mrf.mxu0
        %v2770 = vpop.f32.mrf.mxu0
        %v2771 = vpop.f32.mrf.mxu0
        %2772 = vdwg.mxu0
        %s2773 = scalar_lea.vmem %s11, 64
        %v2774 = vld [vmem:[%s2773] sm:$0xf]
        %v2775 = vld [vmem:[%s2773 + $0x4] sm:$0xf]
        %v2776 = vld [vmem:[%s2773 + $0x8] sm:$0xf]
        %v2777 = vld [vmem:[%s2773 + $0xc] sm:$0xf]
        %v2778 = vld [vmem:[%s2773 + $0x10] sm:$0xf]
        %v2779 = vld [vmem:[%s2773 + $0x14] sm:$0xf]
        %v2780 = vld [vmem:[%s2773 + $0x18] sm:$0xf]
        %v2781 = vld [vmem:[%s2773 + $0x1c] sm:$0xf]
        %v2790 = vunpack.c.l.b16 %v2774
        %v2791 = vunpack.c.l.b16 %v2775
        %v2792 = vunpack.c.l.b16 %v2776
        %v2793 = vunpack.c.l.b16 %v2777
        %v2794 = vunpack.c.l.b16 %v2778
        %v2795 = vunpack.c.l.b16 %v2779
        %v2796 = vunpack.c.l.b16 %v2780
        %v2797 = vunpack.c.l.b16 %v2781
        %v2798 = vpack.c.b16 %v2791, %v2790
        %v2799 = vpack.c.b16 %v2793, %v2792
        %v2800 = vpack.c.b16 %v2795, %v2794
        %v2801 = vpack.c.b16 %v2797, %v2796
        %2806 = vmatprep.subr.bf16.mxu0 0
        %2807 = vmatpush1.bf16.msra.mxu0 0
        %2808 = vmatprep.subr.bf16.mxu0 0
        %2809 = vmatpush1.bf16.msra.mxu0 0
        %2810 = vmatprep.subr.bf16.mxu0 0
        %2811 = vmatpush1.bf16.msra.mxu0 0
        %2812 = vmatprep.subr.bf16.mxu0 0
        %2813 = vmatpush1.bf16.msra.mxu0 0
        %2814 = vmatprep.subr.bf16.mxu0 0
        %2815 = vmatpush1.bf16.msra.mxu0 %v2801
        %2816 = vmatprep.subr.bf16.mxu0 0
        %2817 = vmatpush1.bf16.msra.mxu0 %v2800
        %2818 = vmatprep.subr.bf16.mxu0 0
        %2819 = vmatpush1.bf16.msra.mxu0 %v2799
        %2820 = vmatprep.subr.bf16.mxu0 0
        %2821 = vmatpush1.bf16.msra.mxu0 %v2798
        %2822 = vmatprep.subr.bf16.mxu0 0
        %2823 = vmatpush2.bf16.msra.mxu0 0
        %2824 = vmatprep.subr.bf16.mxu0 0
        %2825 = vmatpush2.bf16.msra.mxu0 0
        %2826 = vmatprep.subr.bf16.mxu0 0
        %2827 = vmatpush2.bf16.msra.mxu0 0
        %2828 = vmatprep.subr.bf16.mxu0 0
        %2829 = vmatpush2.bf16.msra.mxu0 0
        %2830 = vmatprep.subr.bf16.mxu0 0
        %2831 = vmatpush2.bf16.msra.mxu0 0
        %2832 = vmatprep.subr.bf16.mxu0 0
        %2833 = vmatpush2.bf16.msra.mxu0 0
        %2834 = vmatprep.subr.bf16.mxu0 0
        %2835 = vmatpush2.bf16.msra.mxu0 0
        %2836 = vmatprep.subr.bf16.mxu0 0
        %2837 = vmatpush2.bf16.msra.mxu0 0
        %2838 = vmatprep.mubr.bf16.mxu0 0
        %2839 = vmatmul.mubr.bf16.gmra.mxu0 %v1439
        %v2840 = vpop.f32.mrf.mxu0
        %v2841 = vadd.f32 0.0, %v2840
        %v2842 = vpop.f32.mrf.mxu0
        %v2843 = vpop.f32.mrf.mxu0
        %v2844 = vpop.f32.mrf.mxu0
        %2845 = vdwg.mxu0
        %s2846 = scalar_lea.vmem %s12, 64
        %v2847 = vld [vmem:[%s2846] sm:$0xf]
        %v2848 = vld [vmem:[%s2846 + $0x4] sm:$0xf]
        %v2849 = vld [vmem:[%s2846 + $0x8] sm:$0xf]
        %v2850 = vld [vmem:[%s2846 + $0xc] sm:$0xf]
        %v2851 = vld [vmem:[%s2846 + $0x10] sm:$0xf]
        %v2852 = vld [vmem:[%s2846 + $0x14] sm:$0xf]
        %v2853 = vld [vmem:[%s2846 + $0x18] sm:$0xf]
        %v2854 = vld [vmem:[%s2846 + $0x1c] sm:$0xf]
        %v2863 = vunpack.c.l.b16 %v2847
        %v2864 = vunpack.c.l.b16 %v2848
        %v2865 = vunpack.c.l.b16 %v2849
        %v2866 = vunpack.c.l.b16 %v2850
        %v2867 = vunpack.c.l.b16 %v2851
        %v2868 = vunpack.c.l.b16 %v2852
        %v2869 = vunpack.c.l.b16 %v2853
        %v2870 = vunpack.c.l.b16 %v2854
        %v2871 = vpack.c.b16 %v2864, %v2863
        %v2872 = vpack.c.b16 %v2866, %v2865
        %v2873 = vpack.c.b16 %v2868, %v2867
        %v2874 = vpack.c.b16 %v2870, %v2869
        %2879 = vmatprep.subr.bf16.mxu0 0
        %2880 = vmatpush1.bf16.msra.mxu0 0
        %2881 = vmatprep.subr.bf16.mxu0 0
        %2882 = vmatpush1.bf16.msra.mxu0 0
        %2883 = vmatprep.subr.bf16.mxu0 0
        %2884 = vmatpush1.bf16.msra.mxu0 0
        %2885 = vmatprep.subr.bf16.mxu0 0
        %2886 = vmatpush1.bf16.msra.mxu0 0
        %2887 = vmatprep.subr.bf16.mxu0 0
        %2888 = vmatpush1.bf16.msra.mxu0 %v2874
        %2889 = vmatprep.subr.bf16.mxu0 0
        %2890 = vmatpush1.bf16.msra.mxu0 %v2873
        %2891 = vmatprep.subr.bf16.mxu0 0
        %2892 = vmatpush1.bf16.msra.mxu0 %v2872
        %2893 = vmatprep.subr.bf16.mxu0 0
        %2894 = vmatpush1.bf16.msra.mxu0 %v2871
        %2895 = vmatprep.subr.bf16.mxu0 0
        %2896 = vmatpush2.bf16.msra.mxu0 0
        %2897 = vmatprep.subr.bf16.mxu0 0
        %2898 = vmatpush2.bf16.msra.mxu0 0
        %2899 = vmatprep.subr.bf16.mxu0 0
        %2900 = vmatpush2.bf16.msra.mxu0 0
        %2901 = vmatprep.subr.bf16.mxu0 0
        %2902 = vmatpush2.bf16.msra.mxu0 0
        %2903 = vmatprep.subr.bf16.mxu0 0
        %2904 = vmatpush2.bf16.msra.mxu0 0
        %2905 = vmatprep.subr.bf16.mxu0 0
        %2906 = vmatpush2.bf16.msra.mxu0 0
        %2907 = vmatprep.subr.bf16.mxu0 0
        %2908 = vmatpush2.bf16.msra.mxu0 0
        %2909 = vmatprep.subr.bf16.mxu0 0
        %2910 = vmatpush2.bf16.msra.mxu0 0
        %2911 = vmatprep.mubr.bf16.mxu0 0
        %2912 = vmatmul.mubr.bf16.gmra.mxu0 %v1439
        %v2913 = vpop.f32.mrf.mxu0
        %v2914 = vadd.f32 0.0, %v2913
        %v2915 = vpop.f32.mrf.mxu0
        %v2916 = vpop.f32.mrf.mxu0
        %v2917 = vpop.f32.mrf.mxu0
        %2918 = vdwg.mxu0
        %v2919 = vmul.f32 %v2841, %v1392
        %v2920 = vmul.f32 %v2914, %v1393
        %v2921 = vsub.f32 %v2919, %v2920
        %v2922 = vmul.f32 %v2914, %v1392
        %v2923 = vmul.f32 %v2841, %v1393
        %v2924 = vadd.f32 %v2922, %v2923
        %s2925 = scalar_lea.vmem %s13, 64
        %v2926 = vld [vmem:[%s2925] sm:$0xf]
        %v2927 = vld [vmem:[%s2925 + $0x4] sm:$0xf]
        %v2928 = vld [vmem:[%s2925 + $0x8] sm:$0xf]
        %v2929 = vld [vmem:[%s2925 + $0xc] sm:$0xf]
        %v2930 = vld [vmem:[%s2925 + $0x10] sm:$0xf]
        %v2931 = vld [vmem:[%s2925 + $0x14] sm:$0xf]
        %v2932 = vld [vmem:[%s2925 + $0x18] sm:$0xf]
        %v2933 = vld [vmem:[%s2925 + $0x1c] sm:$0xf]
        %v2942 = vunpack.c.l.b16 %v2926
        %v2943 = vunpack.c.l.b16 %v2927
        %v2944 = vunpack.c.l.b16 %v2928
        %v2945 = vunpack.c.l.b16 %v2929
        %v2946 = vunpack.c.l.b16 %v2930
        %v2947 = vunpack.c.l.b16 %v2931
        %v2948 = vunpack.c.l.b16 %v2932
        %v2949 = vunpack.c.l.b16 %v2933
        %v2950 = vpack.c.b16 %v2943, %v2942
        %v2951 = vpack.c.b16 %v2945, %v2944
        %v2952 = vpack.c.b16 %v2947, %v2946
        %v2953 = vpack.c.b16 %v2949, %v2948
        %2958 = vmatprep.subr.bf16.mxu0 0
        %2959 = vmatpush1.bf16.msra.mxu0 0
        %2960 = vmatprep.subr.bf16.mxu0 0
        %2961 = vmatpush1.bf16.msra.mxu0 0
        %2962 = vmatprep.subr.bf16.mxu0 0
        %2963 = vmatpush1.bf16.msra.mxu0 0
        %2964 = vmatprep.subr.bf16.mxu0 0
        %2965 = vmatpush1.bf16.msra.mxu0 0
        %2966 = vmatprep.subr.bf16.mxu0 0
        %2967 = vmatpush1.bf16.msra.mxu0 %v2953
        %2968 = vmatprep.subr.bf16.mxu0 0
        %2969 = vmatpush1.bf16.msra.mxu0 %v2952
        %2970 = vmatprep.subr.bf16.mxu0 0
        %2971 = vmatpush1.bf16.msra.mxu0 %v2951
        %2972 = vmatprep.subr.bf16.mxu0 0
        %2973 = vmatpush1.bf16.msra.mxu0 %v2950
        %2974 = vmatprep.subr.bf16.mxu0 0
        %2975 = vmatpush2.bf16.msra.mxu0 0
        %2976 = vmatprep.subr.bf16.mxu0 0
        %2977 = vmatpush2.bf16.msra.mxu0 0
        %2978 = vmatprep.subr.bf16.mxu0 0
        %2979 = vmatpush2.bf16.msra.mxu0 0
        %2980 = vmatprep.subr.bf16.mxu0 0
        %2981 = vmatpush2.bf16.msra.mxu0 0
        %2982 = vmatprep.subr.bf16.mxu0 0
        %2983 = vmatpush2.bf16.msra.mxu0 0
        %2984 = vmatprep.subr.bf16.mxu0 0
        %2985 = vmatpush2.bf16.msra.mxu0 0
        %2986 = vmatprep.subr.bf16.mxu0 0
        %2987 = vmatpush2.bf16.msra.mxu0 0
        %2988 = vmatprep.subr.bf16.mxu0 0
        %2989 = vmatpush2.bf16.msra.mxu0 0
        %2990 = vmatprep.mubr.bf16.mxu0 0
        %2991 = vmatmul.mubr.bf16.gmra.mxu0 %v1665
        %v2992 = vpop.f32.mrf.mxu0
        %v2993 = vadd.f32 0.0, %v2992
        %v2994 = vpop.f32.mrf.mxu0
        %v2995 = vpop.f32.mrf.mxu0
        %v2996 = vpop.f32.mrf.mxu0
        %2997 = vdwg.mxu0
        %s2998 = scalar_lea.vmem %s14, 64
        %v2999 = vld [vmem:[%s2998] sm:$0xf]
        %v3000 = vld [vmem:[%s2998 + $0x4] sm:$0xf]
        %v3001 = vld [vmem:[%s2998 + $0x8] sm:$0xf]
        %v3002 = vld [vmem:[%s2998 + $0xc] sm:$0xf]
        %v3003 = vld [vmem:[%s2998 + $0x10] sm:$0xf]
        %v3004 = vld [vmem:[%s2998 + $0x14] sm:$0xf]
        %v3005 = vld [vmem:[%s2998 + $0x18] sm:$0xf]
        %v3006 = vld [vmem:[%s2998 + $0x1c] sm:$0xf]
        %v3015 = vunpack.c.l.b16 %v2999
        %v3016 = vunpack.c.l.b16 %v3000
        %v3017 = vunpack.c.l.b16 %v3001
        %v3018 = vunpack.c.l.b16 %v3002
        %v3019 = vunpack.c.l.b16 %v3003
        %v3020 = vunpack.c.l.b16 %v3004
        %v3021 = vunpack.c.l.b16 %v3005
        %v3022 = vunpack.c.l.b16 %v3006
        %v3023 = vpack.c.b16 %v3016, %v3015
        %v3024 = vpack.c.b16 %v3018, %v3017
        %v3025 = vpack.c.b16 %v3020, %v3019
        %v3026 = vpack.c.b16 %v3022, %v3021
        %3031 = vmatprep.subr.bf16.mxu0 0
        %3032 = vmatpush1.bf16.msra.mxu0 0
        %3033 = vmatprep.subr.bf16.mxu0 0
        %3034 = vmatpush1.bf16.msra.mxu0 0
        %3035 = vmatprep.subr.bf16.mxu0 0
        %3036 = vmatpush1.bf16.msra.mxu0 0
        %3037 = vmatprep.subr.bf16.mxu0 0
        %3038 = vmatpush1.bf16.msra.mxu0 0
        %3039 = vmatprep.subr.bf16.mxu0 0
        %3040 = vmatpush1.bf16.msra.mxu0 %v3026
        %3041 = vmatprep.subr.bf16.mxu0 0
        %3042 = vmatpush1.bf16.msra.mxu0 %v3025
        %3043 = vmatprep.subr.bf16.mxu0 0
        %3044 = vmatpush1.bf16.msra.mxu0 %v3024
        %3045 = vmatprep.subr.bf16.mxu0 0
        %3046 = vmatpush1.bf16.msra.mxu0 %v3023
        %3047 = vmatprep.subr.bf16.mxu0 0
        %3048 = vmatpush2.bf16.msra.mxu0 0
        %3049 = vmatprep.subr.bf16.mxu0 0
        %3050 = vmatpush2.bf16.msra.mxu0 0
        %3051 = vmatprep.subr.bf16.mxu0 0
        %3052 = vmatpush2.bf16.msra.mxu0 0
        %3053 = vmatprep.subr.bf16.mxu0 0
        %3054 = vmatpush2.bf16.msra.mxu0 0
        %3055 = vmatprep.subr.bf16.mxu0 0
        %3056 = vmatpush2.bf16.msra.mxu0 0
        %3057 = vmatprep.subr.bf16.mxu0 0
        %3058 = vmatpush2.bf16.msra.mxu0 0
        %3059 = vmatprep.subr.bf16.mxu0 0
        %3060 = vmatpush2.bf16.msra.mxu0 0
        %3061 = vmatprep.subr.bf16.mxu0 0
        %3062 = vmatpush2.bf16.msra.mxu0 0
        %3063 = vmatprep.mubr.bf16.mxu0 0
        %3064 = vmatmul.mubr.bf16.gmra.mxu0 %v1665
        %v3065 = vpop.f32.mrf.mxu0
        %v3066 = vadd.f32 0.0, %v3065
        %v3067 = vpop.f32.mrf.mxu0
        %v3068 = vpop.f32.mrf.mxu0
        %v3069 = vpop.f32.mrf.mxu0
        %3070 = vdwg.mxu0
        %v3071 = vpack.c.bf16 %v2768, %v2768
        %v3072 = vpack.c.bf16 %v2993, %v2993
        %v3073 = vpack.c.bf16 %v2921, %v2921
        %v3075 = vsel %vm1783, %v3073, 0
        %3077 = vmatprep.subr.bf16.mxu0 0
        %3078 = vmatpush1.bf16.xpose.msra.mxu0 0
        %3079 = vmatprep.subr.bf16.mxu0 0
        %3080 = vmatpush1.bf16.xpose.msra.mxu0 0
        %3081 = vmatprep.subr.bf16.mxu0 0
        %3082 = vmatpush1.bf16.xpose.msra.mxu0 0
        %3083 = vmatprep.subr.bf16.mxu0 0
        %3084 = vmatpush1.bf16.xpose.msra.mxu0 0
        %3085 = vmatprep.subr.bf16.mxu0 0
        %3086 = vmatpush1.bf16.xpose.msra.mxu0 0
        %3087 = vmatprep.subr.bf16.mxu0 0
        %3088 = vmatpush1.bf16.xpose.msra.mxu0 0
        %3089 = vmatprep.subr.bf16.mxu0 0
        %3090 = vmatpush1.bf16.xpose.msra.mxu0 0
        %3091 = vmatprep.subr.bf16.mxu0 0
        %3092 = vmatpush1.bf16.xpose.msra.mxu0 %v1788
        %3093 = vmatprep.subr.bf16.mxu0 0
        %3094 = vmatpush2.bf16.xpose.msra.mxu0 0
        %3095 = vmatprep.subr.bf16.mxu0 0
        %3096 = vmatpush2.bf16.xpose.msra.mxu0 0
        %3097 = vmatprep.subr.bf16.mxu0 0
        %3098 = vmatpush2.bf16.xpose.msra.mxu0 0
        %3099 = vmatprep.subr.bf16.mxu0 0
        %3100 = vmatpush2.bf16.xpose.msra.mxu0 0
        %3101 = vmatprep.subr.bf16.mxu0 0
        %3102 = vmatpush2.bf16.xpose.msra.mxu0 0
        %3103 = vmatprep.subr.bf16.mxu0 0
        %3104 = vmatpush2.bf16.xpose.msra.mxu0 0
        %3105 = vmatprep.subr.bf16.mxu0 0
        %3106 = vmatpush2.bf16.xpose.msra.mxu0 0
        %3107 = vmatprep.subr.bf16.mxu0 0
        %3108 = vmatpush2.bf16.xpose.msra.mxu0 0
        %3109 = vmatprep.mubr.bf16.mxu0 0
        %3110 = vmatmul.mubr.bf16.gmra.mxu0 %v3075
        %v3111 = vpop.f32.mrf.mxu0
        %v3112 = vadd.f32 0.0, %v3111
        %v3113 = vpop.f32.mrf.mxu0
        %v3114 = vpop.f32.mrf.mxu0
        %v3115 = vpop.f32.mrf.mxu0
        %3116 = vdwg.mxu0
        %v3118 = vsel %vm1830, %v3071, 0
        %v3121 = vsel %vm1830, %v3072, 0
        %3123 = vmatprep.subr.bf16.mxu0 0
        %3124 = vmatpush1.bf16.xpose.msra.mxu0 0
        %3125 = vmatprep.subr.bf16.mxu0 0
        %3126 = vmatpush1.bf16.xpose.msra.mxu0 0
        %3127 = vmatprep.subr.bf16.mxu0 0
        %3128 = vmatpush1.bf16.xpose.msra.mxu0 0
        %3129 = vmatprep.subr.bf16.mxu0 0
        %3130 = vmatpush1.bf16.xpose.msra.mxu0 0
        %3131 = vmatprep.subr.bf16.mxu0 0
        %3132 = vmatpush1.bf16.xpose.msra.mxu0 0
        %3133 = vmatprep.subr.bf16.mxu0 0
        %3134 = vmatpush1.bf16.xpose.msra.mxu0 0
        %3135 = vmatprep.subr.bf16.mxu0 0
        %3136 = vmatpush1.bf16.xpose.msra.mxu0 0
        %3137 = vmatprep.subr.bf16.mxu0 0
        %3138 = vmatpush1.bf16.xpose.msra.mxu0 %v3121
        %3139 = vmatprep.subr.bf16.mxu0 0
        %3140 = vmatpush2.bf16.xpose.msra.mxu0 0
        %3141 = vmatprep.subr.bf16.mxu0 0
        %3142 = vmatpush2.bf16.xpose.msra.mxu0 0
        %3143 = vmatprep.subr.bf16.mxu0 0
        %3144 = vmatpush2.bf16.xpose.msra.mxu0 0
        %3145 = vmatprep.subr.bf16.mxu0 0
        %3146 = vmatpush2.bf16.xpose.msra.mxu0 0
        %3147 = vmatprep.subr.bf16.mxu0 0
        %3148 = vmatpush2.bf16.xpose.msra.mxu0 0
        %3149 = vmatprep.subr.bf16.mxu0 0
        %3150 = vmatpush2.bf16.xpose.msra.mxu0 0
        %3151 = vmatprep.subr.bf16.mxu0 0
        %3152 = vmatpush2.bf16.xpose.msra.mxu0 0
        %3153 = vmatprep.subr.bf16.mxu0 0
        %3154 = vmatpush2.bf16.xpose.msra.mxu0 0
        %3155 = vmatprep.mubr.bf16.mxu0 0
        %3156 = vmatmul.mubr.bf16.gmra.mxu0 %v3118
        %v3157 = vpop.f32.mrf.mxu0
        %v3158 = vadd.f32 %v3112, %v3157
        %v3159 = vpop.f32.mrf.mxu0
        %v3160 = vpop.f32.mrf.mxu0
        %v3161 = vpop.f32.mrf.mxu0
        %3162 = vdwg.mxu0
        %v3163 = vpack.c.bf16 %v2924, %v2924
        %v3165 = vsel %vm1783, %v3163, 0
        %3167 = vmatprep.subr.bf16.mxu0 0
        %3168 = vmatpush1.bf16.xpose.msra.mxu0 0
        %3169 = vmatprep.subr.bf16.mxu0 0
        %3170 = vmatpush1.bf16.xpose.msra.mxu0 0
        %3171 = vmatprep.subr.bf16.mxu0 0
        %3172 = vmatpush1.bf16.xpose.msra.mxu0 0
        %3173 = vmatprep.subr.bf16.mxu0 0
        %3174 = vmatpush1.bf16.xpose.msra.mxu0 0
        %3175 = vmatprep.subr.bf16.mxu0 0
        %3176 = vmatpush1.bf16.xpose.msra.mxu0 0
        %3177 = vmatprep.subr.bf16.mxu0 0
        %3178 = vmatpush1.bf16.xpose.msra.mxu0 0
        %3179 = vmatprep.subr.bf16.mxu0 0
        %3180 = vmatpush1.bf16.xpose.msra.mxu0 0
        %3181 = vmatprep.subr.bf16.mxu0 0
        %3182 = vmatpush1.bf16.xpose.msra.mxu0 %v1883
        %3183 = vmatprep.subr.bf16.mxu0 0
        %3184 = vmatpush2.bf16.xpose.msra.mxu0 0
        %3185 = vmatprep.subr.bf16.mxu0 0
        %3186 = vmatpush2.bf16.xpose.msra.mxu0 0
        %3187 = vmatprep.subr.bf16.mxu0 0
        %3188 = vmatpush2.bf16.xpose.msra.mxu0 0
        %3189 = vmatprep.subr.bf16.mxu0 0
        %3190 = vmatpush2.bf16.xpose.msra.mxu0 0
        %3191 = vmatprep.subr.bf16.mxu0 0
        %3192 = vmatpush2.bf16.xpose.msra.mxu0 0
        %3193 = vmatprep.subr.bf16.mxu0 0
        %3194 = vmatpush2.bf16.xpose.msra.mxu0 0
        %3195 = vmatprep.subr.bf16.mxu0 0
        %3196 = vmatpush2.bf16.xpose.msra.mxu0 0
        %3197 = vmatprep.subr.bf16.mxu0 0
        %3198 = vmatpush2.bf16.xpose.msra.mxu0 0
        %3199 = vmatprep.mubr.bf16.mxu0 0
        %3200 = vmatmul.mubr.bf16.gmra.mxu0 %v3165
        %v3201 = vpop.f32.mrf.mxu0
        %v3202 = vadd.f32 0.0, %v3201
        %v3203 = vpop.f32.mrf.mxu0
        %v3204 = vpop.f32.mrf.mxu0
        %v3205 = vpop.f32.mrf.mxu0
        %3206 = vdwg.mxu0
        %v3207 = vadd.f32 %v3158, %v3202
        %v3208 = vmul.f32 %v3207, 0.14433756
        %v3209 = vsel %vm1404, %v3208, -1e+30
        %v3210 = vsel %vm1783, %v3209, -inf
        %3211 = vmax.xlane.f32.xlu0 %v3210
        %v3212 = vpop.xlane.xlu0 %3211
        %v3213 = vsub.f32 %v3209, %v3212
        %v3214 = vmul.f32 %v3213, 1.442695
        %v3215 = vpow.pop %v3214
        %v3216 = vsel %vm1783, %v3215, 0.0
        %3217 = vadd.xlane.f32.xlu0 %v3216
        %v3218 = vpop.xlane.xlu0 %3217
        %v3219 = vrcp.pop %v3218
        %v3220 = vmul.f32 %v3215, %v3219
        %v3221 = vpack.c.bf16 %v3220, %v3220
        %v3222 = vpack.c.bf16 %v3066, %v3066
        %v3224 = vsel %vm1783, %v3221, 0
        %v3227 = vsel %vm1944, %v3222, 0
        %3229 = vmatprep.subr.bf16.mxu0 0
        %3230 = vmatpush1.bf16.msra.mxu0 0
        %3231 = vmatprep.subr.bf16.mxu0 0
        %3232 = vmatpush1.bf16.msra.mxu0 0
        %3233 = vmatprep.subr.bf16.mxu0 0
        %3234 = vmatpush1.bf16.msra.mxu0 0
        %3235 = vmatprep.subr.bf16.mxu0 0
        %3236 = vmatpush1.bf16.msra.mxu0 0
        %3237 = vmatprep.subr.bf16.mxu0 0
        %3238 = vmatpush1.bf16.msra.mxu0 0
        %3239 = vmatprep.subr.bf16.mxu0 0
        %3240 = vmatpush1.bf16.msra.mxu0 0
        %3241 = vmatprep.subr.bf16.mxu0 0
        %3242 = vmatpush1.bf16.msra.mxu0 0
        %3243 = vmatprep.subr.bf16.mxu0 0
        %3244 = vmatpush1.bf16.msra.mxu0 %v3227
        %3245 = vmatprep.subr.bf16.mxu0 0
        %3246 = vmatpush2.bf16.msra.mxu0 0
        %3247 = vmatprep.subr.bf16.mxu0 0
        %3248 = vmatpush2.bf16.msra.mxu0 0
        %3249 = vmatprep.subr.bf16.mxu0 0
        %3250 = vmatpush2.bf16.msra.mxu0 0
        %3251 = vmatprep.subr.bf16.mxu0 0
        %3252 = vmatpush2.bf16.msra.mxu0 0
        %3253 = vmatprep.subr.bf16.mxu0 0
        %3254 = vmatpush2.bf16.msra.mxu0 0
        %3255 = vmatprep.subr.bf16.mxu0 0
        %3256 = vmatpush2.bf16.msra.mxu0 0
        %3257 = vmatprep.subr.bf16.mxu0 0
        %3258 = vmatpush2.bf16.msra.mxu0 0
        %3259 = vmatprep.subr.bf16.mxu0 0
        %3260 = vmatpush2.bf16.msra.mxu0 0
        %3261 = vmatprep.mubr.bf16.mxu0 0
        %3262 = vmatmul.mubr.bf16.gmra.mxu0 %v3224
        %v3263 = vpop.f32.mrf.mxu0
        %v3264 = vadd.f32 0.0, %v3263
        %v3265 = vpop.f32.mrf.mxu0
        %v3266 = vpop.f32.mrf.mxu0
        %v3267 = vpop.f32.mrf.mxu0
        %3268 = vdwg.mxu0
        %s3269 = scalar_lea.vmem [#allocation5], 64
        %v3270 = vld [vmem:[%s3269] sm:$0xff]
        %v3271 = vld [vmem:[%s3269 + $0x8] sm:$0xff]
        %v3272 = vld [vmem:[%s3269 + $0x10] sm:$0xff]
        %v3273 = vld [vmem:[%s3269 + $0x18] sm:$0xff]
        %v3274 = vpack.c.bf16 %v3264, %v3264
        %v3279 = vunpack.c.l.b16 %v3270
        %v3280 = vunpack.c.h.b16 %v3270
        %v3281 = vunpack.c.l.b16 %v3271
        %v3282 = vunpack.c.h.b16 %v3271
        %v3283 = vunpack.c.l.b16 %v3272
        %v3284 = vunpack.c.h.b16 %v3272
        %v3285 = vunpack.c.l.b16 %v3273
        %v3286 = vunpack.c.h.b16 %v3273
        %v3287 = vpack.c.b16 %v3281, %v3279
        %v3288 = vpack.c.b16 %v3282, %v3280
        %v3289 = vpack.c.b16 %v3285, %v3283
        %v3290 = vpack.c.b16 %v3286, %v3284
        %v3296 = vsel %vm1830, %v3274, 0
        %3298 = vmatprep.subr.bf16.mxu0 0
        %3299 = vmatpush1.bf16.msra.mxu0 0
        %3300 = vmatprep.subr.bf16.mxu0 0
        %3301 = vmatpush1.bf16.msra.mxu0 0
        %3302 = vmatprep.subr.bf16.mxu0 0
        %3303 = vmatpush1.bf16.msra.mxu0 0
        %3304 = vmatprep.subr.bf16.mxu0 0
        %3305 = vmatpush1.bf16.msra.mxu0 0
        %3306 = vmatprep.subr.bf16.mxu0 0
        %3307 = vmatpush1.bf16.msra.mxu0 0
        %3308 = vmatprep.subr.bf16.mxu0 0
        %3309 = vmatpush1.bf16.msra.mxu0 0
        %3310 = vmatprep.subr.bf16.mxu0 %v3290
        %3311 = vmatpush1.bf16.msra.mxu0 %v3289
        %3312 = vmatprep.subr.bf16.mxu0 %v3288
        %3313 = vmatpush1.bf16.msra.mxu0 %v3287
        %3314 = vmatprep.subr.bf16.mxu0 0
        %3315 = vmatpush2.bf16.msra.mxu0 0
        %3316 = vmatprep.subr.bf16.mxu0 0
        %3317 = vmatpush2.bf16.msra.mxu0 0
        %3318 = vmatprep.subr.bf16.mxu0 0
        %3319 = vmatpush2.bf16.msra.mxu0 0
        %3320 = vmatprep.subr.bf16.mxu0 0
        %3321 = vmatpush2.bf16.msra.mxu0 0
        %3322 = vmatprep.subr.bf16.mxu0 0
        %3323 = vmatpush2.bf16.msra.mxu0 0
        %3324 = vmatprep.subr.bf16.mxu0 0
        %3325 = vmatpush2.bf16.msra.mxu0 0
        %3326 = vmatprep.subr.bf16.mxu0 0
        %3327 = vmatpush2.bf16.msra.mxu0 0
        %3328 = vmatprep.subr.bf16.mxu0 0
        %3329 = vmatpush2.bf16.msra.mxu0 0
        %3330 = vmatprep.mubr.bf16.mxu0 0
        %3331 = vmatmul.mubr.bf16.gmra.mxu0 %v3296
        %v3332 = vpop.f32.mrf.mxu0
        %v3333 = vadd.f32 0.0, %v3332
        %v3334 = vpop.f32.mrf.mxu0
        %v3335 = vadd.f32 0.0, %v3334
        %v3336 = vpop.f32.mrf.mxu0
        %v3337 = vpop.f32.mrf.mxu0
        %3338 = vdwg.mxu0
        %v3339 = vadd.f32 %v2698, %v3333
        %v3340 = vadd.f32 %v2699, %v3335
        %s3341 = scalar_lea.vmem %s10, 96
        %v3342 = vld [vmem:[%s3341] sm:$0xf]
        %v3343 = vld [vmem:[%s3341 + $0x4] sm:$0xf]
        %v3344 = vld [vmem:[%s3341 + $0x8] sm:$0xf]
        %v3345 = vld [vmem:[%s3341 + $0xc] sm:$0xf]
        %v3346 = vld [vmem:[%s3341 + $0x10] sm:$0xf]
        %v3347 = vld [vmem:[%s3341 + $0x14] sm:$0xf]
        %v3348 = vld [vmem:[%s3341 + $0x18] sm:$0xf]
        %v3349 = vld [vmem:[%s3341 + $0x1c] sm:$0xf]
        %v3358 = vunpack.c.l.b16 %v3342
        %v3359 = vunpack.c.l.b16 %v3343
        %v3360 = vunpack.c.l.b16 %v3344
        %v3361 = vunpack.c.l.b16 %v3345
        %v3362 = vunpack.c.l.b16 %v3346
        %v3363 = vunpack.c.l.b16 %v3347
        %v3364 = vunpack.c.l.b16 %v3348
        %v3365 = vunpack.c.l.b16 %v3349
        %v3366 = vpack.c.b16 %v3359, %v3358
        %v3367 = vpack.c.b16 %v3361, %v3360
        %v3368 = vpack.c.b16 %v3363, %v3362
        %v3369 = vpack.c.b16 %v3365, %v3364
        %3374 = vmatprep.subr.bf16.mxu0 0
        %3375 = vmatpush1.bf16.msra.mxu0 0
        %3376 = vmatprep.subr.bf16.mxu0 0
        %3377 = vmatpush1.bf16.msra.mxu0 0
        %3378 = vmatprep.subr.bf16.mxu0 0
        %3379 = vmatpush1.bf16.msra.mxu0 0
        %3380 = vmatprep.subr.bf16.mxu0 0
        %3381 = vmatpush1.bf16.msra.mxu0 0
        %3382 = vmatprep.subr.bf16.mxu0 0
        %3383 = vmatpush1.bf16.msra.mxu0 %v3369
        %3384 = vmatprep.subr.bf16.mxu0 0
        %3385 = vmatpush1.bf16.msra.mxu0 %v3368
        %3386 = vmatprep.subr.bf16.mxu0 0
        %3387 = vmatpush1.bf16.msra.mxu0 %v3367
        %3388 = vmatprep.subr.bf16.mxu0 0
        %3389 = vmatpush1.bf16.msra.mxu0 %v3366
        %3390 = vmatprep.subr.bf16.mxu0 0
        %3391 = vmatpush2.bf16.msra.mxu0 0
        %3392 = vmatprep.subr.bf16.mxu0 0
        %3393 = vmatpush2.bf16.msra.mxu0 0
        %3394 = vmatprep.subr.bf16.mxu0 0
        %3395 = vmatpush2.bf16.msra.mxu0 0
        %3396 = vmatprep.subr.bf16.mxu0 0
        %3397 = vmatpush2.bf16.msra.mxu0 0
        %3398 = vmatprep.subr.bf16.mxu0 0
        %3399 = vmatpush2.bf16.msra.mxu0 0
        %3400 = vmatprep.subr.bf16.mxu0 0
        %3401 = vmatpush2.bf16.msra.mxu0 0
        %3402 = vmatprep.subr.bf16.mxu0 0
        %3403 = vmatpush2.bf16.msra.mxu0 0
        %3404 = vmatprep.subr.bf16.mxu0 0
        %3405 = vmatpush2.bf16.msra.mxu0 0
        %3406 = vmatprep.mubr.bf16.mxu0 0
        %3407 = vmatmul.mubr.bf16.gmra.mxu0 %v1439
        %v3408 = vpop.f32.mrf.mxu0
        %v3409 = vadd.f32 0.0, %v3408
        %v3410 = vpop.f32.mrf.mxu0
        %v3411 = vpop.f32.mrf.mxu0
        %v3412 = vpop.f32.mrf.mxu0
        %3413 = vdwg.mxu0
        %s3414 = scalar_lea.vmem %s11, 96
        %v3415 = vld [vmem:[%s3414] sm:$0xf]
        %v3416 = vld [vmem:[%s3414 + $0x4] sm:$0xf]
        %v3417 = vld [vmem:[%s3414 + $0x8] sm:$0xf]
        %v3418 = vld [vmem:[%s3414 + $0xc] sm:$0xf]
        %v3419 = vld [vmem:[%s3414 + $0x10] sm:$0xf]
        %v3420 = vld [vmem:[%s3414 + $0x14] sm:$0xf]
        %v3421 = vld [vmem:[%s3414 + $0x18] sm:$0xf]
        %v3422 = vld [vmem:[%s3414 + $0x1c] sm:$0xf]
        %v3431 = vunpack.c.l.b16 %v3415
        %v3432 = vunpack.c.l.b16 %v3416
        %v3433 = vunpack.c.l.b16 %v3417
        %v3434 = vunpack.c.l.b16 %v3418
        %v3435 = vunpack.c.l.b16 %v3419
        %v3436 = vunpack.c.l.b16 %v3420
        %v3437 = vunpack.c.l.b16 %v3421
        %v3438 = vunpack.c.l.b16 %v3422
        %v3439 = vpack.c.b16 %v3432, %v3431
        %v3440 = vpack.c.b16 %v3434, %v3433
        %v3441 = vpack.c.b16 %v3436, %v3435
        %v3442 = vpack.c.b16 %v3438, %v3437
        %3447 = vmatprep.subr.bf16.mxu0 0
        %3448 = vmatpush1.bf16.msra.mxu0 0
        %3449 = vmatprep.subr.bf16.mxu0 0
        %3450 = vmatpush1.bf16.msra.mxu0 0
        %3451 = vmatprep.subr.bf16.mxu0 0
        %3452 = vmatpush1.bf16.msra.mxu0 0
        %3453 = vmatprep.subr.bf16.mxu0 0
        %3454 = vmatpush1.bf16.msra.mxu0 0
        %3455 = vmatprep.subr.bf16.mxu0 0
        %3456 = vmatpush1.bf16.msra.mxu0 %v3442
        %3457 = vmatprep.subr.bf16.mxu0 0
        %3458 = vmatpush1.bf16.msra.mxu0 %v3441
        %3459 = vmatprep.subr.bf16.mxu0 0
        %3460 = vmatpush1.bf16.msra.mxu0 %v3440
        %3461 = vmatprep.subr.bf16.mxu0 0
        %3462 = vmatpush1.bf16.msra.mxu0 %v3439
        %3463 = vmatprep.subr.bf16.mxu0 0
        %3464 = vmatpush2.bf16.msra.mxu0 0
        %3465 = vmatprep.subr.bf16.mxu0 0
        %3466 = vmatpush2.bf16.msra.mxu0 0
        %3467 = vmatprep.subr.bf16.mxu0 0
        %3468 = vmatpush2.bf16.msra.mxu0 0
        %3469 = vmatprep.subr.bf16.mxu0 0
        %3470 = vmatpush2.bf16.msra.mxu0 0
        %3471 = vmatprep.subr.bf16.mxu0 0
        %3472 = vmatpush2.bf16.msra.mxu0 0
        %3473 = vmatprep.subr.bf16.mxu0 0
        %3474 = vmatpush2.bf16.msra.mxu0 0
        %3475 = vmatprep.subr.bf16.mxu0 0
        %3476 = vmatpush2.bf16.msra.mxu0 0
        %3477 = vmatprep.subr.bf16.mxu0 0
        %3478 = vmatpush2.bf16.msra.mxu0 0
        %3479 = vmatprep.mubr.bf16.mxu0 0
        %3480 = vmatmul.mubr.bf16.gmra.mxu0 %v1439
        %v3481 = vpop.f32.mrf.mxu0
        %v3482 = vadd.f32 0.0, %v3481
        %v3483 = vpop.f32.mrf.mxu0
        %v3484 = vpop.f32.mrf.mxu0
        %v3485 = vpop.f32.mrf.mxu0
        %3486 = vdwg.mxu0
        %s3487 = scalar_lea.vmem %s12, 96
        %v3488 = vld [vmem:[%s3487] sm:$0xf]
        %v3489 = vld [vmem:[%s3487 + $0x4] sm:$0xf]
        %v3490 = vld [vmem:[%s3487 + $0x8] sm:$0xf]
        %v3491 = vld [vmem:[%s3487 + $0xc] sm:$0xf]
        %v3492 = vld [vmem:[%s3487 + $0x10] sm:$0xf]
        %v3493 = vld [vmem:[%s3487 + $0x14] sm:$0xf]
        %v3494 = vld [vmem:[%s3487 + $0x18] sm:$0xf]
        %v3495 = vld [vmem:[%s3487 + $0x1c] sm:$0xf]
        %v3504 = vunpack.c.l.b16 %v3488
        %v3505 = vunpack.c.l.b16 %v3489
        %v3506 = vunpack.c.l.b16 %v3490
        %v3507 = vunpack.c.l.b16 %v3491
        %v3508 = vunpack.c.l.b16 %v3492
        %v3509 = vunpack.c.l.b16 %v3493
        %v3510 = vunpack.c.l.b16 %v3494
        %v3511 = vunpack.c.l.b16 %v3495
        %v3512 = vpack.c.b16 %v3505, %v3504
        %v3513 = vpack.c.b16 %v3507, %v3506
        %v3514 = vpack.c.b16 %v3509, %v3508
        %v3515 = vpack.c.b16 %v3511, %v3510
        %3520 = vmatprep.subr.bf16.mxu0 0
        %3521 = vmatpush1.bf16.msra.mxu0 0
        %3522 = vmatprep.subr.bf16.mxu0 0
        %3523 = vmatpush1.bf16.msra.mxu0 0
        %3524 = vmatprep.subr.bf16.mxu0 0
        %3525 = vmatpush1.bf16.msra.mxu0 0
        %3526 = vmatprep.subr.bf16.mxu0 0
        %3527 = vmatpush1.bf16.msra.mxu0 0
        %3528 = vmatprep.subr.bf16.mxu0 0
        %3529 = vmatpush1.bf16.msra.mxu0 %v3515
        %3530 = vmatprep.subr.bf16.mxu0 0
        %3531 = vmatpush1.bf16.msra.mxu0 %v3514
        %3532 = vmatprep.subr.bf16.mxu0 0
        %3533 = vmatpush1.bf16.msra.mxu0 %v3513
        %3534 = vmatprep.subr.bf16.mxu0 0
        %3535 = vmatpush1.bf16.msra.mxu0 %v3512
        %3536 = vmatprep.subr.bf16.mxu0 0
        %3537 = vmatpush2.bf16.msra.mxu0 0
        %3538 = vmatprep.subr.bf16.mxu0 0
        %3539 = vmatpush2.bf16.msra.mxu0 0
        %3540 = vmatprep.subr.bf16.mxu0 0
        %3541 = vmatpush2.bf16.msra.mxu0 0
        %3542 = vmatprep.subr.bf16.mxu0 0
        %3543 = vmatpush2.bf16.msra.mxu0 0
        %3544 = vmatprep.subr.bf16.mxu0 0
        %3545 = vmatpush2.bf16.msra.mxu0 0
        %3546 = vmatprep.subr.bf16.mxu0 0
        %3547 = vmatpush2.bf16.msra.mxu0 0
        %3548 = vmatprep.subr.bf16.mxu0 0
        %3549 = vmatpush2.bf16.msra.mxu0 0
        %3550 = vmatprep.subr.bf16.mxu0 0
        %3551 = vmatpush2.bf16.msra.mxu0 0
        %3552 = vmatprep.mubr.bf16.mxu0 0
        %3553 = vmatmul.mubr.bf16.gmra.mxu0 %v1439
        %v3554 = vpop.f32.mrf.mxu0
        %v3555 = vadd.f32 0.0, %v3554
        %v3556 = vpop.f32.mrf.mxu0
        %v3557 = vpop.f32.mrf.mxu0
        %v3558 = vpop.f32.mrf.mxu0
        %3559 = vdwg.mxu0
        %v3560 = vmul.f32 %v3482, %v1392
        %v3561 = vmul.f32 %v3555, %v1393
        %v3562 = vsub.f32 %v3560, %v3561
        %v3563 = vmul.f32 %v3555, %v1392
        %v3564 = vmul.f32 %v3482, %v1393
        %v3565 = vadd.f32 %v3563, %v3564
        %s3566 = scalar_lea.vmem %s13, 96
        %v3567 = vld [vmem:[%s3566] sm:$0xf]
        %v3568 = vld [vmem:[%s3566 + $0x4] sm:$0xf]
        %v3569 = vld [vmem:[%s3566 + $0x8] sm:$0xf]
        %v3570 = vld [vmem:[%s3566 + $0xc] sm:$0xf]
        %v3571 = vld [vmem:[%s3566 + $0x10] sm:$0xf]
        %v3572 = vld [vmem:[%s3566 + $0x14] sm:$0xf]
        %v3573 = vld [vmem:[%s3566 + $0x18] sm:$0xf]
        %v3574 = vld [vmem:[%s3566 + $0x1c] sm:$0xf]
        %v3583 = vunpack.c.l.b16 %v3567
        %v3584 = vunpack.c.l.b16 %v3568
        %v3585 = vunpack.c.l.b16 %v3569
        %v3586 = vunpack.c.l.b16 %v3570
        %v3587 = vunpack.c.l.b16 %v3571
        %v3588 = vunpack.c.l.b16 %v3572
        %v3589 = vunpack.c.l.b16 %v3573
        %v3590 = vunpack.c.l.b16 %v3574
        %v3591 = vpack.c.b16 %v3584, %v3583
        %v3592 = vpack.c.b16 %v3586, %v3585
        %v3593 = vpack.c.b16 %v3588, %v3587
        %v3594 = vpack.c.b16 %v3590, %v3589
        %3599 = vmatprep.subr.bf16.mxu0 0
        %3600 = vmatpush1.bf16.msra.mxu0 0
        %3601 = vmatprep.subr.bf16.mxu0 0
        %3602 = vmatpush1.bf16.msra.mxu0 0
        %3603 = vmatprep.subr.bf16.mxu0 0
        %3604 = vmatpush1.bf16.msra.mxu0 0
        %3605 = vmatprep.subr.bf16.mxu0 0
        %3606 = vmatpush1.bf16.msra.mxu0 0
        %3607 = vmatprep.subr.bf16.mxu0 0
        %3608 = vmatpush1.bf16.msra.mxu0 %v3594
        %3609 = vmatprep.subr.bf16.mxu0 0
        %3610 = vmatpush1.bf16.msra.mxu0 %v3593
        %3611 = vmatprep.subr.bf16.mxu0 0
        %3612 = vmatpush1.bf16.msra.mxu0 %v3592
        %3613 = vmatprep.subr.bf16.mxu0 0
        %3614 = vmatpush1.bf16.msra.mxu0 %v3591
        %3615 = vmatprep.subr.bf16.mxu0 0
        %3616 = vmatpush2.bf16.msra.mxu0 0
        %3617 = vmatprep.subr.bf16.mxu0 0
        %3618 = vmatpush2.bf16.msra.mxu0 0
        %3619 = vmatprep.subr.bf16.mxu0 0
        %3620 = vmatpush2.bf16.msra.mxu0 0
        %3621 = vmatprep.subr.bf16.mxu0 0
        %3622 = vmatpush2.bf16.msra.mxu0 0
        %3623 = vmatprep.subr.bf16.mxu0 0
        %3624 = vmatpush2.bf16.msra.mxu0 0
        %3625 = vmatprep.subr.bf16.mxu0 0
        %3626 = vmatpush2.bf16.msra.mxu0 0
        %3627 = vmatprep.subr.bf16.mxu0 0
        %3628 = vmatpush2.bf16.msra.mxu0 0
        %3629 = vmatprep.subr.bf16.mxu0 0
        %3630 = vmatpush2.bf16.msra.mxu0 0
        %3631 = vmatprep.mubr.bf16.mxu0 0
        %3632 = vmatmul.mubr.bf16.gmra.mxu0 %v1665
        %v3633 = vpop.f32.mrf.mxu0
        %v3634 = vadd.f32 0.0, %v3633
        %v3635 = vpop.f32.mrf.mxu0
        %v3636 = vpop.f32.mrf.mxu0
        %v3637 = vpop.f32.mrf.mxu0
        %3638 = vdwg.mxu0
        %s3639 = scalar_lea.vmem %s14, 96
        %v3640 = vld [vmem:[%s3639] sm:$0xf]
        %v3641 = vld [vmem:[%s3639 + $0x4] sm:$0xf]
        %v3642 = vld [vmem:[%s3639 + $0x8] sm:$0xf]
        %v3643 = vld [vmem:[%s3639 + $0xc] sm:$0xf]
        %v3644 = vld [vmem:[%s3639 + $0x10] sm:$0xf]
        %v3645 = vld [vmem:[%s3639 + $0x14] sm:$0xf]
        %v3646 = vld [vmem:[%s3639 + $0x18] sm:$0xf]
        %v3647 = vld [vmem:[%s3639 + $0x1c] sm:$0xf]
        %v3656 = vunpack.c.l.b16 %v3640
        %v3657 = vunpack.c.l.b16 %v3641
        %v3658 = vunpack.c.l.b16 %v3642
        %v3659 = vunpack.c.l.b16 %v3643
        %v3660 = vunpack.c.l.b16 %v3644
        %v3661 = vunpack.c.l.b16 %v3645
        %v3662 = vunpack.c.l.b16 %v3646
        %v3663 = vunpack.c.l.b16 %v3647
        %v3664 = vpack.c.b16 %v3657, %v3656
        %v3665 = vpack.c.b16 %v3659, %v3658
        %v3666 = vpack.c.b16 %v3661, %v3660
        %v3667 = vpack.c.b16 %v3663, %v3662
        %3672 = vmatprep.subr.bf16.mxu0 0
        %3673 = vmatpush1.bf16.msra.mxu0 0
        %3674 = vmatprep.subr.bf16.mxu0 0
        %3675 = vmatpush1.bf16.msra.mxu0 0
        %3676 = vmatprep.subr.bf16.mxu0 0
        %3677 = vmatpush1.bf16.msra.mxu0 0
        %3678 = vmatprep.subr.bf16.mxu0 0
        %3679 = vmatpush1.bf16.msra.mxu0 0
        %3680 = vmatprep.subr.bf16.mxu0 0
        %3681 = vmatpush1.bf16.msra.mxu0 %v3667
        %3682 = vmatprep.subr.bf16.mxu0 0
        %3683 = vmatpush1.bf16.msra.mxu0 %v3666
        %3684 = vmatprep.subr.bf16.mxu0 0
        %3685 = vmatpush1.bf16.msra.mxu0 %v3665
        %3686 = vmatprep.subr.bf16.mxu0 0
        %3687 = vmatpush1.bf16.msra.mxu0 %v3664
        %3688 = vmatprep.subr.bf16.mxu0 0
        %3689 = vmatpush2.bf16.msra.mxu0 0
        %3690 = vmatprep.subr.bf16.mxu0 0
        %3691 = vmatpush2.bf16.msra.mxu0 0
        %3692 = vmatprep.subr.bf16.mxu0 0
        %3693 = vmatpush2.bf16.msra.mxu0 0
        %3694 = vmatprep.subr.bf16.mxu0 0
        %3695 = vmatpush2.bf16.msra.mxu0 0
        %3696 = vmatprep.subr.bf16.mxu0 0
        %3697 = vmatpush2.bf16.msra.mxu0 0
        %3698 = vmatprep.subr.bf16.mxu0 0
        %3699 = vmatpush2.bf16.msra.mxu0 0
        %3700 = vmatprep.subr.bf16.mxu0 0
        %3701 = vmatpush2.bf16.msra.mxu0 0
        %3702 = vmatprep.subr.bf16.mxu0 0
        %3703 = vmatpush2.bf16.msra.mxu0 0
        %3704 = vmatprep.mubr.bf16.mxu0 0
        %3705 = vmatmul.mubr.bf16.gmra.mxu0 %v1665
        %v3706 = vpop.f32.mrf.mxu0
        %v3707 = vadd.f32 0.0, %v3706
        %v3708 = vpop.f32.mrf.mxu0
        %v3709 = vpop.f32.mrf.mxu0
        %v3710 = vpop.f32.mrf.mxu0
        %3711 = vdwg.mxu0
        %v3712 = vpack.c.bf16 %v3409, %v3409
        %v3713 = vpack.c.bf16 %v3634, %v3634
        %v3714 = vpack.c.bf16 %v3562, %v3562
        %v3716 = vsel %vm1783, %v3714, 0
        %3718 = vmatprep.subr.bf16.mxu0 0
        %3719 = vmatpush1.bf16.xpose.msra.mxu0 0
        %3720 = vmatprep.subr.bf16.mxu0 0
        %3721 = vmatpush1.bf16.xpose.msra.mxu0 0
        %3722 = vmatprep.subr.bf16.mxu0 0
        %3723 = vmatpush1.bf16.xpose.msra.mxu0 0
        %3724 = vmatprep.subr.bf16.mxu0 0
        %3725 = vmatpush1.bf16.xpose.msra.mxu0 0
        %3726 = vmatprep.subr.bf16.mxu0 0
        %3727 = vmatpush1.bf16.xpose.msra.mxu0 0
        %3728 = vmatprep.subr.bf16.mxu0 0
        %3729 = vmatpush1.bf16.xpose.msra.mxu0 0
        %3730 = vmatprep.subr.bf16.mxu0 0
        %3731 = vmatpush1.bf16.xpose.msra.mxu0 0
        %3732 = vmatprep.subr.bf16.mxu0 0
        %3733 = vmatpush1.bf16.xpose.msra.mxu0 %v1788
        %3734 = vmatprep.subr.bf16.mxu0 0
        %3735 = vmatpush2.bf16.xpose.msra.mxu0 0
        %3736 = vmatprep.subr.bf16.mxu0 0
        %3737 = vmatpush2.bf16.xpose.msra.mxu0 0
        %3738 = vmatprep.subr.bf16.mxu0 0
        %3739 = vmatpush2.bf16.xpose.msra.mxu0 0
        %3740 = vmatprep.subr.bf16.mxu0 0
        %3741 = vmatpush2.bf16.xpose.msra.mxu0 0
        %3742 = vmatprep.subr.bf16.mxu0 0
        %3743 = vmatpush2.bf16.xpose.msra.mxu0 0
        %3744 = vmatprep.subr.bf16.mxu0 0
        %3745 = vmatpush2.bf16.xpose.msra.mxu0 0
        %3746 = vmatprep.subr.bf16.mxu0 0
        %3747 = vmatpush2.bf16.xpose.msra.mxu0 0
        %3748 = vmatprep.subr.bf16.mxu0 0
        %3749 = vmatpush2.bf16.xpose.msra.mxu0 0
        %3750 = vmatprep.mubr.bf16.mxu0 0
        %3751 = vmatmul.mubr.bf16.gmra.mxu0 %v3716
        %v3752 = vpop.f32.mrf.mxu0
        %v3753 = vadd.f32 0.0, %v3752
        %v3754 = vpop.f32.mrf.mxu0
        %v3755 = vpop.f32.mrf.mxu0
        %v3756 = vpop.f32.mrf.mxu0
        %3757 = vdwg.mxu0
        %v3759 = vsel %vm1830, %v3712, 0
        %v3762 = vsel %vm1830, %v3713, 0
        %3764 = vmatprep.subr.bf16.mxu0 0
        %3765 = vmatpush1.bf16.xpose.msra.mxu0 0
        %3766 = vmatprep.subr.bf16.mxu0 0
        %3767 = vmatpush1.bf16.xpose.msra.mxu0 0
        %3768 = vmatprep.subr.bf16.mxu0 0
        %3769 = vmatpush1.bf16.xpose.msra.mxu0 0
        %3770 = vmatprep.subr.bf16.mxu0 0
        %3771 = vmatpush1.bf16.xpose.msra.mxu0 0
        %3772 = vmatprep.subr.bf16.mxu0 0
        %3773 = vmatpush1.bf16.xpose.msra.mxu0 0
        %3774 = vmatprep.subr.bf16.mxu0 0
        %3775 = vmatpush1.bf16.xpose.msra.mxu0 0
        %3776 = vmatprep.subr.bf16.mxu0 0
        %3777 = vmatpush1.bf16.xpose.msra.mxu0 0
        %3778 = vmatprep.subr.bf16.mxu0 0
        %3779 = vmatpush1.bf16.xpose.msra.mxu0 %v3762
        %3780 = vmatprep.subr.bf16.mxu0 0
        %3781 = vmatpush2.bf16.xpose.msra.mxu0 0
        %3782 = vmatprep.subr.bf16.mxu0 0
        %3783 = vmatpush2.bf16.xpose.msra.mxu0 0
        %3784 = vmatprep.subr.bf16.mxu0 0
        %3785 = vmatpush2.bf16.xpose.msra.mxu0 0
        %3786 = vmatprep.subr.bf16.mxu0 0
        %3787 = vmatpush2.bf16.xpose.msra.mxu0 0
        %3788 = vmatprep.subr.bf16.mxu0 0
        %3789 = vmatpush2.bf16.xpose.msra.mxu0 0
        %3790 = vmatprep.subr.bf16.mxu0 0
        %3791 = vmatpush2.bf16.xpose.msra.mxu0 0
        %3792 = vmatprep.subr.bf16.mxu0 0
        %3793 = vmatpush2.bf16.xpose.msra.mxu0 0
        %3794 = vmatprep.subr.bf16.mxu0 0
        %3795 = vmatpush2.bf16.xpose.msra.mxu0 0
        %3796 = vmatprep.mubr.bf16.mxu0 0
        %3797 = vmatmul.mubr.bf16.gmra.mxu0 %v3759
        %v3798 = vpop.f32.mrf.mxu0
        %v3799 = vadd.f32 %v3753, %v3798
        %v3800 = vpop.f32.mrf.mxu0
        %v3801 = vpop.f32.mrf.mxu0
        %v3802 = vpop.f32.mrf.mxu0
        %3803 = vdwg.mxu0
        %v3804 = vpack.c.bf16 %v3565, %v3565
        %v3806 = vsel %vm1783, %v3804, 0
        %3808 = vmatprep.subr.bf16.mxu0 0
        %3809 = vmatpush1.bf16.xpose.msra.mxu0 0
        %3810 = vmatprep.subr.bf16.mxu0 0
        %3811 = vmatpush1.bf16.xpose.msra.mxu0 0
        %3812 = vmatprep.subr.bf16.mxu0 0
        %3813 = vmatpush1.bf16.xpose.msra.mxu0 0
        %3814 = vmatprep.subr.bf16.mxu0 0
        %3815 = vmatpush1.bf16.xpose.msra.mxu0 0
        %3816 = vmatprep.subr.bf16.mxu0 0
        %3817 = vmatpush1.bf16.xpose.msra.mxu0 0
        %3818 = vmatprep.subr.bf16.mxu0 0
        %3819 = vmatpush1.bf16.xpose.msra.mxu0 0
        %3820 = vmatprep.subr.bf16.mxu0 0
        %3821 = vmatpush1.bf16.xpose.msra.mxu0 0
        %3822 = vmatprep.subr.bf16.mxu0 0
        %3823 = vmatpush1.bf16.xpose.msra.mxu0 %v1883
        %3824 = vmatprep.subr.bf16.mxu0 0
        %3825 = vmatpush2.bf16.xpose.msra.mxu0 0
        %3826 = vmatprep.subr.bf16.mxu0 0
        %3827 = vmatpush2.bf16.xpose.msra.mxu0 0
        %3828 = vmatprep.subr.bf16.mxu0 0
        %3829 = vmatpush2.bf16.xpose.msra.mxu0 0
        %3830 = vmatprep.subr.bf16.mxu0 0
        %3831 = vmatpush2.bf16.xpose.msra.mxu0 0
        %3832 = vmatprep.subr.bf16.mxu0 0
        %3833 = vmatpush2.bf16.xpose.msra.mxu0 0
        %3834 = vmatprep.subr.bf16.mxu0 0
        %3835 = vmatpush2.bf16.xpose.msra.mxu0 0
        %3836 = vmatprep.subr.bf16.mxu0 0
        %3837 = vmatpush2.bf16.xpose.msra.mxu0 0
        %3838 = vmatprep.subr.bf16.mxu0 0
        %3839 = vmatpush2.bf16.xpose.msra.mxu0 0
        %3840 = vmatprep.mubr.bf16.mxu0 0
        %3841 = vmatmul.mubr.bf16.gmra.mxu0 %v3806
        %v3842 = vpop.f32.mrf.mxu0
        %v3843 = vadd.f32 0.0, %v3842
        %v3844 = vpop.f32.mrf.mxu0
        %v3845 = vpop.f32.mrf.mxu0
        %v3846 = vpop.f32.mrf.mxu0
        %3847 = vdwg.mxu0
        %v3848 = vadd.f32 %v3799, %v3843
        %v3849 = vmul.f32 %v3848, 0.14433756
        %v3850 = vsel %vm1404, %v3849, -1e+30
        %v3851 = vsel %vm1783, %v3850, -inf
        %3852 = vmax.xlane.f32.xlu0 %v3851
        %v3853 = vpop.xlane.xlu0 %3852
        %v3854 = vsub.f32 %v3850, %v3853
        %v3855 = vmul.f32 %v3854, 1.442695
        %v3856 = vpow.pop %v3855
        %v3857 = vsel %vm1783, %v3856, 0.0
        %3858 = vadd.xlane.f32.xlu0 %v3857
        %v3859 = vpop.xlane.xlu0 %3858
        %v3860 = vrcp.pop %v3859
        %v3861 = vmul.f32 %v3856, %v3860
        %v3862 = vpack.c.bf16 %v3861, %v3861
        %v3863 = vpack.c.bf16 %v3707, %v3707
        %v3865 = vsel %vm1783, %v3862, 0
        %v3868 = vsel %vm1944, %v3863, 0
        %3870 = vmatprep.subr.bf16.mxu0 0
        %3871 = vmatpush1.bf16.msra.mxu0 0
        %3872 = vmatprep.subr.bf16.mxu0 0
        %3873 = vmatpush1.bf16.msra.mxu0 0
        %3874 = vmatprep.subr.bf16.mxu0 0
        %3875 = vmatpush1.bf16.msra.mxu0 0
        %3876 = vmatprep.subr.bf16.mxu0 0
        %3877 = vmatpush1.bf16.msra.mxu0 0
        %3878 = vmatprep.subr.bf16.mxu0 0
        %3879 = vmatpush1.bf16.msra.mxu0 0
        %3880 = vmatprep.subr.bf16.mxu0 0
        %3881 = vmatpush1.bf16.msra.mxu0 0
        %3882 = vmatprep.subr.bf16.mxu0 0
        %3883 = vmatpush1.bf16.msra.mxu0 0
        %3884 = vmatprep.subr.bf16.mxu0 0
        %3885 = vmatpush1.bf16.msra.mxu0 %v3868
        %3886 = vmatprep.subr.bf16.mxu0 0
        %3887 = vmatpush2.bf16.msra.mxu0 0
        %3888 = vmatprep.subr.bf16.mxu0 0
        %3889 = vmatpush2.bf16.msra.mxu0 0
        %3890 = vmatprep.subr.bf16.mxu0 0
        %3891 = vmatpush2.bf16.msra.mxu0 0
        %3892 = vmatprep.subr.bf16.mxu0 0
        %3893 = vmatpush2.bf16.msra.mxu0 0
        %3894 = vmatprep.subr.bf16.mxu0 0
        %3895 = vmatpush2.bf16.msra.mxu0 0
        %3896 = vmatprep.subr.bf16.mxu0 0
        %3897 = vmatpush2.bf16.msra.mxu0 0
        %3898 = vmatprep.subr.bf16.mxu0 0
        %3899 = vmatpush2.bf16.msra.mxu0 0
        %3900 = vmatprep.subr.bf16.mxu0 0
        %3901 = vmatpush2.bf16.msra.mxu0 0
        %3902 = vmatprep.mubr.bf16.mxu0 0
        %3903 = vmatmul.mubr.bf16.gmra.mxu0 %v3865
        %v3904 = vpop.f32.mrf.mxu0
        %v3905 = vadd.f32 0.0, %v3904
        %v3906 = vpop.f32.mrf.mxu0
        %v3907 = vpop.f32.mrf.mxu0
        %v3908 = vpop.f32.mrf.mxu0
        %3909 = vdwg.mxu0
        %s3910 = scalar_lea.vmem [#allocation5], 96
        %v3911 = vld [vmem:[%s3910] sm:$0xff]
        %v3912 = vld [vmem:[%s3910 + $0x8] sm:$0xff]
        %v3913 = vld [vmem:[%s3910 + $0x10] sm:$0xff]
        %v3914 = vld [vmem:[%s3910 + $0x18] sm:$0xff]
        %v3915 = vpack.c.bf16 %v3905, %v3905
        %v3920 = vunpack.c.l.b16 %v3911
        %v3921 = vunpack.c.h.b16 %v3911
        %v3922 = vunpack.c.l.b16 %v3912
        %v3923 = vunpack.c.h.b16 %v3912
        %v3924 = vunpack.c.l.b16 %v3913
        %v3925 = vunpack.c.h.b16 %v3913
        %v3926 = vunpack.c.l.b16 %v3914
        %v3927 = vunpack.c.h.b16 %v3914
        %v3928 = vpack.c.b16 %v3922, %v3920
        %v3929 = vpack.c.b16 %v3923, %v3921
        %v3930 = vpack.c.b16 %v3926, %v3924
        %v3931 = vpack.c.b16 %v3927, %v3925
        %v3937 = vsel %vm1830, %v3915, 0
        %3939 = vmatprep.subr.bf16.mxu0 0
        %3940 = vmatpush1.bf16.msra.mxu0 0
        %3941 = vmatprep.subr.bf16.mxu0 0
        %3942 = vmatpush1.bf16.msra.mxu0 0
        %3943 = vmatprep.subr.bf16.mxu0 0
        %3944 = vmatpush1.bf16.msra.mxu0 0
        %3945 = vmatprep.subr.bf16.mxu0 0
        %3946 = vmatpush1.bf16.msra.mxu0 0
        %3947 = vmatprep.subr.bf16.mxu0 0
        %3948 = vmatpush1.bf16.msra.mxu0 0
        %3949 = vmatprep.subr.bf16.mxu0 0
        %3950 = vmatpush1.bf16.msra.mxu0 0
        %3951 = vmatprep.subr.bf16.mxu0 %v3931
        %3952 = vmatpush1.bf16.msra.mxu0 %v3930
        %3953 = vmatprep.subr.bf16.mxu0 %v3929
        %3954 = vmatpush1.bf16.msra.mxu0 %v3928
        %3955 = vmatprep.subr.bf16.mxu0 0
        %3956 = vmatpush2.bf16.msra.mxu0 0
        %3957 = vmatprep.subr.bf16.mxu0 0
        %3958 = vmatpush2.bf16.msra.mxu0 0
        %3959 = vmatprep.subr.bf16.mxu0 0
        %3960 = vmatpush2.bf16.msra.mxu0 0
        %3961 = vmatprep.subr.bf16.mxu0 0
        %3962 = vmatpush2.bf16.msra.mxu0 0
        %3963 = vmatprep.subr.bf16.mxu0 0
        %3964 = vmatpush2.bf16.msra.mxu0 0
        %3965 = vmatprep.subr.bf16.mxu0 0
        %3966 = vmatpush2.bf16.msra.mxu0 0
        %3967 = vmatprep.subr.bf16.mxu0 0
        %3968 = vmatpush2.bf16.msra.mxu0 0
        %3969 = vmatprep.subr.bf16.mxu0 0
        %3970 = vmatpush2.bf16.msra.mxu0 0
        %3971 = vmatprep.mubr.bf16.mxu0 0
        %3972 = vmatmul.mubr.bf16.gmra.mxu0 %v3937
        %v3973 = vpop.f32.mrf.mxu0
        %v3974 = vadd.f32 0.0, %v3973
        %v3975 = vpop.f32.mrf.mxu0
        %v3976 = vadd.f32 0.0, %v3975
        %v3977 = vpop.f32.mrf.mxu0
        %v3978 = vpop.f32.mrf.mxu0
        %3979 = vdwg.mxu0
        %v3980 = vadd.f32 %v3339, %v3974
        %v3981 = vadd.f32 %v3340, %v3976
        %v3982 = vld [vmem:[%s16] sm:$0x3]
        %v3983 = vmul.f32 %v3980, %v3980
        %v3984 = vmul.f32 %v3981, %v3981
        %v3985 = vadd.f32 %v3983, %v3984
        %3986 = vadd.xlane.f32.xlu0 %v3985
        %v3987 = vpop.xlane.xlu0 %3986
        %v3988 = vmul.f32 %v3987, %v665
        %v3989 = vadd.f32 %v3988, 1e-06
        %v3990 = vrsqrt.pop %v3989
        %v3991 = vmul.f32 %v3980, %v3990
        %v3992 = vmul.f32 %v3981, %v3990
        %v3994 = vlaneseq
        %v3995 = vshrl.u32 %v3994, 7
        %v3996 = vsub.s32 0, %v3995
        %v3997 = vrot.slane %v3982, %v3996
        %v3998 = vlaneseq
        %v3999 = vshrl.u32 %v3998, 7
        %v4000 = vsub.s32 1, %v3999
        %v4001 = vrot.slane %v3982, %v4000
        %v4004 = vmul.f32 %v3991, %v3997
        %v4005 = vmul.f32 %v3992, %v4001
        %v4006 = vld [vmem:[%s17] sm:$0xff]
        %v4007 = vld [vmem:[%s17 + $0x8] sm:$0xff]
        %v4008 = vld [vmem:[%s17 + $0x10] sm:$0xff]
        %v4009 = vld [vmem:[%s17 + $0x18] sm:$0xff]
        %v4010 = vld [vmem:[%s17 + $0x20] sm:$0xff]
        %v4011 = vld [vmem:[%s17 + $0x28] sm:$0xff]
        %v4012 = vld [vmem:[%s17 + $0x30] sm:$0xff]
        %v4013 = vld [vmem:[%s17 + $0x38] sm:$0xff]
        %v4014 = vld [vmem:[%s17 + $0x40] sm:$0xff]
        %v4015 = vld [vmem:[%s17 + $0x48] sm:$0xff]
        %v4016 = vld [vmem:[%s17 + $0x50] sm:$0xff]
        %v4017 = vld [vmem:[%s17 + $0x58] sm:$0xff]
        %v4018 = vld [vmem:[%s17 + $0x60] sm:$0xff]
        %v4019 = vld [vmem:[%s17 + $0x68] sm:$0xff]
        %v4020 = vld [vmem:[%s17 + $0x70] sm:$0xff]
        %v4021 = vld [vmem:[%s17 + $0x78] sm:$0xff]
        %v4022 = vld [vmem:[%s17 + $0x80] sm:$0xff]
        %v4023 = vld [vmem:[%s17 + $0x88] sm:$0xff]
        %v4024 = vld [vmem:[%s17 + $0x90] sm:$0xff]
        %v4025 = vld [vmem:[%s17 + $0x98] sm:$0xff]
        %v4026 = vld [vmem:[%s17 + $0xa0] sm:$0xff]
        %v4027 = vld [vmem:[%s17 + $0xa8] sm:$0xff]
        %v4028 = vld [vmem:[%s17 + $0xb0] sm:$0xff]
        %v4029 = vld [vmem:[%s17 + $0xb8] sm:$0xff]
        %v4030 = vld [vmem:[%s17 + $0xc0] sm:$0xff]
        %v4031 = vld [vmem:[%s17 + $0xc8] sm:$0xff]
        %v4032 = vld [vmem:[%s17 + $0xd0] sm:$0xff]
        %v4033 = vld [vmem:[%s17 + $0xd8] sm:$0xff]
        %v4034 = vld [vmem:[%s17 + $0xe0] sm:$0xff]
        %v4035 = vld [vmem:[%s17 + $0xe8] sm:$0xff]
        %v4036 = vld [vmem:[%s17 + $0xf0] sm:$0xff]
        %v4037 = vld [vmem:[%s17 + $0xf8] sm:$0xff]
        %v4038 = vld [vmem:[%s17 + $0x100] sm:$0xff]
        %v4039 = vld [vmem:[%s17 + $0x108] sm:$0xff]
        %v4040 = vld [vmem:[%s17 + $0x110] sm:$0xff]
        %v4041 = vld [vmem:[%s17 + $0x118] sm:$0xff]
        %v4042 = vld [vmem:[%s17 + $0x120] sm:$0xff]
        %v4043 = vld [vmem:[%s17 + $0x128] sm:$0xff]
        %v4044 = vld [vmem:[%s17 + $0x130] sm:$0xff]
        %v4045 = vld [vmem:[%s17 + $0x138] sm:$0xff]
        %v4046 = vld [vmem:[%s17 + $0x140] sm:$0xff]
        %v4047 = vld [vmem:[%s17 + $0x148] sm:$0xff]
        %v4048 = vld [vmem:[%s17 + $0x150] sm:$0xff]
        %v4049 = vld [vmem:[%s17 + $0x158] sm:$0xff]
        %v4050 = vld [vmem:[%s17 + $0x160] sm:$0xff]
        %v4051 = vld [vmem:[%s17 + $0x168] sm:$0xff]
        %v4052 = vld [vmem:[%s17 + $0x170] sm:$0xff]
        %v4053 = vld [vmem:[%s17 + $0x178] sm:$0xff]
        %v4054 = vld [vmem:[%s17 + $0x180] sm:$0xff]
        %v4055 = vld [vmem:[%s17 + $0x188] sm:$0xff]
        %v4056 = vld [vmem:[%s17 + $0x190] sm:$0xff]
        %v4057 = vld [vmem:[%s17 + $0x198] sm:$0xff]
        %v4058 = vld [vmem:[%s17 + $0x1a0] sm:$0xff]
        %v4059 = vld [vmem:[%s17 + $0x1a8] sm:$0xff]
        %v4060 = vld [vmem:[%s17 + $0x1b0] sm:$0xff]
        %v4061 = vld [vmem:[%s17 + $0x1b8] sm:$0xff]
        %v4062 = vld [vmem:[%s17 + $0x1c0] sm:$0xff]
        %v4063 = vld [vmem:[%s17 + $0x1c8] sm:$0xff]
        %v4064 = vld [vmem:[%s17 + $0x1d0] sm:$0xff]
        %v4065 = vld [vmem:[%s17 + $0x1d8] sm:$0xff]
        %v4066 = vld [vmem:[%s17 + $0x1e0] sm:$0xff]
        %v4067 = vld [vmem:[%s17 + $0x1e8] sm:$0xff]
        %v4068 = vld [vmem:[%s17 + $0x1f0] sm:$0xff]
        %v4069 = vld [vmem:[%s17 + $0x1f8] sm:$0xff]
        %v4070 = vpack.c.bf16 %v4004, %v4004
        %v4071 = vpack.c.bf16 %v4005, %v4005
        %v4136 = vunpack.c.l.b16 %v4006
        %v4137 = vunpack.c.h.b16 %v4006
        %v4138 = vunpack.c.l.b16 %v4007
        %v4139 = vunpack.c.h.b16 %v4007
        %v4140 = vunpack.c.l.b16 %v4008
        %v4141 = vunpack.c.h.b16 %v4008
        %v4142 = vunpack.c.l.b16 %v4009
        %v4143 = vunpack.c.h.b16 %v4009
        %v4144 = vunpack.c.l.b16 %v4010
        %v4145 = vunpack.c.h.b16 %v4010
        %v4146 = vunpack.c.l.b16 %v4011
        %v4147 = vunpack.c.h.b16 %v4011
        %v4148 = vunpack.c.l.b16 %v4012
        %v4149 = vunpack.c.h.b16 %v4012
        %v4150 = vunpack.c.l.b16 %v4013
        %v4151 = vunpack.c.h.b16 %v4013
        %v4152 = vunpack.c.l.b16 %v4014
        %v4153 = vunpack.c.h.b16 %v4014
        %v4154 = vunpack.c.l.b16 %v4015
        %v4155 = vunpack.c.h.b16 %v4015
        %v4156 = vunpack.c.l.b16 %v4016
        %v4157 = vunpack.c.h.b16 %v4016
        %v4158 = vunpack.c.l.b16 %v4017
        %v4159 = vunpack.c.h.b16 %v4017
        %v4160 = vunpack.c.l.b16 %v4018
        %v4161 = vunpack.c.h.b16 %v4018
        %v4162 = vunpack.c.l.b16 %v4019
        %v4163 = vunpack.c.h.b16 %v4019
        %v4164 = vunpack.c.l.b16 %v4020
        %v4165 = vunpack.c.h.b16 %v4020
        %v4166 = vunpack.c.l.b16 %v4021
        %v4167 = vunpack.c.h.b16 %v4021
        %v4168 = vunpack.c.l.b16 %v4022
        %v4169 = vunpack.c.h.b16 %v4022
        %v4170 = vunpack.c.l.b16 %v4023
        %v4171 = vunpack.c.h.b16 %v4023
        %v4172 = vunpack.c.l.b16 %v4024
        %v4173 = vunpack.c.h.b16 %v4024
        %v4174 = vunpack.c.l.b16 %v4025
        %v4175 = vunpack.c.h.b16 %v4025
        %v4176 = vunpack.c.l.b16 %v4026
        %v4177 = vunpack.c.h.b16 %v4026
        %v4178 = vunpack.c.l.b16 %v4027
        %v4179 = vunpack.c.h.b16 %v4027
        %v4180 = vunpack.c.l.b16 %v4028
        %v4181 = vunpack.c.h.b16 %v4028
        %v4182 = vunpack.c.l.b16 %v4029
        %v4183 = vunpack.c.h.b16 %v4029
        %v4184 = vunpack.c.l.b16 %v4030
        %v4185 = vunpack.c.h.b16 %v4030
        %v4186 = vunpack.c.l.b16 %v4031
        %v4187 = vunpack.c.h.b16 %v4031
        %v4188 = vunpack.c.l.b16 %v4032
        %v4189 = vunpack.c.h.b16 %v4032
        %v4190 = vunpack.c.l.b16 %v4033
        %v4191 = vunpack.c.h.b16 %v4033
        %v4192 = vunpack.c.l.b16 %v4034
        %v4193 = vunpack.c.h.b16 %v4034
        %v4194 = vunpack.c.l.b16 %v4035
        %v4195 = vunpack.c.h.b16 %v4035
        %v4196 = vunpack.c.l.b16 %v4036
        %v4197 = vunpack.c.h.b16 %v4036
        %v4198 = vunpack.c.l.b16 %v4037
        %v4199 = vunpack.c.h.b16 %v4037
        %v4200 = vunpack.c.l.b16 %v4038
        %v4201 = vunpack.c.h.b16 %v4038
        %v4202 = vunpack.c.l.b16 %v4039
        %v4203 = vunpack.c.h.b16 %v4039
        %v4204 = vunpack.c.l.b16 %v4040
        %v4205 = vunpack.c.h.b16 %v4040
        %v4206 = vunpack.c.l.b16 %v4041
        %v4207 = vunpack.c.h.b16 %v4041
        %v4208 = vunpack.c.l.b16 %v4042
        %v4209 = vunpack.c.h.b16 %v4042
        %v4210 = vunpack.c.l.b16 %v4043
        %v4211 = vunpack.c.h.b16 %v4043
        %v4212 = vunpack.c.l.b16 %v4044
        %v4213 = vunpack.c.h.b16 %v4044
        %v4214 = vunpack.c.l.b16 %v4045
        %v4215 = vunpack.c.h.b16 %v4045
        %v4216 = vunpack.c.l.b16 %v4046
        %v4217 = vunpack.c.h.b16 %v4046
        %v4218 = vunpack.c.l.b16 %v4047
        %v4219 = vunpack.c.h.b16 %v4047
        %v4220 = vunpack.c.l.b16 %v4048
        %v4221 = vunpack.c.h.b16 %v4048
        %v4222 = vunpack.c.l.b16 %v4049
        %v4223 = vunpack.c.h.b16 %v4049
        %v4224 = vunpack.c.l.b16 %v4050
        %v4225 = vunpack.c.h.b16 %v4050
        %v4226 = vunpack.c.l.b16 %v4051
        %v4227 = vunpack.c.h.b16 %v4051
        %v4228 = vunpack.c.l.b16 %v4052
        %v4229 = vunpack.c.h.b16 %v4052
        %v4230 = vunpack.c.l.b16 %v4053
        %v4231 = vunpack.c.h.b16 %v4053
        %v4232 = vunpack.c.l.b16 %v4054
        %v4233 = vunpack.c.h.b16 %v4054
        %v4234 = vunpack.c.l.b16 %v4055
        %v4235 = vunpack.c.h.b16 %v4055
        %v4236 = vunpack.c.l.b16 %v4056
        %v4237 = vunpack.c.h.b16 %v4056
        %v4238 = vunpack.c.l.b16 %v4057
        %v4239 = vunpack.c.h.b16 %v4057
        %v4240 = vunpack.c.l.b16 %v4058
        %v4241 = vunpack.c.h.b16 %v4058
        %v4242 = vunpack.c.l.b16 %v4059
        %v4243 = vunpack.c.h.b16 %v4059
        %v4244 = vunpack.c.l.b16 %v4060
        %v4245 = vunpack.c.h.b16 %v4060
        %v4246 = vunpack.c.l.b16 %v4061
        %v4247 = vunpack.c.h.b16 %v4061
        %v4248 = vunpack.c.l.b16 %v4062
        %v4249 = vunpack.c.h.b16 %v4062
        %v4250 = vunpack.c.l.b16 %v4063
        %v4251 = vunpack.c.h.b16 %v4063
        %v4252 = vunpack.c.l.b16 %v4064
        %v4253 = vunpack.c.h.b16 %v4064
        %v4254 = vunpack.c.l.b16 %v4065
        %v4255 = vunpack.c.h.b16 %v4065
        %v4256 = vunpack.c.l.b16 %v4066
        %v4257 = vunpack.c.h.b16 %v4066
        %v4258 = vunpack.c.l.b16 %v4067
        %v4259 = vunpack.c.h.b16 %v4067
        %v4260 = vunpack.c.l.b16 %v4068
        %v4261 = vunpack.c.h.b16 %v4068
        %v4262 = vunpack.c.l.b16 %v4069
        %v4263 = vunpack.c.h.b16 %v4069
        %v4264 = vpack.c.b16 %v4140, %v4136
        %v4265 = vpack.c.b16 %v4141, %v4137
        %v4266 = vpack.c.b16 %v4142, %v4138
        %v4267 = vpack.c.b16 %v4143, %v4139
        %v4268 = vpack.c.b16 %v4148, %v4144
        %v4269 = vpack.c.b16 %v4149, %v4145
        %v4270 = vpack.c.b16 %v4150, %v4146
        %v4271 = vpack.c.b16 %v4151, %v4147
        %v4272 = vpack.c.b16 %v4156, %v4152
        %v4273 = vpack.c.b16 %v4157, %v4153
        %v4274 = vpack.c.b16 %v4158, %v4154
        %v4275 = vpack.c.b16 %v4159, %v4155
        %v4276 = vpack.c.b16 %v4164, %v4160
        %v4277 = vpack.c.b16 %v4165, %v4161
        %v4278 = vpack.c.b16 %v4166, %v4162
        %v4279 = vpack.c.b16 %v4167, %v4163
        %v4280 = vpack.c.b16 %v4172, %v4168
        %v4281 = vpack.c.b16 %v4173, %v4169
        %v4282 = vpack.c.b16 %v4174, %v4170
        %v4283 = vpack.c.b16 %v4175, %v4171
        %v4284 = vpack.c.b16 %v4180, %v4176
        %v4285 = vpack.c.b16 %v4181, %v4177
        %v4286 = vpack.c.b16 %v4182, %v4178
        %v4287 = vpack.c.b16 %v4183, %v4179
        %v4288 = vpack.c.b16 %v4188, %v4184
        %v4289 = vpack.c.b16 %v4189, %v4185
        %v4290 = vpack.c.b16 %v4190, %v4186
        %v4291 = vpack.c.b16 %v4191, %v4187
        %v4292 = vpack.c.b16 %v4196, %v4192
        %v4293 = vpack.c.b16 %v4197, %v4193
        %v4294 = vpack.c.b16 %v4198, %v4194
        %v4295 = vpack.c.b16 %v4199, %v4195
        %v4296 = vpack.c.b16 %v4204, %v4200
        %v4297 = vpack.c.b16 %v4205, %v4201
        %v4298 = vpack.c.b16 %v4206, %v4202
        %v4299 = vpack.c.b16 %v4207, %v4203
        %v4300 = vpack.c.b16 %v4212, %v4208
        %v4301 = vpack.c.b16 %v4213, %v4209
        %v4302 = vpack.c.b16 %v4214, %v4210
        %v4303 = vpack.c.b16 %v4215, %v4211
        %v4304 = vpack.c.b16 %v4220, %v4216
        %v4305 = vpack.c.b16 %v4221, %v4217
        %v4306 = vpack.c.b16 %v4222, %v4218
        %v4307 = vpack.c.b16 %v4223, %v4219
        %v4308 = vpack.c.b16 %v4228, %v4224
        %v4309 = vpack.c.b16 %v4229, %v4225
        %v4310 = vpack.c.b16 %v4230, %v4226
        %v4311 = vpack.c.b16 %v4231, %v4227
        %v4312 = vpack.c.b16 %v4236, %v4232
        %v4313 = vpack.c.b16 %v4237, %v4233
        %v4314 = vpack.c.b16 %v4238, %v4234
        %v4315 = vpack.c.b16 %v4239, %v4235
        %v4316 = vpack.c.b16 %v4244, %v4240
        %v4317 = vpack.c.b16 %v4245, %v4241
        %v4318 = vpack.c.b16 %v4246, %v4242
        %v4319 = vpack.c.b16 %v4247, %v4243
        %v4320 = vpack.c.b16 %v4252, %v4248
        %v4321 = vpack.c.b16 %v4253, %v4249
        %v4322 = vpack.c.b16 %v4254, %v4250
        %v4323 = vpack.c.b16 %v4255, %v4251
        %v4324 = vpack.c.b16 %v4260, %v4256
        %v4325 = vpack.c.b16 %v4261, %v4257
        %v4326 = vpack.c.b16 %v4262, %v4258
        %v4327 = vpack.c.b16 %v4263, %v4259
        %4392 = vmatprep.subr.bf16.mxu0 %v4293
        %4393 = vmatpush1.bf16.msra.mxu0 %v4292
        %4394 = vmatprep.subr.bf16.mxu0 %v4289
        %4395 = vmatpush1.bf16.msra.mxu0 %v4288
        %4396 = vmatprep.subr.bf16.mxu0 %v4285
        %4397 = vmatpush1.bf16.msra.mxu0 %v4284
        %4398 = vmatprep.subr.bf16.mxu0 %v4281
        %4399 = vmatpush1.bf16.msra.mxu0 %v4280
        %4400 = vmatprep.subr.bf16.mxu0 %v4277
        %4401 = vmatpush1.bf16.msra.mxu0 %v4276
        %4402 = vmatprep.subr.bf16.mxu0 %v4273
        %4403 = vmatpush1.bf16.msra.mxu0 %v4272
        %4404 = vmatprep.subr.bf16.mxu0 %v4269
        %4405 = vmatpush1.bf16.msra.mxu0 %v4268
        %4406 = vmatprep.subr.bf16.mxu0 %v4265
        %4407 = vmatpush1.bf16.msra.mxu0 %v4264
        %4408 = vmatprep.subr.bf16.mxu0 %v4325
        %4409 = vmatpush2.bf16.msra.mxu0 %v4324
        %4410 = vmatprep.subr.bf16.mxu0 %v4321
        %4411 = vmatpush2.bf16.msra.mxu0 %v4320
        %4412 = vmatprep.subr.bf16.mxu0 %v4317
        %4413 = vmatpush2.bf16.msra.mxu0 %v4316
        %4414 = vmatprep.subr.bf16.mxu0 %v4313
        %4415 = vmatpush2.bf16.msra.mxu0 %v4312
        %4416 = vmatprep.subr.bf16.mxu0 %v4309
        %4417 = vmatpush2.bf16.msra.mxu0 %v4308
        %4418 = vmatprep.subr.bf16.mxu0 %v4305
        %4419 = vmatpush2.bf16.msra.mxu0 %v4304
        %4420 = vmatprep.subr.bf16.mxu0 %v4301
        %4421 = vmatpush2.bf16.msra.mxu0 %v4300
        %4422 = vmatprep.subr.bf16.mxu0 %v4297
        %4423 = vmatpush2.bf16.msra.mxu0 %v4296
        %4424 = vmatprep.mubr.bf16.mxu0 %v4071
        %4425 = vmatmul.mubr.bf16.gmra.mxu0 %v4070
        %v4426 = vpop.f32.mrf.mxu0
        %v4427 = vadd.f32 0.0, %v4426
        %v4428 = vpop.f32.mrf.mxu0
        %v4429 = vadd.f32 0.0, %v4428
        %v4430 = vpop.f32.mrf.mxu0
        %v4431 = vpop.f32.mrf.mxu0
        %4432 = vdwg.mxu0
        %4433 = vmatprep.subr.bf16.mxu0 %v4295
        %4434 = vmatpush1.bf16.msra.mxu0 %v4294
        %4435 = vmatprep.subr.bf16.mxu0 %v4291
        %4436 = vmatpush1.bf16.msra.mxu0 %v4290
        %4437 = vmatprep.subr.bf16.mxu0 %v4287
        %4438 = vmatpush1.bf16.msra.mxu0 %v4286
        %4439 = vmatprep.subr.bf16.mxu0 %v4283
        %4440 = vmatpush1.bf16.msra.mxu0 %v4282
        %4441 = vmatprep.subr.bf16.mxu0 %v4279
        %4442 = vmatpush1.bf16.msra.mxu0 %v4278
        %4443 = vmatprep.subr.bf16.mxu0 %v4275
        %4444 = vmatpush1.bf16.msra.mxu0 %v4274
        %4445 = vmatprep.subr.bf16.mxu0 %v4271
        %4446 = vmatpush1.bf16.msra.mxu0 %v4270
        %4447 = vmatprep.subr.bf16.mxu0 %v4267
        %4448 = vmatpush1.bf16.msra.mxu0 %v4266
        %4449 = vmatprep.subr.bf16.mxu0 %v4327
        %4450 = vmatpush2.bf16.msra.mxu0 %v4326
        %4451 = vmatprep.subr.bf16.mxu0 %v4323
        %4452 = vmatpush2.bf16.msra.mxu0 %v4322
        %4453 = vmatprep.subr.bf16.mxu0 %v4319
        %4454 = vmatpush2.bf16.msra.mxu0 %v4318
        %4455 = vmatprep.subr.bf16.mxu0 %v4315
        %4456 = vmatpush2.bf16.msra.mxu0 %v4314
        %4457 = vmatprep.subr.bf16.mxu0 %v4311
        %4458 = vmatpush2.bf16.msra.mxu0 %v4310
        %4459 = vmatprep.subr.bf16.mxu0 %v4307
        %4460 = vmatpush2.bf16.msra.mxu0 %v4306
        %4461 = vmatprep.subr.bf16.mxu0 %v4303
        %4462 = vmatpush2.bf16.msra.mxu0 %v4302
        %4463 = vmatprep.subr.bf16.mxu0 %v4299
        %4464 = vmatpush2.bf16.msra.mxu0 %v4298
        %4465 = vmatprep.mubr.bf16.mxu0 %v4071
        %4466 = vmatmul.mubr.bf16.gmra.mxu0 %v4070
        %v4467 = vpop.f32.mrf.mxu0
        %v4468 = vadd.f32 0.0, %v4467
        %v4469 = vpop.f32.mrf.mxu0
        %v4470 = vadd.f32 0.0, %v4469
        %v4471 = vpop.f32.mrf.mxu0
        %v4472 = vpop.f32.mrf.mxu0
        %4473 = vdwg.mxu0
        %v4474 = vld [vmem:[%s18] sm:$0xff]
        %v4475 = vld [vmem:[%s18 + $0x8] sm:$0xff]
        %v4476 = vld [vmem:[%s18 + $0x10] sm:$0xff]
        %v4477 = vld [vmem:[%s18 + $0x18] sm:$0xff]
        %v4478 = vld [vmem:[%s18 + $0x20] sm:$0xff]
        %v4479 = vld [vmem:[%s18 + $0x28] sm:$0xff]
        %v4480 = vld [vmem:[%s18 + $0x30] sm:$0xff]
        %v4481 = vld [vmem:[%s18 + $0x38] sm:$0xff]
        %v4482 = vld [vmem:[%s18 + $0x40] sm:$0xff]
        %v4483 = vld [vmem:[%s18 + $0x48] sm:$0xff]
        %v4484 = vld [vmem:[%s18 + $0x50] sm:$0xff]
        %v4485 = vld [vmem:[%s18 + $0x58] sm:$0xff]
        %v4486 = vld [vmem:[%s18 + $0x60] sm:$0xff]
        %v4487 = vld [vmem:[%s18 + $0x68] sm:$0xff]
        %v4488 = vld [vmem:[%s18 + $0x70] sm:$0xff]
        %v4489 = vld [vmem:[%s18 + $0x78] sm:$0xff]
        %v4490 = vld [vmem:[%s18 + $0x80] sm:$0xff]
        %v4491 = vld [vmem:[%s18 + $0x88] sm:$0xff]
        %v4492 = vld [vmem:[%s18 + $0x90] sm:$0xff]
        %v4493 = vld [vmem:[%s18 + $0x98] sm:$0xff]
        %v4494 = vld [vmem:[%s18 + $0xa0] sm:$0xff]
        %v4495 = vld [vmem:[%s18 + $0xa8] sm:$0xff]
        %v4496 = vld [vmem:[%s18 + $0xb0] sm:$0xff]
        %v4497 = vld [vmem:[%s18 + $0xb8] sm:$0xff]
        %v4498 = vld [vmem:[%s18 + $0xc0] sm:$0xff]
        %v4499 = vld [vmem:[%s18 + $0xc8] sm:$0xff]
        %v4500 = vld [vmem:[%s18 + $0xd0] sm:$0xff]
        %v4501 = vld [vmem:[%s18 + $0xd8] sm:$0xff]
        %v4502 = vld [vmem:[%s18 + $0xe0] sm:$0xff]
        %v4503 = vld [vmem:[%s18 + $0xe8] sm:$0xff]
        %v4504 = vld [vmem:[%s18 + $0xf0] sm:$0xff]
        %v4505 = vld [vmem:[%s18 + $0xf8] sm:$0xff]
        %v4506 = vld [vmem:[%s18 + $0x100] sm:$0xff]
        %v4507 = vld [vmem:[%s18 + $0x108] sm:$0xff]
        %v4508 = vld [vmem:[%s18 + $0x110] sm:$0xff]
        %v4509 = vld [vmem:[%s18 + $0x118] sm:$0xff]
        %v4510 = vld [vmem:[%s18 + $0x120] sm:$0xff]
        %v4511 = vld [vmem:[%s18 + $0x128] sm:$0xff]
        %v4512 = vld [vmem:[%s18 + $0x130] sm:$0xff]
        %v4513 = vld [vmem:[%s18 + $0x138] sm:$0xff]
        %v4514 = vld [vmem:[%s18 + $0x140] sm:$0xff]
        %v4515 = vld [vmem:[%s18 + $0x148] sm:$0xff]
        %v4516 = vld [vmem:[%s18 + $0x150] sm:$0xff]
        %v4517 = vld [vmem:[%s18 + $0x158] sm:$0xff]
        %v4518 = vld [vmem:[%s18 + $0x160] sm:$0xff]
        %v4519 = vld [vmem:[%s18 + $0x168] sm:$0xff]
        %v4520 = vld [vmem:[%s18 + $0x170] sm:$0xff]
        %v4521 = vld [vmem:[%s18 + $0x178] sm:$0xff]
        %v4522 = vld [vmem:[%s18 + $0x180] sm:$0xff]
        %v4523 = vld [vmem:[%s18 + $0x188] sm:$0xff]
        %v4524 = vld [vmem:[%s18 + $0x190] sm:$0xff]
        %v4525 = vld [vmem:[%s18 + $0x198] sm:$0xff]
        %v4526 = vld [vmem:[%s18 + $0x1a0] sm:$0xff]
        %v4527 = vld [vmem:[%s18 + $0x1a8] sm:$0xff]
        %v4528 = vld [vmem:[%s18 + $0x1b0] sm:$0xff]
        %v4529 = vld [vmem:[%s18 + $0x1b8] sm:$0xff]
        %v4530 = vld [vmem:[%s18 + $0x1c0] sm:$0xff]
        %v4531 = vld [vmem:[%s18 + $0x1c8] sm:$0xff]
        %v4532 = vld [vmem:[%s18 + $0x1d0] sm:$0xff]
        %v4533 = vld [vmem:[%s18 + $0x1d8] sm:$0xff]
        %v4534 = vld [vmem:[%s18 + $0x1e0] sm:$0xff]
        %v4535 = vld [vmem:[%s18 + $0x1e8] sm:$0xff]
        %v4536 = vld [vmem:[%s18 + $0x1f0] sm:$0xff]
        %v4537 = vld [vmem:[%s18 + $0x1f8] sm:$0xff]
        %v4602 = vunpack.c.l.b16 %v4474
        %v4603 = vunpack.c.h.b16 %v4474
        %v4604 = vunpack.c.l.b16 %v4475
        %v4605 = vunpack.c.h.b16 %v4475
        %v4606 = vunpack.c.l.b16 %v4476
        %v4607 = vunpack.c.h.b16 %v4476
        %v4608 = vunpack.c.l.b16 %v4477
        %v4609 = vunpack.c.h.b16 %v4477
        %v4610 = vunpack.c.l.b16 %v4478
        %v4611 = vunpack.c.h.b16 %v4478
        %v4612 = vunpack.c.l.b16 %v4479
        %v4613 = vunpack.c.h.b16 %v4479
        %v4614 = vunpack.c.l.b16 %v4480
        %v4615 = vunpack.c.h.b16 %v4480
        %v4616 = vunpack.c.l.b16 %v4481
        %v4617 = vunpack.c.h.b16 %v4481
        %v4618 = vunpack.c.l.b16 %v4482
        %v4619 = vunpack.c.h.b16 %v4482
        %v4620 = vunpack.c.l.b16 %v4483
        %v4621 = vunpack.c.h.b16 %v4483
        %v4622 = vunpack.c.l.b16 %v4484
        %v4623 = vunpack.c.h.b16 %v4484
        %v4624 = vunpack.c.l.b16 %v4485
        %v4625 = vunpack.c.h.b16 %v4485
        %v4626 = vunpack.c.l.b16 %v4486
        %v4627 = vunpack.c.h.b16 %v4486
        %v4628 = vunpack.c.l.b16 %v4487
        %v4629 = vunpack.c.h.b16 %v4487
        %v4630 = vunpack.c.l.b16 %v4488
        %v4631 = vunpack.c.h.b16 %v4488
        %v4632 = vunpack.c.l.b16 %v4489
        %v4633 = vunpack.c.h.b16 %v4489
        %v4634 = vunpack.c.l.b16 %v4490
        %v4635 = vunpack.c.h.b16 %v4490
        %v4636 = vunpack.c.l.b16 %v4491
        %v4637 = vunpack.c.h.b16 %v4491
        %v4638 = vunpack.c.l.b16 %v4492
        %v4639 = vunpack.c.h.b16 %v4492
        %v4640 = vunpack.c.l.b16 %v4493
        %v4641 = vunpack.c.h.b16 %v4493
        %v4642 = vunpack.c.l.b16 %v4494
        %v4643 = vunpack.c.h.b16 %v4494
        %v4644 = vunpack.c.l.b16 %v4495
        %v4645 = vunpack.c.h.b16 %v4495
        %v4646 = vunpack.c.l.b16 %v4496
        %v4647 = vunpack.c.h.b16 %v4496
        %v4648 = vunpack.c.l.b16 %v4497
        %v4649 = vunpack.c.h.b16 %v4497
        %v4650 = vunpack.c.l.b16 %v4498
        %v4651 = vunpack.c.h.b16 %v4498
        %v4652 = vunpack.c.l.b16 %v4499
        %v4653 = vunpack.c.h.b16 %v4499
        %v4654 = vunpack.c.l.b16 %v4500
        %v4655 = vunpack.c.h.b16 %v4500
        %v4656 = vunpack.c.l.b16 %v4501
        %v4657 = vunpack.c.h.b16 %v4501
        %v4658 = vunpack.c.l.b16 %v4502
        %v4659 = vunpack.c.h.b16 %v4502
        %v4660 = vunpack.c.l.b16 %v4503
        %v4661 = vunpack.c.h.b16 %v4503
        %v4662 = vunpack.c.l.b16 %v4504
        %v4663 = vunpack.c.h.b16 %v4504
        %v4664 = vunpack.c.l.b16 %v4505
        %v4665 = vunpack.c.h.b16 %v4505
        %v4666 = vunpack.c.l.b16 %v4506
        %v4667 = vunpack.c.h.b16 %v4506
        %v4668 = vunpack.c.l.b16 %v4507
        %v4669 = vunpack.c.h.b16 %v4507
        %v4670 = vunpack.c.l.b16 %v4508
        %v4671 = vunpack.c.h.b16 %v4508
        %v4672 = vunpack.c.l.b16 %v4509
        %v4673 = vunpack.c.h.b16 %v4509
        %v4674 = vunpack.c.l.b16 %v4510
        %v4675 = vunpack.c.h.b16 %v4510
        %v4676 = vunpack.c.l.b16 %v4511
        %v4677 = vunpack.c.h.b16 %v4511
        %v4678 = vunpack.c.l.b16 %v4512
        %v4679 = vunpack.c.h.b16 %v4512
        %v4680 = vunpack.c.l.b16 %v4513
        %v4681 = vunpack.c.h.b16 %v4513
        %v4682 = vunpack.c.l.b16 %v4514
        %v4683 = vunpack.c.h.b16 %v4514
        %v4684 = vunpack.c.l.b16 %v4515
        %v4685 = vunpack.c.h.b16 %v4515
        %v4686 = vunpack.c.l.b16 %v4516
        %v4687 = vunpack.c.h.b16 %v4516
        %v4688 = vunpack.c.l.b16 %v4517
        %v4689 = vunpack.c.h.b16 %v4517
        %v4690 = vunpack.c.l.b16 %v4518
        %v4691 = vunpack.c.h.b16 %v4518
        %v4692 = vunpack.c.l.b16 %v4519
        %v4693 = vunpack.c.h.b16 %v4519
        %v4694 = vunpack.c.l.b16 %v4520
        %v4695 = vunpack.c.h.b16 %v4520
        %v4696 = vunpack.c.l.b16 %v4521
        %v4697 = vunpack.c.h.b16 %v4521
        %v4698 = vunpack.c.l.b16 %v4522
        %v4699 = vunpack.c.h.b16 %v4522
        %v4700 = vunpack.c.l.b16 %v4523
        %v4701 = vunpack.c.h.b16 %v4523
        %v4702 = vunpack.c.l.b16 %v4524
        %v4703 = vunpack.c.h.b16 %v4524
        %v4704 = vunpack.c.l.b16 %v4525
        %v4705 = vunpack.c.h.b16 %v4525
        %v4706 = vunpack.c.l.b16 %v4526
        %v4707 = vunpack.c.h.b16 %v4526
        %v4708 = vunpack.c.l.b16 %v4527
        %v4709 = vunpack.c.h.b16 %v4527
        %v4710 = vunpack.c.l.b16 %v4528
        %v4711 = vunpack.c.h.b16 %v4528
        %v4712 = vunpack.c.l.b16 %v4529
        %v4713 = vunpack.c.h.b16 %v4529
        %v4714 = vunpack.c.l.b16 %v4530
        %v4715 = vunpack.c.h.b16 %v4530
        %v4716 = vunpack.c.l.b16 %v4531
        %v4717 = vunpack.c.h.b16 %v4531
        %v4718 = vunpack.c.l.b16 %v4532
        %v4719 = vunpack.c.h.b16 %v4532
        %v4720 = vunpack.c.l.b16 %v4533
        %v4721 = vunpack.c.h.b16 %v4533
        %v4722 = vunpack.c.l.b16 %v4534
        %v4723 = vunpack.c.h.b16 %v4534
        %v4724 = vunpack.c.l.b16 %v4535
        %v4725 = vunpack.c.h.b16 %v4535
        %v4726 = vunpack.c.l.b16 %v4536
        %v4727 = vunpack.c.h.b16 %v4536
        %v4728 = vunpack.c.l.b16 %v4537
        %v4729 = vunpack.c.h.b16 %v4537
        %v4730 = vpack.c.b16 %v4606, %v4602
        %v4731 = vpack.c.b16 %v4607, %v4603
        %v4732 = vpack.c.b16 %v4608, %v4604
        %v4733 = vpack.c.b16 %v4609, %v4605
        %v4734 = vpack.c.b16 %v4614, %v4610
        %v4735 = vpack.c.b16 %v4615, %v4611
        %v4736 = vpack.c.b16 %v4616, %v4612
        %v4737 = vpack.c.b16 %v4617, %v4613
        %v4738 = vpack.c.b16 %v4622, %v4618
        %v4739 = vpack.c.b16 %v4623, %v4619
        %v4740 = vpack.c.b16 %v4624, %v4620
        %v4741 = vpack.c.b16 %v4625, %v4621
        %v4742 = vpack.c.b16 %v4630, %v4626
        %v4743 = vpack.c.b16 %v4631, %v4627
        %v4744 = vpack.c.b16 %v4632, %v4628
        %v4745 = vpack.c.b16 %v4633, %v4629
        %v4746 = vpack.c.b16 %v4638, %v4634
        %v4747 = vpack.c.b16 %v4639, %v4635
        %v4748 = vpack.c.b16 %v4640, %v4636
        %v4749 = vpack.c.b16 %v4641, %v4637
        %v4750 = vpack.c.b16 %v4646, %v4642
        %v4751 = vpack.c.b16 %v4647, %v4643
        %v4752 = vpack.c.b16 %v4648, %v4644
        %v4753 = vpack.c.b16 %v4649, %v4645
        %v4754 = vpack.c.b16 %v4654, %v4650
        %v4755 = vpack.c.b16 %v4655, %v4651
        %v4756 = vpack.c.b16 %v4656, %v4652
        %v4757 = vpack.c.b16 %v4657, %v4653
        %v4758 = vpack.c.b16 %v4662, %v4658
        %v4759 = vpack.c.b16 %v4663, %v4659
        %v4760 = vpack.c.b16 %v4664, %v4660
        %v4761 = vpack.c.b16 %v4665, %v4661
        %v4762 = vpack.c.b16 %v4670, %v4666
        %v4763 = vpack.c.b16 %v4671, %v4667
        %v4764 = vpack.c.b16 %v4672, %v4668
        %v4765 = vpack.c.b16 %v4673, %v4669
        %v4766 = vpack.c.b16 %v4678, %v4674
        %v4767 = vpack.c.b16 %v4679, %v4675
        %v4768 = vpack.c.b16 %v4680, %v4676
        %v4769 = vpack.c.b16 %v4681, %v4677
        %v4770 = vpack.c.b16 %v4686, %v4682
        %v4771 = vpack.c.b16 %v4687, %v4683
        %v4772 = vpack.c.b16 %v4688, %v4684
        %v4773 = vpack.c.b16 %v4689, %v4685
        %v4774 = vpack.c.b16 %v4694, %v4690
        %v4775 = vpack.c.b16 %v4695, %v4691
        %v4776 = vpack.c.b16 %v4696, %v4692
        %v4777 = vpack.c.b16 %v4697, %v4693
        %v4778 = vpack.c.b16 %v4702, %v4698
        %v4779 = vpack.c.b16 %v4703, %v4699
        %v4780 = vpack.c.b16 %v4704, %v4700
        %v4781 = vpack.c.b16 %v4705, %v4701
        %v4782 = vpack.c.b16 %v4710, %v4706
        %v4783 = vpack.c.b16 %v4711, %v4707
        %v4784 = vpack.c.b16 %v4712, %v4708
        %v4785 = vpack.c.b16 %v4713, %v4709
        %v4786 = vpack.c.b16 %v4718, %v4714
        %v4787 = vpack.c.b16 %v4719, %v4715
        %v4788 = vpack.c.b16 %v4720, %v4716
        %v4789 = vpack.c.b16 %v4721, %v4717
        %v4790 = vpack.c.b16 %v4726, %v4722
        %v4791 = vpack.c.b16 %v4727, %v4723
        %v4792 = vpack.c.b16 %v4728, %v4724
        %v4793 = vpack.c.b16 %v4729, %v4725
        %4858 = vmatprep.subr.bf16.mxu0 %v4759
        %4859 = vmatpush1.bf16.msra.mxu0 %v4758
        %4860 = vmatprep.subr.bf16.mxu0 %v4755
        %4861 = vmatpush1.bf16.msra.mxu0 %v4754
        %4862 = vmatprep.subr.bf16.mxu0 %v4751
        %4863 = vmatpush1.bf16.msra.mxu0 %v4750
        %4864 = vmatprep.subr.bf16.mxu0 %v4747
        %4865 = vmatpush1.bf16.msra.mxu0 %v4746
        %4866 = vmatprep.subr.bf16.mxu0 %v4743
        %4867 = vmatpush1.bf16.msra.mxu0 %v4742
        %4868 = vmatprep.subr.bf16.mxu0 %v4739
        %4869 = vmatpush1.bf16.msra.mxu0 %v4738
        %4870 = vmatprep.subr.bf16.mxu0 %v4735
        %4871 = vmatpush1.bf16.msra.mxu0 %v4734
        %4872 = vmatprep.subr.bf16.mxu0 %v4731
        %4873 = vmatpush1.bf16.msra.mxu0 %v4730
        %4874 = vmatprep.subr.bf16.mxu0 %v4791
        %4875 = vmatpush2.bf16.msra.mxu0 %v4790
        %4876 = vmatprep.subr.bf16.mxu0 %v4787
        %4877 = vmatpush2.bf16.msra.mxu0 %v4786
        %4878 = vmatprep.subr.bf16.mxu0 %v4783
        %4879 = vmatpush2.bf16.msra.mxu0 %v4782
        %4880 = vmatprep.subr.bf16.mxu0 %v4779
        %4881 = vmatpush2.bf16.msra.mxu0 %v4778
        %4882 = vmatprep.subr.bf16.mxu0 %v4775
        %4883 = vmatpush2.bf16.msra.mxu0 %v4774
        %4884 = vmatprep.subr.bf16.mxu0 %v4771
        %4885 = vmatpush2.bf16.msra.mxu0 %v4770
        %4886 = vmatprep.subr.bf16.mxu0 %v4767
        %4887 = vmatpush2.bf16.msra.mxu0 %v4766
        %4888 = vmatprep.subr.bf16.mxu0 %v4763
        %4889 = vmatpush2.bf16.msra.mxu0 %v4762
        %4890 = vmatprep.mubr.bf16.mxu0 %v4071
        %4891 = vmatmul.mubr.bf16.gmra.mxu0 %v4070
        %v4892 = vpop.f32.mrf.mxu0
        %v4893 = vadd.f32 0.0, %v4892
        %v4894 = vpop.f32.mrf.mxu0
        %v4895 = vadd.f32 0.0, %v4894
        %v4896 = vpop.f32.mrf.mxu0
        %v4897 = vpop.f32.mrf.mxu0
        %4898 = vdwg.mxu0
        %4899 = vmatprep.subr.bf16.mxu0 %v4761
        %4900 = vmatpush1.bf16.msra.mxu0 %v4760
        %4901 = vmatprep.subr.bf16.mxu0 %v4757
        %4902 = vmatpush1.bf16.msra.mxu0 %v4756
        %4903 = vmatprep.subr.bf16.mxu0 %v4753
        %4904 = vmatpush1.bf16.msra.mxu0 %v4752
        %4905 = vmatprep.subr.bf16.mxu0 %v4749
        %4906 = vmatpush1.bf16.msra.mxu0 %v4748
        %4907 = vmatprep.subr.bf16.mxu0 %v4745
        %4908 = vmatpush1.bf16.msra.mxu0 %v4744
        %4909 = vmatprep.subr.bf16.mxu0 %v4741
        %4910 = vmatpush1.bf16.msra.mxu0 %v4740
        %4911 = vmatprep.subr.bf16.mxu0 %v4737
        %4912 = vmatpush1.bf16.msra.mxu0 %v4736
        %4913 = vmatprep.subr.bf16.mxu0 %v4733
        %4914 = vmatpush1.bf16.msra.mxu0 %v4732
        %4915 = vmatprep.subr.bf16.mxu0 %v4793
        %4916 = vmatpush2.bf16.msra.mxu0 %v4792
        %4917 = vmatprep.subr.bf16.mxu0 %v4789
        %4918 = vmatpush2.bf16.msra.mxu0 %v4788
        %4919 = vmatprep.subr.bf16.mxu0 %v4785
        %4920 = vmatpush2.bf16.msra.mxu0 %v4784
        %4921 = vmatprep.subr.bf16.mxu0 %v4781
        %4922 = vmatpush2.bf16.msra.mxu0 %v4780
        %4923 = vmatprep.subr.bf16.mxu0 %v4777
        %4924 = vmatpush2.bf16.msra.mxu0 %v4776
        %4925 = vmatprep.subr.bf16.mxu0 %v4773
        %4926 = vmatpush2.bf16.msra.mxu0 %v4772
        %4927 = vmatprep.subr.bf16.mxu0 %v4769
        %4928 = vmatpush2.bf16.msra.mxu0 %v4768
        %4929 = vmatprep.subr.bf16.mxu0 %v4765
        %4930 = vmatpush2.bf16.msra.mxu0 %v4764
        %4931 = vmatprep.mubr.bf16.mxu0 %v4071
        %4932 = vmatmul.mubr.bf16.gmra.mxu0 %v4070
        %v4933 = vpop.f32.mrf.mxu0
        %v4934 = vadd.f32 0.0, %v4933
        %v4935 = vpop.f32.mrf.mxu0
        %v4936 = vadd.f32 0.0, %v4935
        %v4937 = vpop.f32.mrf.mxu0
        %v4938 = vpop.f32.mrf.mxu0
        %4939 = vdwg.mxu0
        %v4940 = vxor.u32 %v4427, 2147483648
        %v4941 = vxor.u32 %v4429, 2147483648
        %v4942 = vxor.u32 %v4468, 2147483648
        %v4943 = vxor.u32 %v4470, 2147483648
        %v4944 = vmul.f32 %v4940, 1.442695
        %v4945 = vpow.pop %v4944
        %v4946 = vmul.f32 %v4941, 1.442695
        %v4947 = vpow.pop %v4946
        %v4948 = vmul.f32 %v4942, 1.442695
        %v4949 = vpow.pop %v4948
        %v4950 = vmul.f32 %v4943, 1.442695
        %v4951 = vpow.pop %v4950
        %v4952 = vadd.f32 %v4945, 1.0
        %v4953 = vadd.f32 %v4947, 1.0
        %v4954 = vadd.f32 %v4949, 1.0
        %v4955 = vadd.f32 %v4951, 1.0
        %v4956 = vrcp.pop %v4952
        %v4957 = vmul.f32 1.0, %v4956
        %v4958 = vrcp.pop %v4953
        %v4959 = vmul.f32 1.0, %v4958
        %v4960 = vrcp.pop %v4954
        %v4961 = vmul.f32 1.0, %v4960
        %v4962 = vrcp.pop %v4955
        %v4963 = vmul.f32 1.0, %v4962
        %v4964 = vmul.f32 %v4427, %v4957
        %v4965 = vmul.f32 %v4429, %v4959
        %v4966 = vmul.f32 %v4468, %v4961
        %v4967 = vmul.f32 %v4470, %v4963
        %v4968 = vmul.f32 %v4964, %v4893
        %v4969 = vmul.f32 %v4965, %v4895
        %v4970 = vmul.f32 %v4966, %v4934
        %v4971 = vmul.f32 %v4967, %v4936
        %v4972 = vld [vmem:[%s19] sm:$0xff]
        %v4973 = vld [vmem:[%s19 + $0x8] sm:$0xff]
        %v4974 = vld [vmem:[%s19 + $0x10] sm:$0xff]
        %v4975 = vld [vmem:[%s19 + $0x18] sm:$0xff]
        %v4976 = vld [vmem:[%s19 + $0x20] sm:$0xff]
        %v4977 = vld [vmem:[%s19 + $0x28] sm:$0xff]
        %v4978 = vld [vmem:[%s19 + $0x30] sm:$0xff]
        %v4979 = vld [vmem:[%s19 + $0x38] sm:$0xff]
        %v4980 = vld [vmem:[%s19 + $0x40] sm:$0xff]
        %v4981 = vld [vmem:[%s19 + $0x48] sm:$0xff]
        %v4982 = vld [vmem:[%s19 + $0x50] sm:$0xff]
        %v4983 = vld [vmem:[%s19 + $0x58] sm:$0xff]
        %v4984 = vld [vmem:[%s19 + $0x60] sm:$0xff]
        %v4985 = vld [vmem:[%s19 + $0x68] sm:$0xff]
        %v4986 = vld [vmem:[%s19 + $0x70] sm:$0xff]
        %v4987 = vld [vmem:[%s19 + $0x78] sm:$0xff]
        %v4988 = vld [vmem:[%s19 + $0x80] sm:$0xff]
        %v4989 = vld [vmem:[%s19 + $0x88] sm:$0xff]
        %v4990 = vld [vmem:[%s19 + $0x90] sm:$0xff]
        %v4991 = vld [vmem:[%s19 + $0x98] sm:$0xff]
        %v4992 = vld [vmem:[%s19 + $0xa0] sm:$0xff]
        %v4993 = vld [vmem:[%s19 + $0xa8] sm:$0xff]
        %v4994 = vld [vmem:[%s19 + $0xb0] sm:$0xff]
        %v4995 = vld [vmem:[%s19 + $0xb8] sm:$0xff]
        %v4996 = vld [vmem:[%s19 + $0xc0] sm:$0xff]
        %v4997 = vld [vmem:[%s19 + $0xc8] sm:$0xff]
        %v4998 = vld [vmem:[%s19 + $0xd0] sm:$0xff]
        %v4999 = vld [vmem:[%s19 + $0xd8] sm:$0xff]
        %v5000 = vld [vmem:[%s19 + $0xe0] sm:$0xff]
        %v5001 = vld [vmem:[%s19 + $0xe8] sm:$0xff]
        %v5002 = vld [vmem:[%s19 + $0xf0] sm:$0xff]
        %v5003 = vld [vmem:[%s19 + $0xf8] sm:$0xff]
        %v5004 = vld [vmem:[%s19 + $0x100] sm:$0xff]
        %v5005 = vld [vmem:[%s19 + $0x108] sm:$0xff]
        %v5006 = vld [vmem:[%s19 + $0x110] sm:$0xff]
        %v5007 = vld [vmem:[%s19 + $0x118] sm:$0xff]
        %v5008 = vld [vmem:[%s19 + $0x120] sm:$0xff]
        %v5009 = vld [vmem:[%s19 + $0x128] sm:$0xff]
        %v5010 = vld [vmem:[%s19 + $0x130] sm:$0xff]
        %v5011 = vld [vmem:[%s19 + $0x138] sm:$0xff]
        %v5012 = vld [vmem:[%s19 + $0x140] sm:$0xff]
        %v5013 = vld [vmem:[%s19 + $0x148] sm:$0xff]
        %v5014 = vld [vmem:[%s19 + $0x150] sm:$0xff]
        %v5015 = vld [vmem:[%s19 + $0x158] sm:$0xff]
        %v5016 = vld [vmem:[%s19 + $0x160] sm:$0xff]
        %v5017 = vld [vmem:[%s19 + $0x168] sm:$0xff]
        %v5018 = vld [vmem:[%s19 + $0x170] sm:$0xff]
        %v5019 = vld [vmem:[%s19 + $0x178] sm:$0xff]
        %v5020 = vld [vmem:[%s19 + $0x180] sm:$0xff]
        %v5021 = vld [vmem:[%s19 + $0x188] sm:$0xff]
        %v5022 = vld [vmem:[%s19 + $0x190] sm:$0xff]
        %v5023 = vld [vmem:[%s19 + $0x198] sm:$0xff]
        %v5024 = vld [vmem:[%s19 + $0x1a0] sm:$0xff]
        %v5025 = vld [vmem:[%s19 + $0x1a8] sm:$0xff]
        %v5026 = vld [vmem:[%s19 + $0x1b0] sm:$0xff]
        %v5027 = vld [vmem:[%s19 + $0x1b8] sm:$0xff]
        %v5028 = vld [vmem:[%s19 + $0x1c0] sm:$0xff]
        %v5029 = vld [vmem:[%s19 + $0x1c8] sm:$0xff]
        %v5030 = vld [vmem:[%s19 + $0x1d0] sm:$0xff]
        %v5031 = vld [vmem:[%s19 + $0x1d8] sm:$0xff]
        %v5032 = vld [vmem:[%s19 + $0x1e0] sm:$0xff]
        %v5033 = vld [vmem:[%s19 + $0x1e8] sm:$0xff]
        %v5034 = vld [vmem:[%s19 + $0x1f0] sm:$0xff]
        %v5035 = vld [vmem:[%s19 + $0x1f8] sm:$0xff]
        %v5036 = vpack.c.bf16 %v4968, %v4968
        %v5037 = vpack.c.bf16 %v4969, %v4969
        %v5038 = vpack.c.bf16 %v4970, %v4970
        %v5039 = vpack.c.bf16 %v4971, %v4971
        %v5104 = vunpack.c.l.b16 %v4972
        %v5105 = vunpack.c.h.b16 %v4972
        %v5106 = vunpack.c.l.b16 %v4973
        %v5107 = vunpack.c.h.b16 %v4973
        %v5108 = vunpack.c.l.b16 %v4974
        %v5109 = vunpack.c.h.b16 %v4974
        %v5110 = vunpack.c.l.b16 %v4975
        %v5111 = vunpack.c.h.b16 %v4975
        %v5112 = vunpack.c.l.b16 %v4976
        %v5113 = vunpack.c.h.b16 %v4976
        %v5114 = vunpack.c.l.b16 %v4977
        %v5115 = vunpack.c.h.b16 %v4977
        %v5116 = vunpack.c.l.b16 %v4978
        %v5117 = vunpack.c.h.b16 %v4978
        %v5118 = vunpack.c.l.b16 %v4979
        %v5119 = vunpack.c.h.b16 %v4979
        %v5120 = vunpack.c.l.b16 %v4980
        %v5121 = vunpack.c.h.b16 %v4980
        %v5122 = vunpack.c.l.b16 %v4981
        %v5123 = vunpack.c.h.b16 %v4981
        %v5124 = vunpack.c.l.b16 %v4982
        %v5125 = vunpack.c.h.b16 %v4982
        %v5126 = vunpack.c.l.b16 %v4983
        %v5127 = vunpack.c.h.b16 %v4983
        %v5128 = vunpack.c.l.b16 %v4984
        %v5129 = vunpack.c.h.b16 %v4984
        %v5130 = vunpack.c.l.b16 %v4985
        %v5131 = vunpack.c.h.b16 %v4985
        %v5132 = vunpack.c.l.b16 %v4986
        %v5133 = vunpack.c.h.b16 %v4986
        %v5134 = vunpack.c.l.b16 %v4987
        %v5135 = vunpack.c.h.b16 %v4987
        %v5136 = vunpack.c.l.b16 %v4988
        %v5137 = vunpack.c.h.b16 %v4988
        %v5138 = vunpack.c.l.b16 %v4989
        %v5139 = vunpack.c.h.b16 %v4989
        %v5140 = vunpack.c.l.b16 %v4990
        %v5141 = vunpack.c.h.b16 %v4990
        %v5142 = vunpack.c.l.b16 %v4991
        %v5143 = vunpack.c.h.b16 %v4991
        %v5144 = vunpack.c.l.b16 %v4992
        %v5145 = vunpack.c.h.b16 %v4992
        %v5146 = vunpack.c.l.b16 %v4993
        %v5147 = vunpack.c.h.b16 %v4993
        %v5148 = vunpack.c.l.b16 %v4994
        %v5149 = vunpack.c.h.b16 %v4994
        %v5150 = vunpack.c.l.b16 %v4995
        %v5151 = vunpack.c.h.b16 %v4995
        %v5152 = vunpack.c.l.b16 %v4996
        %v5153 = vunpack.c.h.b16 %v4996
        %v5154 = vunpack.c.l.b16 %v4997
        %v5155 = vunpack.c.h.b16 %v4997
        %v5156 = vunpack.c.l.b16 %v4998
        %v5157 = vunpack.c.h.b16 %v4998
        %v5158 = vunpack.c.l.b16 %v4999
        %v5159 = vunpack.c.h.b16 %v4999
        %v5160 = vunpack.c.l.b16 %v5000
        %v5161 = vunpack.c.h.b16 %v5000
        %v5162 = vunpack.c.l.b16 %v5001
        %v5163 = vunpack.c.h.b16 %v5001
        %v5164 = vunpack.c.l.b16 %v5002
        %v5165 = vunpack.c.h.b16 %v5002
        %v5166 = vunpack.c.l.b16 %v5003
        %v5167 = vunpack.c.h.b16 %v5003
        %v5168 = vunpack.c.l.b16 %v5004
        %v5169 = vunpack.c.h.b16 %v5004
        %v5170 = vunpack.c.l.b16 %v5005
        %v5171 = vunpack.c.h.b16 %v5005
        %v5172 = vunpack.c.l.b16 %v5006
        %v5173 = vunpack.c.h.b16 %v5006
        %v5174 = vunpack.c.l.b16 %v5007
        %v5175 = vunpack.c.h.b16 %v5007
        %v5176 = vunpack.c.l.b16 %v5008
        %v5177 = vunpack.c.h.b16 %v5008
        %v5178 = vunpack.c.l.b16 %v5009
        %v5179 = vunpack.c.h.b16 %v5009
        %v5180 = vunpack.c.l.b16 %v5010
        %v5181 = vunpack.c.h.b16 %v5010
        %v5182 = vunpack.c.l.b16 %v5011
        %v5183 = vunpack.c.h.b16 %v5011
        %v5184 = vunpack.c.l.b16 %v5012
        %v5185 = vunpack.c.h.b16 %v5012
        %v5186 = vunpack.c.l.b16 %v5013
        %v5187 = vunpack.c.h.b16 %v5013
        %v5188 = vunpack.c.l.b16 %v5014
        %v5189 = vunpack.c.h.b16 %v5014
        %v5190 = vunpack.c.l.b16 %v5015
        %v5191 = vunpack.c.h.b16 %v5015
        %v5192 = vunpack.c.l.b16 %v5016
        %v5193 = vunpack.c.h.b16 %v5016
        %v5194 = vunpack.c.l.b16 %v5017
        %v5195 = vunpack.c.h.b16 %v5017
        %v5196 = vunpack.c.l.b16 %v5018
        %v5197 = vunpack.c.h.b16 %v5018
        %v5198 = vunpack.c.l.b16 %v5019
        %v5199 = vunpack.c.h.b16 %v5019
        %v5200 = vunpack.c.l.b16 %v5020
        %v5201 = vunpack.c.h.b16 %v5020
        %v5202 = vunpack.c.l.b16 %v5021
        %v5203 = vunpack.c.h.b16 %v5021
        %v5204 = vunpack.c.l.b16 %v5022
        %v5205 = vunpack.c.h.b16 %v5022
        %v5206 = vunpack.c.l.b16 %v5023
        %v5207 = vunpack.c.h.b16 %v5023
        %v5208 = vunpack.c.l.b16 %v5024
        %v5209 = vunpack.c.h.b16 %v5024
        %v5210 = vunpack.c.l.b16 %v5025
        %v5211 = vunpack.c.h.b16 %v5025
        %v5212 = vunpack.c.l.b16 %v5026
        %v5213 = vunpack.c.h.b16 %v5026
        %v5214 = vunpack.c.l.b16 %v5027
        %v5215 = vunpack.c.h.b16 %v5027
        %v5216 = vunpack.c.l.b16 %v5028
        %v5217 = vunpack.c.h.b16 %v5028
        %v5218 = vunpack.c.l.b16 %v5029
        %v5219 = vunpack.c.h.b16 %v5029
        %v5220 = vunpack.c.l.b16 %v5030
        %v5221 = vunpack.c.h.b16 %v5030
        %v5222 = vunpack.c.l.b16 %v5031
        %v5223 = vunpack.c.h.b16 %v5031
        %v5224 = vunpack.c.l.b16 %v5032
        %v5225 = vunpack.c.h.b16 %v5032
        %v5226 = vunpack.c.l.b16 %v5033
        %v5227 = vunpack.c.h.b16 %v5033
        %v5228 = vunpack.c.l.b16 %v5034
        %v5229 = vunpack.c.h.b16 %v5034
        %v5230 = vunpack.c.l.b16 %v5035
        %v5231 = vunpack.c.h.b16 %v5035
        %v5232 = vpack.c.b16 %v5106, %v5104
        %v5233 = vpack.c.b16 %v5107, %v5105
        %v5234 = vpack.c.b16 %v5110, %v5108
        %v5235 = vpack.c.b16 %v5111, %v5109
        %v5236 = vpack.c.b16 %v5114, %v5112
        %v5237 = vpack.c.b16 %v5115, %v5113
        %v5238 = vpack.c.b16 %v5118, %v5116
        %v5239 = vpack.c.b16 %v5119, %v5117
        %v5240 = vpack.c.b16 %v5122, %v5120
        %v5241 = vpack.c.b16 %v5123, %v5121
        %v5242 = vpack.c.b16 %v5126, %v5124
        %v5243 = vpack.c.b16 %v5127, %v5125
        %v5244 = vpack.c.b16 %v5130, %v5128
        %v5245 = vpack.c.b16 %v5131, %v5129
        %v5246 = vpack.c.b16 %v5134, %v5132
        %v5247 = vpack.c.b16 %v5135, %v5133
        %v5248 = vpack.c.b16 %v5138, %v5136
        %v5249 = vpack.c.b16 %v5139, %v5137
        %v5250 = vpack.c.b16 %v5142, %v5140
        %v5251 = vpack.c.b16 %v5143, %v5141
        %v5252 = vpack.c.b16 %v5146, %v5144
        %v5253 = vpack.c.b16 %v5147, %v5145
        %v5254 = vpack.c.b16 %v5150, %v5148
        %v5255 = vpack.c.b16 %v5151, %v5149
        %v5256 = vpack.c.b16 %v5154, %v5152
        %v5257 = vpack.c.b16 %v5155, %v5153
        %v5258 = vpack.c.b16 %v5158, %v5156
        %v5259 = vpack.c.b16 %v5159, %v5157
        %v5260 = vpack.c.b16 %v5162, %v5160
        %v5261 = vpack.c.b16 %v5163, %v5161
        %v5262 = vpack.c.b16 %v5166, %v5164
        %v5263 = vpack.c.b16 %v5167, %v5165
        %v5264 = vpack.c.b16 %v5170, %v5168
        %v5265 = vpack.c.b16 %v5171, %v5169
        %v5266 = vpack.c.b16 %v5174, %v5172
        %v5267 = vpack.c.b16 %v5175, %v5173
        %v5268 = vpack.c.b16 %v5178, %v5176
        %v5269 = vpack.c.b16 %v5179, %v5177
        %v5270 = vpack.c.b16 %v5182, %v5180
        %v5271 = vpack.c.b16 %v5183, %v5181
        %v5272 = vpack.c.b16 %v5186, %v5184
        %v5273 = vpack.c.b16 %v5187, %v5185
        %v5274 = vpack.c.b16 %v5190, %v5188
        %v5275 = vpack.c.b16 %v5191, %v5189
        %v5276 = vpack.c.b16 %v5194, %v5192
        %v5277 = vpack.c.b16 %v5195, %v5193
        %v5278 = vpack.c.b16 %v5198, %v5196
        %v5279 = vpack.c.b16 %v5199, %v5197
        %v5280 = vpack.c.b16 %v5202, %v5200
        %v5281 = vpack.c.b16 %v5203, %v5201
        %v5282 = vpack.c.b16 %v5206, %v5204
        %v5283 = vpack.c.b16 %v5207, %v5205
        %v5284 = vpack.c.b16 %v5210, %v5208
        %v5285 = vpack.c.b16 %v5211, %v5209
        %v5286 = vpack.c.b16 %v5214, %v5212
        %v5287 = vpack.c.b16 %v5215, %v5213
        %v5288 = vpack.c.b16 %v5218, %v5216
        %v5289 = vpack.c.b16 %v5219, %v5217
        %v5290 = vpack.c.b16 %v5222, %v5220
        %v5291 = vpack.c.b16 %v5223, %v5221
        %v5292 = vpack.c.b16 %v5226, %v5224
        %v5293 = vpack.c.b16 %v5227, %v5225
        %v5294 = vpack.c.b16 %v5230, %v5228
        %v5295 = vpack.c.b16 %v5231, %v5229
        %5360 = vmatprep.subr.bf16.mxu0 %v5247
        %5361 = vmatpush1.bf16.msra.mxu0 %v5246
        %5362 = vmatprep.subr.bf16.mxu0 %v5245
        %5363 = vmatpush1.bf16.msra.mxu0 %v5244
        %5364 = vmatprep.subr.bf16.mxu0 %v5243
        %5365 = vmatpush1.bf16.msra.mxu0 %v5242
        %5366 = vmatprep.subr.bf16.mxu0 %v5241
        %5367 = vmatpush1.bf16.msra.mxu0 %v5240
        %5368 = vmatprep.subr.bf16.mxu0 %v5239
        %5369 = vmatpush1.bf16.msra.mxu0 %v5238
        %5370 = vmatprep.subr.bf16.mxu0 %v5237
        %5371 = vmatpush1.bf16.msra.mxu0 %v5236
        %5372 = vmatprep.subr.bf16.mxu0 %v5235
        %5373 = vmatpush1.bf16.msra.mxu0 %v5234
        %5374 = vmatprep.subr.bf16.mxu0 %v5233
        %5375 = vmatpush1.bf16.msra.mxu0 %v5232
        %5376 = vmatprep.subr.bf16.mxu0 %v5263
        %5377 = vmatpush2.bf16.msra.mxu0 %v5262
        %5378 = vmatprep.subr.bf16.mxu0 %v5261
        %5379 = vmatpush2.bf16.msra.mxu0 %v5260
        %5380 = vmatprep.subr.bf16.mxu0 %v5259
        %5381 = vmatpush2.bf16.msra.mxu0 %v5258
        %5382 = vmatprep.subr.bf16.mxu0 %v5257
        %5383 = vmatpush2.bf16.msra.mxu0 %v5256
        %5384 = vmatprep.subr.bf16.mxu0 %v5255
        %5385 = vmatpush2.bf16.msra.mxu0 %v5254
        %5386 = vmatprep.subr.bf16.mxu0 %v5253
        %5387 = vmatpush2.bf16.msra.mxu0 %v5252
        %5388 = vmatprep.subr.bf16.mxu0 %v5251
        %5389 = vmatpush2.bf16.msra.mxu0 %v5250
        %5390 = vmatprep.subr.bf16.mxu0 %v5249
        %5391 = vmatpush2.bf16.msra.mxu0 %v5248
        %5392 = vmatprep.mubr.bf16.mxu0 %v5037
        %5393 = vmatmul.mubr.bf16.gmra.mxu0 %v5036
        %v5394 = vpop.f32.mrf.mxu0
        %v5395 = vadd.f32 0.0, %v5394
        %v5396 = vpop.f32.mrf.mxu0
        %v5397 = vadd.f32 0.0, %v5396
        %v5398 = vpop.f32.mrf.mxu0
        %v5399 = vpop.f32.mrf.mxu0
        %5400 = vdwg.mxu0
        %5401 = vmatprep.subr.bf16.mxu0 %v5279
        %5402 = vmatpush1.bf16.msra.mxu0 %v5278
        %5403 = vmatprep.subr.bf16.mxu0 %v5277
        %5404 = vmatpush1.bf16.msra.mxu0 %v5276
        %5405 = vmatprep.subr.bf16.mxu0 %v5275
        %5406 = vmatpush1.bf16.msra.mxu0 %v5274
        %5407 = vmatprep.subr.bf16.mxu0 %v5273
        %5408 = vmatpush1.bf16.msra.mxu0 %v5272
        %5409 = vmatprep.subr.bf16.mxu0 %v5271
        %5410 = vmatpush1.bf16.msra.mxu0 %v5270
        %5411 = vmatprep.subr.bf16.mxu0 %v5269
        %5412 = vmatpush1.bf16.msra.mxu0 %v5268
        %5413 = vmatprep.subr.bf16.mxu0 %v5267
        %5414 = vmatpush1.bf16.msra.mxu0 %v5266
        %5415 = vmatprep.subr.bf16.mxu0 %v5265
        %5416 = vmatpush1.bf16.msra.mxu0 %v5264
        %5417 = vmatprep.subr.bf16.mxu0 %v5295
        %5418 = vmatpush2.bf16.msra.mxu0 %v5294
        %5419 = vmatprep.subr.bf16.mxu0 %v5293
        %5420 = vmatpush2.bf16.msra.mxu0 %v5292
        %5421 = vmatprep.subr.bf16.mxu0 %v5291
        %5422 = vmatpush2.bf16.msra.mxu0 %v5290
        %5423 = vmatprep.subr.bf16.mxu0 %v5289
        %5424 = vmatpush2.bf16.msra.mxu0 %v5288
        %5425 = vmatprep.subr.bf16.mxu0 %v5287
        %5426 = vmatpush2.bf16.msra.mxu0 %v5286
        %5427 = vmatprep.subr.bf16.mxu0 %v5285
        %5428 = vmatpush2.bf16.msra.mxu0 %v5284
        %5429 = vmatprep.subr.bf16.mxu0 %v5283
        %5430 = vmatpush2.bf16.msra.mxu0 %v5282
        %5431 = vmatprep.subr.bf16.mxu0 %v5281
        %5432 = vmatpush2.bf16.msra.mxu0 %v5280
        %5433 = vmatprep.mubr.bf16.mxu0 %v5039
        %5434 = vmatmul.mubr.bf16.gmra.mxu0 %v5038
        %v5435 = vpop.f32.mrf.mxu0
        %v5436 = vadd.f32 %v5395, %v5435
        %v5437 = vpop.f32.mrf.mxu0
        %v5438 = vadd.f32 %v5397, %v5437
        %v5439 = vpop.f32.mrf.mxu0
        %v5440 = vpop.f32.mrf.mxu0
        %5441 = vdwg.mxu0
        %v5442 = vadd.f32 %v3980, %v5436
        %v5443 = vadd.f32 %v3981, %v5438
        %5444 = vst [vmem:[%s650] sm:$0xff] %v5442
        %5445 = vst [vmem:[%s650 + $0x8] sm:$0xff] %v5443
        %s5446 = sand.u32 %s469, 1
        %s5447 = scalar_lea.sflag [#allocation4], %s5446
        %s5448 = sand.u32 %s469, 1
        %s5449 = smul.addr %s5448, 16
        %s5450 = scalar_lea.vmem [#allocation7], %s5449
        // Predicated region
        $region109: #{deepseekv2_decoder_layer.1} parent=99 // pred_check
          %p5451 = pneg %p479
        $region110: #{deepseekv2_decoder_layer.1} parent=99 // pred_check_branch
          %5453 = sbr.rel (%p5451) target = $region112
        $region111: #{deepseekv2_decoder_layer.1} parent=99 // pred_region
          %s5455 = ssub.s32 256, 256
          %5456 = vsyncadd %s5447, %s5455
          %s5457 = smul.addr %s36, 2
          %s5458 = smul.addr %s5457, 128
          %s5459 = scalar_lea.hbm %s20, %s5458
          %s5461 = sshll.u32 %s5450, 4
          %s5462 = int_to_ptr.vmem [resolvable:$true] %s5461
          %5464 = dma.vmem_to_hbm [thread:$0]  %s5462, 256, %s5459, %s5447
        $region112: #{deepseekv2_decoder_layer.1} parent=99 // pred_fallthru
          _
      $region100: #{deepseekv2_decoder_layer.1} parent=5 // pred_fallthru
        _
      %p5465 = scmp.le.s32.totalorder 2, %s31
      // Predicated region
      $region113: #{deepseekv2_decoder_layer.1} parent=5 // pred_check
        %p5466 = pneg %p5465
      $region114: #{deepseekv2_decoder_layer.1} parent=5 // pred_check_branch
        %5468 = sbr.rel (%p5466) target = $region116
      $region115: #{deepseekv2_decoder_layer.1} parent=5 // pred_region
        %s5469 = ssub.s32 %s31, 2
        // Predicated region
        $region117: #{deepseekv2_decoder_layer.1} parent=115 // pred_check
          %p5470 = pneg %p485
        $region118: #{deepseekv2_decoder_layer.1} parent=115 // pred_check_branch
          %5472 = sbr.rel (%p5470) target = $region120
        $region119: #{deepseekv2_decoder_layer.1} parent=115 // pred_region
          %s5473 = sand.u32 %s470, 1
          %s5474 = scalar_lea.sflag [#allocation4], %s5473
          %s5475 = sand.u32 %s470, 1
          %s5476 = smul.addr %s5475, 16
          %s5477 = scalar_lea.vmem [#allocation7], %s5476
          %5478 = dma.done %s5474, 256
        $region120: #{deepseekv2_decoder_layer.1} parent=115 // pred_fallthru
          _
      $region116: #{deepseekv2_decoder_layer.1} parent=5 // pred_fallthru
        _
    $region6: #{deepseekv2_decoder_layer.1} parent=1 // loop_footer
      %s35 = sadd.s32 1, %s31
    $region7: #{deepseekv2_decoder_layer.1} parent=1 // loop_footer_branch
      %30 = sbr.rel target = $region3
    $region8: #{deepseekv2_decoder_layer.1} parent=1 // loop_exit
      _
    %5479 = vsyncpa [#allocation3], 1
    %s5480 = scalar_lea.sflag [#allocation3], 1
    %5481 = vsyncpa %s5480, 1
    %5482 = vsyncpa [#allocation6], 1
    %5483 = vsyncpa [#allocation4], 1
    %s5484 = scalar_lea.sflag [#allocation4], 1
    %5485 = vsyncpa %s5484, 1

</llo_original>
